<compile_context>
chip_gen: v7x
topology: tpu7x:2x2x1
jax: 0.10.0
libtpu: 0.0.40
codegen_flags: <defaults>
</compile_context>

<pallas_src>
import functools

import jax
import jax.numpy as jnp
from jax import lax
from jax.experimental import pallas as pl
from jax.experimental.pallas import tpu as pltpu

EPS = 1e-5

# On v6e / v7x set to jnp.bfloat16 for ~2x MXU throughput and half the weight /
# im2col bytes (accumulation stays f32 via preferred_element_type). Kept at f32
# here so the numerical check against the f32 JAX reference stays tight.
MATMUL_DTYPE = jnp.float32


def _upconv_stats_kernel(xp_ref, w_ref, b_ref, y_ref, stats_ref, *, K):
    # xp_ref:    (1, H+2, W+2, Cin)  input image zero-padded by 1 in input space
    #                                (== conv padding 1 after 2x nearest upsample)
    # w_ref:     (K*K*Cin, Cout)     HWIO conv weight, taps flattened (kh, kw, ci)
    # b_ref:     (1, Cout)
    # y_ref:     (1, TR, W2, Cout)   conv output tile (f32, pre-BatchNorm)
    # stats_ref: (1, 1, 2, Cout)     per-tile [sum, sum_of_squares] over TR*W2
    _, TR, W2, Cout = y_ref.shape
    Cin = xp_ref.shape[3]
    j = pl.program_id(1)

    # Padded-input rows feeding this tile of TR upsampled output rows.
    nri = TR // 2 + 2
    si = pl.multiple_of(j * (TR // 2), TR // 2)
    blk = xp_ref[0, pl.ds(si, nri), :, :]                       # (nri, W+2, Cin)

    # Nearest-neighbour 2x upsample, then slice exactly the zero-padded
    # upsampled rows/cols the conv taps of this tile touch.
    up = jnp.repeat(jnp.repeat(blk, 2, axis=0), 2, axis=1)      # (2*nri, 2W+4, Cin)
    slab = up[1:TR + 3, 1:W2 + 3, :]                            # (TR+2, W2+2, Cin)

    # im2col: one MXU matmul per tile (contraction K*K*Cin) instead of K*K dots.
    cols = [slab[kh:kh + TR, kw:kw + W2, :]
            for kh in range(K) for kw in range(K)]
    patches = jnp.concatenate(cols, axis=-1).reshape(TR * W2, K * K * Cin)

    acc = jnp.dot(patches.astype(MATMUL_DTYPE),
                  w_ref[...].astype(MATMUL_DTYPE),
                  preferred_element_type=jnp.float32)           # (TR*W2, Cout)
    acc = acc + b_ref[...]

    y_ref[...] = acc.reshape(1, TR, W2, Cout)

    # Per-tile partial BatchNorm statistics (f32), fused with the conv pass.
    stats = jnp.concatenate(
        [jnp.sum(acc, axis=0, keepdims=True),
         jnp.sum(acc * acc, axis=0, keepdims=True)], axis=0)    # (2, Cout)
    stats_ref[...] = stats.reshape(1, 1, 2, Cout)


def _bn_relu_kernel(y_ref, scale_ref, shift_ref, o_ref):
    # Lane-dense elementwise pass: last dim = W2*Cout (multiple of 128), so the
    # normalize+ReLU is a single FMA per element with unmasked vector stores.
    o_ref[...] = jnp.maximum(
        y_ref[...] * scale_ref[...] + shift_ref[...], 0.0).astype(o_ref.dtype)


def upblock2d_forward(x_nchw, w_oihw, bias, gamma, beta, *,
                      kernel_size=3, padding=1):
    N, Cin, H, W = x_nchw.shape
    K, P = kernel_size, padding
    assert K == 3 and P == 1, "kernel specialised to the module defaults (k=3, p=1)"
    # TODO(synk): groups != 1 (grouped conv) and non-default kernel_size/padding
    # are not implemented.
    Cout = w_oihw.shape[0]
    H2, W2 = 2 * H, 2 * W

    # Output-row tile (upsampled rows) for the conv pass: even divisor of H2.
    TR = next(t for t in (16, 8, 4, 2) if H2 % t == 0)
    nrb = H2 // TR

    # Layout plumbing on the SMALL pre-upsample input: NCHW -> NHWC plus a
    # 1-pixel zero pad in input space (== the conv's padding halo after 2x
    # nearest upsampling).
    x_nhwc = jnp.transpose(x_nchw, (0, 2, 3, 1)).astype(jnp.float32)
    xp = jnp.pad(x_nhwc, ((0, 0), (1, 1), (1, 1), (0, 0)))

    # OIHW -> HWIO, taps flattened along the contraction axis (im2col order).
    w_flat = jnp.transpose(w_oihw, (2, 3, 1, 0)).reshape(K * K * Cin, Cout)
    w_flat = w_flat.astype(jnp.float32)
    b2 = bias.reshape(1, Cout).astype(jnp.float32)

    conv_flops = 2 * N * H2 * W2 * K * K * Cin * Cout
    conv_bytes = xp.size * 4 + w_flat.size * 4 + N * H2 * W2 * Cout * 4

    y, stats = pl.pallas_call(
        functools.partial(_upconv_stats_kernel, K=K),
        grid=(N, nrb),
        in_specs=[
            pl.BlockSpec((1, H + 2, W + 2, Cin), lambda i, j: (i, 0, 0, 0)),
            pl.BlockSpec((K * K * Cin, Cout), lambda i, j: (0, 0)),
            pl.BlockSpec((1, Cout), lambda i, j: (0, 0)),
        ],
        out_specs=(
            pl.BlockSpec((1, TR, W2, Cout), lambda i, j: (i, j, 0, 0)),
            pl.BlockSpec((1, 1, 2, Cout), lambda i, j: (i, j, 0, 0)),
        ),
        out_shape=(
            jax.ShapeDtypeStruct((N, H2, W2, Cout), jnp.float32),
            jax.ShapeDtypeStruct((N, nrb, 2, Cout), jnp.float32),
        ),
        compiler_params=pltpu.CompilerParams(
            dimension_semantics=("parallel", "parallel"),
            vmem_limit_bytes=32 * 1024 * 1024),
        cost_estimate=pl.CostEstimate(
            flops=conv_flops, transcendentals=0, bytes_accessed=conv_bytes),
    )(xp, w_flat, b2)

    # Tiny cross-tile reduction + BN fold in plain JAX (a few hundred floats):
    # one-pass variance and gamma/beta folded into per-channel scale/shift.
    tot = jnp.sum(stats, axis=(0, 1))                  # (2, Cout)
    cnt = jnp.float32(N * H2 * W2)
    mean = tot[0] / cnt
    var = tot[1] / cnt - mean * mean                   # biased, matches BN train
    inv = lax.rsqrt(var + EPS)
    scale = gamma.astype(jnp.float32) * inv
    shift = beta.astype(jnp.float32) - mean * scale

    WC = W2 * Cout                                     # lane-dense last dim
    scale_t = jnp.tile(scale, W2).reshape(1, WC)
    shift_t = jnp.tile(shift, W2).reshape(1, WC)
    y2 = y.reshape(N, H2, WC)                          # free trailing-dim merge

    TR2 = next(t for t in (128, 64, 32, 16, 8, 4, 2) if H2 % t == 0)
    out2 = pl.pallas_call(
        _bn_relu_kernel,
        grid=(N, H2 // TR2),
        in_specs=[
            pl.BlockSpec((1, TR2, WC), lambda i, j: (i, j, 0)),
            pl.BlockSpec((1, WC), lambda i, j: (0, 0)),
            pl.BlockSpec((1, WC), lambda i, j: (0, 0)),
        ],
        out_specs=pl.BlockSpec((1, TR2, WC), lambda i, j: (i, j, 0)),
        out_shape=jax.ShapeDtypeStruct((N, H2, WC), jnp.float32),
        compiler_params=pltpu.CompilerParams(
            dimension_semantics=("parallel", "parallel"),
            vmem_limit_bytes=32 * 1024 * 1024),
        cost_estimate=pl.CostEstimate(
            flops=2 * N * H2 * WC, transcendentals=0,
            bytes_accessed=2 * N * H2 * WC * 4),
    )(y2, scale_t, shift_t)

    out_nhwc = out2.reshape(N, H2, W2, Cout)
    return jnp.transpose(out_nhwc, (0, 3, 1, 2))       # NHWC -> NCHW


def ref_forward(x_nchw, w_oihw, bias, gamma, beta, padding=1):
    """Pure-JAX reference matching PyTorch UpBlock2d training-mode forward."""
    up = jnp.repeat(jnp.repeat(x_nchw, 2, axis=2), 2, axis=3)   # nearest 2x
    y = lax.conv_general_dilated(
        up, w_oihw, window_strides=(1, 1),
        padding=[(padding, padding), (padding, padding)],
        dimension_numbers=("NCHW", "OIHW", "NCHW"))
    y = y + bias.reshape(1, -1, 1, 1)
    mean = y.mean(axis=(0, 2, 3), keepdims=True)
    var = ((y - mean) ** 2).mean(axis=(0, 2, 3), keepdims=True)
    yn = (y - mean) / jnp.sqrt(var + EPS) * gamma.reshape(1, -1, 1, 1) \
        + beta.reshape(1, -1, 1, 1)
    return jnp.maximum(yn, 0.0)


if __name__ == "__main__":
    N, Cin, H, W = 2, 4, 16, 16
    Cout, K, P = 8, 3, 1

    key = jax.random.PRNGKey(0)
    kx, kw, kb, kg, kbe = jax.random.split(key, 5)
    x = jax.random.normal(kx, (N, Cin, H, W), jnp.float32)
    w = jax.random.normal(kw, (Cout, Cin, K, K), jnp.float32) / jnp.sqrt(Cin * K * K)
    b = 0.1 * jax.random.normal(kb, (Cout,), jnp.float32)
    gamma = 1.0 + 0.1 * jax.random.normal(kg, (Cout,), jnp.float32)
    beta = 0.1 * jax.random.normal(kbe, (Cout,), jnp.float32)

    fwd = jax.jit(upblock2d_forward, static_argnames=("kernel_size", "padding"))
    out = jax.block_until_ready(fwd(x, w, b, gamma, beta, kernel_size=K, padding=P))
    ref = jax.block_until_ready(ref_forward(x, w, b, gamma, beta, padding=P))

    assert out.shape == (N, Cout, 2 * H, 2 * W)
    assert jnp.allclose(out, ref, atol=1e-3, rtol=1e-3), (
        "Pallas output mismatch vs JAX reference "
        f"(max abs diff {jnp.max(jnp.abs(out - ref))})")
    print("KERNEL_OK")
</pallas_src>

<mosaic_0001>
module attributes {stable_mosaic.version = 11 : i64} {
  func.func @_upconv_stats_kernel(%arg0: i32, %arg1: i32, %arg2: memref<1x18x18x4xf32, #tpu.memory_space<vmem>>, %arg3: memref<36x8xf32, #tpu.memory_space<vmem>>, %arg4: memref<1x8xf32, #tpu.memory_space<vmem>>, %arg5: memref<1x16x32x8xf32, #tpu.memory_space<vmem>>, %arg6: memref<1x1x2x8xf32, #tpu.memory_space<vmem>>) attributes {dimension_semantics = [#tpu.dimension_semantics<parallel>, #tpu.dimension_semantics<parallel>], iteration_bounds = array<i64: 2, 2>, scalar_prefetch = 0 : i64, scratch_operands = 0 : i64, tpu.core_type = #tpu.core_type<tc>, window_params = [{transform_indices = @transform_0, window_bounds = array<i64: 1, 18, 18, 4>}, {pipeline_mode = #tpu.pipeline_mode<synchronous>, transform_indices = @transform_1, window_bounds = array<i64: 36, 8>}, {pipeline_mode = #tpu.pipeline_mode<synchronous>, transform_indices = @transform_2, window_bounds = array<i64: 1, 8>}, {transform_indices = @transform_3, window_bounds = array<i64: 1, 16, 32, 8>}, {transform_indices = @transform_4, window_bounds = array<i64: 1, 1, 2, 8>}]} {
    %c8_i32 = arith.constant 8 : i32
    %0 = arith.muli %arg1, %c8_i32 : i32
    %1 = tpu.assume_multiple %0, 8 : i32
    %c0 = arith.constant 0 : index
    %2 = arith.index_cast %1 : i32 to index
    %c0_0 = arith.constant 0 : index
    %c0_1 = arith.constant 0 : index
    %3 = vector.load %arg2[%c0, %2, %c0_0, %c0_1] : memref<1x18x18x4xf32, #tpu.memory_space<vmem>>, vector<1x10x18x4xf32>
    %4 = vector.shape_cast %3 : vector<1x10x18x4xf32> to vector<10x18x4xf32>
    %5 = vector.shape_cast %4 : vector<10x18x4xf32> to vector<10x1x18x4xf32>
    %6 = vector.broadcast %5 : vector<10x1x18x4xf32> to vector<10x2x18x4xf32>
    %7 = vector.shape_cast %6 : vector<10x2x18x4xf32> to vector<20x18x4xf32>
    %8 = vector.shape_cast %7 : vector<20x18x4xf32> to vector<20x18x1x4xf32>
    %9 = vector.broadcast %8 : vector<20x18x1x4xf32> to vector<20x18x2x4xf32>
    %10 = vector.shape_cast %9 : vector<20x18x2x4xf32> to vector<20x36x4xf32>
    %11 = vector.extract_strided_slice %10 {offsets = [1, 1, 0], sizes = [18, 34, 4], strides = [1, 1, 1]} : vector<20x36x4xf32> to vector<18x34x4xf32>
    %12 = vector.extract_strided_slice %11 {offsets = [0, 0, 0], sizes = [16, 32, 4], strides = [1, 1, 1]} : vector<18x34x4xf32> to vector<16x32x4xf32>
    %13 = vector.extract_strided_slice %11 {offsets = [0, 1, 0], sizes = [16, 32, 4], strides = [1, 1, 1]} : vector<18x34x4xf32> to vector<16x32x4xf32>
    %14 = vector.extract_strided_slice %11 {offsets = [0, 2, 0], sizes = [16, 32, 4], strides = [1, 1, 1]} : vector<18x34x4xf32> to vector<16x32x4xf32>
    %15 = vector.extract_strided_slice %11 {offsets = [1, 0, 0], sizes = [16, 32, 4], strides = [1, 1, 1]} : vector<18x34x4xf32> to vector<16x32x4xf32>
    %16 = vector.extract_strided_slice %11 {offsets = [1, 1, 0], sizes = [16, 32, 4], strides = [1, 1, 1]} : vector<18x34x4xf32> to vector<16x32x4xf32>
    %17 = vector.extract_strided_slice %11 {offsets = [1, 2, 0], sizes = [16, 32, 4], strides = [1, 1, 1]} : vector<18x34x4xf32> to vector<16x32x4xf32>
    %18 = vector.extract_strided_slice %11 {offsets = [2, 0, 0], sizes = [16, 32, 4], strides = [1, 1, 1]} : vector<18x34x4xf32> to vector<16x32x4xf32>
    %19 = vector.extract_strided_slice %11 {offsets = [2, 1, 0], sizes = [16, 32, 4], strides = [1, 1, 1]} : vector<18x34x4xf32> to vector<16x32x4xf32>
    %20 = vector.extract_strided_slice %11 {offsets = [2, 2, 0], sizes = [16, 32, 4], strides = [1, 1, 1]} : vector<18x34x4xf32> to vector<16x32x4xf32>
    %21 = tpu.concatenate %12, %13, %14, %15, %16, %17, %18, %19, %20 in 2 : vector<16x32x4xf32>, vector<16x32x4xf32>, vector<16x32x4xf32>, vector<16x32x4xf32>, vector<16x32x4xf32>, vector<16x32x4xf32>, vector<16x32x4xf32>, vector<16x32x4xf32>, vector<16x32x4xf32> -> vector<16x32x36xf32>
    %22 = vector.shape_cast %21 : vector<16x32x36xf32> to vector<512x36xf32>
    %c0_2 = arith.constant 0 : index
    %c0_3 = arith.constant 0 : index
    %23 = vector.load %arg3[%c0_2, %c0_3] : memref<36x8xf32, #tpu.memory_space<vmem>>, vector<36x8xf32>
    %cst = arith.constant dense<0.000000e+00> : vector<512x8xf32>
    %24 = tpu.matmul %22, %23, %cst {dimension_numbers = #tpu.dot_dimension_numbers<[1], [0], [0], [1], [0, 0, 1, 1], [], []>} : vector<512x36xf32>, vector<36x8xf32>, vector<512x8xf32> -> vector<512x8xf32>
    %c0_4 = arith.constant 0 : index
    %c0_5 = arith.constant 0 : index
    %25 = vector.load %arg4[%c0_4, %c0_5] : memref<1x8xf32, #tpu.memory_space<vmem>>, vector<1x8xf32>
    %26 = vector.broadcast %25 : vector<1x8xf32> to vector<512x8xf32>
    %27 = arith.addf %24, %26 : vector<512x8xf32>
    %28 = vector.shape_cast %27 : vector<512x8xf32> to vector<1x16x32x8xf32>
    %c0_6 = arith.constant 0 : index
    %c0_7 = arith.constant 0 : index
    %c0_8 = arith.constant 0 : index
    %c0_9 = arith.constant 0 : index
    %29 = vector.load %arg5[%c0_6, %c0_7, %c0_8, %c0_9] : memref<1x16x32x8xf32, #tpu.memory_space<vmem>>, vector<1x16x32x8xf32>
    tpu.vector_store %arg5[%c0_6, %c0_7, %c0_8, %c0_9], %28 {strides = array<i32>} : memref<1x16x32x8xf32, #tpu.memory_space<vmem>>, vector<1x16x32x8xf32>,
    %cst_10 = arith.constant dense<0.000000e+00> : vector<8xf32>
    %30 = vector.multi_reduction <add>, %27, %cst_10 [0] : vector<512x8xf32> to vector<8xf32>
    %31 = vector.shape_cast %30 : vector<8xf32> to vector<1x8xf32>
    %32 = arith.mulf %27, %27 : vector<512x8xf32>
    %cst_11 = arith.constant dense<0.000000e+00> : vector<8xf32>
    %33 = vector.multi_reduction <add>, %32, %cst_11 [0] : vector<512x8xf32> to vector<8xf32>
    %34 = vector.shape_cast %33 : vector<8xf32> to vector<1x8xf32>
    %35 = tpu.concatenate %31, %34 in 0 : vector<1x8xf32>, vector<1x8xf32> -> vector<2x8xf32>
    %36 = vector.shape_cast %35 : vector<2x8xf32> to vector<1x1x2x8xf32>
    %c0_12 = arith.constant 0 : index
    %c0_13 = arith.constant 0 : index
    %c0_14 = arith.constant 0 : index
    %c0_15 = arith.constant 0 : index
    %37 = vector.load %arg6[%c0_12, %c0_13, %c0_14, %c0_15] : memref<1x1x2x8xf32, #tpu.memory_space<vmem>>, vector<1x1x2x8xf32>
    tpu.vector_store %arg6[%c0_12, %c0_13, %c0_14, %c0_15], %36 {strides = array<i32>} : memref<1x1x2x8xf32, #tpu.memory_space<vmem>>, vector<1x1x2x8xf32>,
    return
  }
  func.func @transform_0(%arg0: i32, %arg1: i32) -> (i32, i32, i32, i32) {
    %c0_i32 = arith.constant 0 : i32
    %c0_i32_0 = arith.constant 0 : i32
    %c0_i32_1 = arith.constant 0 : i32
    %c0_i32_2 = arith.constant 0 : i32
    return %arg0, %c0_i32, %c0_i32_0, %c0_i32_1 : i32, i32, i32, i32
  }
  func.func @transform_1(%arg0: i32, %arg1: i32) -> (i32, i32) {
    %c0_i32 = arith.constant 0 : i32
    %c0_i32_0 = arith.constant 0 : i32
    %c0_i32_1 = arith.constant 0 : i32
    return %c0_i32, %c0_i32_0 : i32, i32
  }
  func.func @transform_2(%arg0: i32, %arg1: i32) -> (i32, i32) {
    %c0_i32 = arith.constant 0 : i32
    %c0_i32_0 = arith.constant 0 : i32
    %c0_i32_1 = arith.constant 0 : i32
    return %c0_i32, %c0_i32_0 : i32, i32
  }
  func.func @transform_3(%arg0: i32, %arg1: i32) -> (i32, i32, i32, i32) {
    %c0_i32 = arith.constant 0 : i32
    %c0_i32_0 = arith.constant 0 : i32
    %c0_i32_1 = arith.constant 0 : i32
    return %arg0, %arg1, %c0_i32, %c0_i32_0 : i32, i32, i32, i32
  }
  func.func @transform_4(%arg0: i32, %arg1: i32) -> (i32, i32, i32, i32) {
    %c0_i32 = arith.constant 0 : i32
    %c0_i32_0 = arith.constant 0 : i32
    %c0_i32_1 = arith.constant 0 : i32
    return %arg0, %arg1, %c0_i32, %c0_i32_0 : i32, i32, i32, i32
  }
}

module attributes {stable_mosaic.version = 11 : i64} {
  func.func @_bn_relu_kernel(%arg0: i32, %arg1: i32, %arg2: memref<1x32x256xf32, #tpu.memory_space<vmem>>, %arg3: memref<1x256xf32, #tpu.memory_space<vmem>>, %arg4: memref<1x256xf32, #tpu.memory_space<vmem>>, %arg5: memref<1x32x256xf32, #tpu.memory_space<vmem>>) attributes {dimension_semantics = [#tpu.dimension_semantics<parallel>, #tpu.dimension_semantics<parallel>], iteration_bounds = array<i64: 2, 1>, scalar_prefetch = 0 : i64, scratch_operands = 0 : i64, tpu.core_type = #tpu.core_type<tc>, window_params = [{transform_indices = @transform_0, window_bounds = array<i64: 1, 32, 256>}, {pipeline_mode = #tpu.pipeline_mode<synchronous>, transform_indices = @transform_1, window_bounds = array<i64: 1, 256>}, {pipeline_mode = #tpu.pipeline_mode<synchronous>, transform_indices = @transform_2, window_bounds = array<i64: 1, 256>}, {transform_indices = @transform_3, window_bounds = array<i64: 1, 32, 256>}]} {
    %c0 = arith.constant 0 : index
    %c0_0 = arith.constant 0 : index
    %c0_1 = arith.constant 0 : index
    %0 = vector.load %arg2[%c0, %c0_0, %c0_1] : memref<1x32x256xf32, #tpu.memory_space<vmem>>, vector<1x32x256xf32>
    %c0_2 = arith.constant 0 : index
    %c0_3 = arith.constant 0 : index
    %1 = vector.load %arg3[%c0_2, %c0_3] : memref<1x256xf32, #tpu.memory_space<vmem>>, vector<1x256xf32>
    %2 = vector.shape_cast %1 : vector<1x256xf32> to vector<1x1x256xf32>
    %3 = vector.broadcast %2 : vector<1x1x256xf32> to vector<1x32x256xf32>
    %4 = arith.mulf %0, %3 : vector<1x32x256xf32>
    %c0_4 = arith.constant 0 : index
    %c0_5 = arith.constant 0 : index
    %5 = vector.load %arg4[%c0_4, %c0_5] : memref<1x256xf32, #tpu.memory_space<vmem>>, vector<1x256xf32>
    %6 = vector.shape_cast %5 : vector<1x256xf32> to vector<1x1x256xf32>
    %7 = vector.broadcast %6 : vector<1x1x256xf32> to vector<1x32x256xf32>
    %8 = arith.addf %4, %7 : vector<1x32x256xf32>
    %cst = arith.constant 0.000000e+00 : f32
    %9 = vector.broadcast %cst : f32 to vector<1x32x256xf32>
    %10 = arith.maximumf %8, %9 : vector<1x32x256xf32>
    %c0_6 = arith.constant 0 : index
    %c0_7 = arith.constant 0 : index
    %c0_8 = arith.constant 0 : index
    %11 = vector.load %arg5[%c0_6, %c0_7, %c0_8] : memref<1x32x256xf32, #tpu.memory_space<vmem>>, vector<1x32x256xf32>
    tpu.vector_store %arg5[%c0_6, %c0_7, %c0_8], %10 {strides = array<i32>} : memref<1x32x256xf32, #tpu.memory_space<vmem>>, vector<1x32x256xf32>,
    return
  }
  func.func @transform_0(%arg0: i32, %arg1: i32) -> (i32, i32, i32) {
    %c0_i32 = arith.constant 0 : i32
    %c0_i32_0 = arith.constant 0 : i32
    return %arg0, %arg1, %c0_i32 : i32, i32, i32
  }
  func.func @transform_1(%arg0: i32, %arg1: i32) -> (i32, i32) {
    %c0_i32 = arith.constant 0 : i32
    %c0_i32_0 = arith.constant 0 : i32
    %c0_i32_1 = arith.constant 0 : i32
    return %c0_i32, %c0_i32_0 : i32, i32
  }
  func.func @transform_2(%arg0: i32, %arg1: i32) -> (i32, i32) {
    %c0_i32 = arith.constant 0 : i32
    %c0_i32_0 = arith.constant 0 : i32
    %c0_i32_1 = arith.constant 0 : i32
    return %c0_i32, %c0_i32_0 : i32, i32
  }
  func.func @transform_3(%arg0: i32, %arg1: i32) -> (i32, i32, i32) {
    %c0_i32 = arith.constant 0 : i32
    %c0_i32_0 = arith.constant 0 : i32
    return %arg0, %arg1, %c0_i32 : i32, i32, i32
  }
}

</mosaic_0001>

<llo_original>
// kernel: tile.18
$region0: #{tile.18}
  #allocation0 [shape = 's32[1]{0}', space=sflag, size = 0x4, scoped, tag = 'scoped memory for tile.18']
  %s0 = inlined_call_operand.vmem [shape: f32[8], index: 0, kind: input, shape index: {}]
  %s1 = inlined_call_operand.vmem [shape: f32[32,8], index: 1, kind: output, shape index: {}]
  // Predicated region
  $region2: #{tile.18} parent=0 // pred_check
    _
  $region3: #{tile.18} parent=0 // pred_check_branch
    %3 = sbr.rel (0) target = $region5
  $region4: #{tile.18} parent=0 // pred_region
    _
  $region5: #{tile.18} parent=0 // pred_fallthru
    _
  %v4 = vld [vmem:[%s0] ss:$0 sm:$0xff]
  %5 = vst [vmem:[%s1] sm:$0xff] %v4
  %s6 = scalar_lea.vmem %s1, 8
  %7 = vst [vmem:[%s6] sm:$0xff] %v4
  %s8 = scalar_lea.vmem %s1, 16
  %9 = vst [vmem:[%s8] sm:$0xff] %v4
  %s10 = scalar_lea.vmem %s1, 24
  %11 = vst [vmem:[%s10] sm:$0xff] %v4

// kernel: tile.19
$region0: #{tile.19}
  %s0 = inlined_call_operand.vmem [shape: f32[32,8], index: 0, kind: input, shape index: {}]
  %s1 = inlined_call_operand.vmem [shape: f32[1,256], index: 1, kind: output, shape index: {}]
  $region1: #{tile.19} parent=0
    #allocation0 [shape = 'u8[8192]{0}', space=vmem, size = 0x2000, scoped, tag = 'scoped mem for output reshape']
    %s2 = smov 3
    %v3 = vld [vmem:[%s0] ss:$16 sm:%s2]
    %vm4 = vcmask 64512
    %5 = vst.msk [vmem:[#allocation0] ss:$8 sm:$0x3] %vm4, %v3
    %s6 = scalar_lea.vmem %s0, 15
    %s7 = smov 3
    %v8 = vld [vmem:[%s6] ss:$16 sm:%s7]
    %9 = vrot.lane.b32.xlu0 %v8, 120
    %v10 = vpop.permute.xlu0 %9
    %vm11 = vcmask 1048512
    %12 = vst.msk [vmem:[#allocation0] ss:$8 sm:$0x3] %vm11, %v10
    %s13 = scalar_lea.vmem %s0, 14
    %s14 = smov 3
    %v15 = vld [vmem:[%s13] ss:$16 sm:%s14]
    %16 = vrot.lane.b32.xlu0 %v15, 112
    %v17 = vpop.permute.xlu0 %16
    %vm18 = vcmask 982912
    %19 = vst.msk [vmem:[#allocation0] ss:$8 sm:$0x3] %vm18, %v17
    %s20 = scalar_lea.vmem %s0, 13
    %s21 = smov 3
    %v22 = vld [vmem:[%s20] ss:$16 sm:%s21]
    %23 = vrot.lane.b32.xlu0 %v22, 104
    %v24 = vpop.permute.xlu0 %23
    %vm25 = vcmask 917312
    %26 = vst.msk [vmem:[#allocation0] ss:$8 sm:$0x3] %vm25, %v24
    %s27 = scalar_lea.vmem %s0, 12
    %s28 = smov 3
    %v29 = vld [vmem:[%s27] ss:$16 sm:%s28]
    %30 = vrot.lane.b32.xlu0 %v29, 96
    %v31 = vpop.permute.xlu0 %30
    %vm32 = vcmask 851712
    %33 = vst.msk [vmem:[#allocation0] ss:$8 sm:$0x3] %vm32, %v31
    %s34 = scalar_lea.vmem %s0, 11
    %s35 = smov 3
    %v36 = vld [vmem:[%s34] ss:$16 sm:%s35]
    %37 = vrot.lane.b32.xlu0 %v36, 88
    %v38 = vpop.permute.xlu0 %37
    %vm39 = vcmask 786112
    %40 = vst.msk [vmem:[#allocation0] ss:$8 sm:$0x3] %vm39, %v38
    %s41 = scalar_lea.vmem %s0, 10
    %s42 = smov 3
    %v43 = vld [vmem:[%s41] ss:$16 sm:%s42]
    %44 = vrot.lane.b32.xlu0 %v43, 80
    %v45 = vpop.permute.xlu0 %44
    %vm46 = vcmask 720512
    %47 = vst.msk [vmem:[#allocation0] ss:$8 sm:$0x3] %vm46, %v45
    %s48 = scalar_lea.vmem %s0, 9
    %s49 = smov 3
    %v50 = vld [vmem:[%s48] ss:$16 sm:%s49]
    %51 = vrot.lane.b32.xlu0 %v50, 72
    %v52 = vpop.permute.xlu0 %51
    %vm53 = vcmask 654912
    %54 = vst.msk [vmem:[#allocation0] ss:$8 sm:$0x3] %vm53, %v52
    %s55 = scalar_lea.vmem %s0, 8
    %s56 = smov 3
    %v57 = vld [vmem:[%s55] ss:$16 sm:%s56]
    %58 = vrot.lane.b32.xlu0 %v57, 64
    %v59 = vpop.permute.xlu0 %58
    %vm60 = vcmask 589312
    %61 = vst.msk [vmem:[#allocation0] ss:$8 sm:$0x3] %vm60, %v59
    %s62 = scalar_lea.vmem %s0, 7
    %s63 = smov 3
    %v64 = vld [vmem:[%s62] ss:$16 sm:%s63]
    %65 = vrot.lane.b32.xlu0 %v64, 56
    %v66 = vpop.permute.xlu0 %65
    %vm67 = vcmask 523712
    %68 = vst.msk [vmem:[#allocation0] ss:$8 sm:$0x3] %vm67, %v66
    %s69 = scalar_lea.vmem %s0, 6
    %s70 = smov 3
    %v71 = vld [vmem:[%s69] ss:$16 sm:%s70]
    %72 = vrot.lane.b32.xlu0 %v71, 48
    %v73 = vpop.permute.xlu0 %72
    %vm74 = vcmask 458112
    %75 = vst.msk [vmem:[#allocation0] ss:$8 sm:$0x3] %vm74, %v73
    %s76 = scalar_lea.vmem %s0, 5
    %s77 = smov 3
    %v78 = vld [vmem:[%s76] ss:$16 sm:%s77]
    %79 = vrot.lane.b32.xlu0 %v78, 40
    %v80 = vpop.permute.xlu0 %79
    %vm81 = vcmask 392512
    %82 = vst.msk [vmem:[#allocation0] ss:$8 sm:$0x3] %vm81, %v80
    %s83 = scalar_lea.vmem %s0, 4
    %s84 = smov 3
    %v85 = vld [vmem:[%s83] ss:$16 sm:%s84]
    %86 = vrot.lane.b32.xlu0 %v85, 32
    %v87 = vpop.permute.xlu0 %86
    %vm88 = vcmask 326912
    %89 = vst.msk [vmem:[#allocation0] ss:$8 sm:$0x3] %vm88, %v87
    %s90 = scalar_lea.vmem %s0, 3
    %s91 = smov 3
    %v92 = vld [vmem:[%s90] ss:$16 sm:%s91]
    %93 = vrot.lane.b32.xlu0 %v92, 24
    %v94 = vpop.permute.xlu0 %93
    %vm95 = vcmask 261312
    %96 = vst.msk [vmem:[#allocation0] ss:$8 sm:$0x3] %vm95, %v94
    %s97 = scalar_lea.vmem %s0, 2
    %s98 = smov 3
    %v99 = vld [vmem:[%s97] ss:$16 sm:%s98]
    %100 = vrot.lane.b32.xlu0 %v99, 16
    %v101 = vpop.permute.xlu0 %100
    %vm102 = vcmask 195712
    %103 = vst.msk [vmem:[#allocation0] ss:$8 sm:$0x3] %vm102, %v101
    %s104 = scalar_lea.vmem %s0, 1
    %s105 = smov 3
    %v106 = vld [vmem:[%s104] ss:$16 sm:%s105]
    %107 = vrot.lane.b32.xlu0 %v106, 8
    %v108 = vpop.permute.xlu0 %107
    %vm109 = vcmask 130112
    %110 = vst.msk [vmem:[#allocation0] ss:$8 sm:$0x3] %vm109, %v108
    %s112 = sshllo.u32 0, 1
    %v114 = vld [vmem:[#allocation0] sm:%s112]
    %s115 = sshllo.u32 0, 1
    %116 = vst [vmem:[%s1] sm:%s115] %v114
    %s117 = scalar_lea.vmem [#allocation0], 8
    %v118 = vld [vmem:[%s117] sm:%s112]
    %s119 = sshllo.u32 0, 1
    %s120 = scalar_lea.vmem %s1, 1
    %121 = vst [vmem:[%s120] sm:%s119] %v118

// kernel: upblock2d_forward.3
$region0: #{upblock2d_forward.3}
  #allocation0 [shape = 'u32[]', space=smem, size = 0x4, offset = 0x4, fixed_abs, tag = 'smem constant byte address 0x4 - core index']
  #allocation1 [shape = 'u32[144,128]{1,0:T(1,128)}', space=vmem, size = 0x12000, scoped, tag = 'internal scratch']
  %s0 = inlined_call_operand.vmem [shape: f32[2,32,256], index: 0, kind: input, shape index: {}]
  %s1 = inlined_call_operand.vmem [shape: f32[1,256], index: 1, kind: input, shape index: {}]
  %s2 = inlined_call_operand.vmem [shape: f32[1,256], index: 2, kind: input, shape index: {}]
  %s3 = inlined_call_operand.vmem [shape: f32[2,32,256], index: 3, kind: output, shape index: {}]
  %s4 = sld [smem:[#allocation0]]
  $region45: #{upblock2d_forward.3} parent=0
    _
  %s6 = ssub.s32 1, %s4
  %s7 = scalar_select 0, %s6, %s4
  loop: start=0, step=1, limit=4
  $region2: #{upblock2d_forward.3} parent=0 // loop_pre_header
    _
  $region3: #{upblock2d_forward.3} parent=0 // loop_header
    %s9 = sphi 0, %s13
    %p10 = scmp.ge.s32.totalorder %s9, 4
    %s16 = sphi 0, %s28
    %s17 = sphi 0, %s24
    %s18 = sphi 0, %s16
    %s19 = sphi 0, %s17
    %s20 = sphi 0, %s18
    %s21 = sphi 0, %s19
    %s33 = sphi 0, %s35
    %s36 = sphi 0, %s33
    %s37 = sphi 0, %s36
    %s53 = sphi 0, %s37
    %s57 = sphi 0, %s57
    %s59 = sphi 0, %s57
    %s60 = sphi 0, %s59
    %s74 = sphi 0, %s60
    %s78 = sphi 0, %s78
    %s80 = sphi 0, %s78
    %s81 = sphi 0, %s80
    %s95 = sphi 0, %s81
    %s103 = sphi 0, %s105
    %s106 = sphi 0, %s103
    %s107 = sphi 0, %s106
    %s123 = sphi 0, %s107
  $region4: #{upblock2d_forward.3} parent=0 // loop_header_branch
    %12 = sbr.rel (%p10) target = $region8
  $region5: #{upblock2d_forward.3} parent=0 // loop_body
    %s14 = ssub.s32 %s9, 1
    %s15 = ssub.s32 %s9, 2
    %s22 = sadd.s32 1, %s17
    %p23 = scmp.ge.s32.totalorder %s22, 1
    %s24 = scalar_select %p23, 0, %s22
    %s25 = sadd.s32 1, %s16
    %s26 = scalar_select %p23, %s25, %s16
    %p27 = scmp.ge.s32.totalorder %s26, 2
    %s28 = scalar_select %p27, 0, %s26
    %s29 = ssub.s32 %s16, %s28
    %s30 = ssub.s32 %s17, %s24
    %s31 = sor.u32 %s29, %s30
    %p32 = scmp.eq.s32.totalorder %s31, 0
    %s34 = sadd.s32 %s33, 1
    %s35 = scalar_select %p32, %s33, %s34
    %p38 = pneg %p32
    %p39 = scmp.eq.s32.totalorder %s9, 1
    %p40 = por %p38, %p39
    %p41 = scmp.ne.s32.totalorder %s33, %s36
    %p42 = scmp.eq.s32.totalorder %s9, 0
    %p43 = por %p41, %p42
    %p44 = scmp.ne.s32.totalorder %s33, %s36
    %p45 = scmp.eq.s32.totalorder %s14, 1
    %p46 = por %p44, %p45
    %p47 = scmp.ne.s32.totalorder %s36, %s37
    %p48 = scmp.eq.s32.totalorder %s14, 0
    %p49 = por %p47, %p48
    %p50 = scmp.ne.s32.totalorder %s36, %s37
    %p51 = scmp.eq.s32.totalorder %s15, 1
    %p52 = por %p50, %p51
    %p54 = scmp.ne.s32.totalorder %s37, %s53
    %p55 = scmp.eq.s32.totalorder %s15, 0
    %p56 = por %p54, %p55
    %s58 = sadd.s32 %s57, 1
    %p61 = scmp.eq.s32.totalorder %s9, 1
    %p62 = scmp.ne.s32.totalorder %s57, %s59
    %p63 = scmp.eq.s32.totalorder %s9, 0
    %p64 = por %p62, %p63
    %p65 = scmp.ne.s32.totalorder %s57, %s59
    %p66 = scmp.eq.s32.totalorder %s14, 1
    %p67 = por %p65, %p66
    %p68 = scmp.ne.s32.totalorder %s59, %s60
    %p69 = scmp.eq.s32.totalorder %s14, 0
    %p70 = por %p68, %p69
    %p71 = scmp.ne.s32.totalorder %s59, %s60
    %p72 = scmp.eq.s32.totalorder %s15, 1
    %p73 = por %p71, %p72
    %p75 = scmp.ne.s32.totalorder %s60, %s74
    %p76 = scmp.eq.s32.totalorder %s15, 0
    %p77 = por %p75, %p76
    %s79 = sadd.s32 %s78, 1
    %p82 = scmp.eq.s32.totalorder %s9, 1
    %p83 = scmp.ne.s32.totalorder %s78, %s80
    %p84 = scmp.eq.s32.totalorder %s9, 0
    %p85 = por %p83, %p84
    %p86 = scmp.ne.s32.totalorder %s78, %s80
    %p87 = scmp.eq.s32.totalorder %s14, 1
    %p88 = por %p86, %p87
    %p89 = scmp.ne.s32.totalorder %s80, %s81
    %p90 = scmp.eq.s32.totalorder %s14, 0
    %p91 = por %p89, %p90
    %p92 = scmp.ne.s32.totalorder %s80, %s81
    %p93 = scmp.eq.s32.totalorder %s15, 1
    %p94 = por %p92, %p93
    %p96 = scmp.ne.s32.totalorder %s81, %s95
    %p97 = scmp.eq.s32.totalorder %s15, 0
    %p98 = por %p96, %p97
    %s99 = ssub.s32 %s16, %s28
    %s100 = ssub.s32 %s17, %s24
    %s101 = sor.u32 %s99, %s100
    %p102 = scmp.eq.s32.totalorder %s101, 0
    %s104 = sadd.s32 %s103, 1
    %s105 = scalar_select %p102, %s103, %s104
    %p108 = pneg %p102
    %p109 = scmp.eq.s32.totalorder %s9, 1
    %p110 = por %p108, %p109
    %p111 = scmp.ne.s32.totalorder %s103, %s106
    %p112 = scmp.eq.s32.totalorder %s9, 0
    %p113 = por %p111, %p112
    %p114 = scmp.ne.s32.totalorder %s103, %s106
    %p115 = scmp.eq.s32.totalorder %s14, 1
    %p116 = por %p114, %p115
    %p117 = scmp.ne.s32.totalorder %s106, %s107
    %p118 = scmp.eq.s32.totalorder %s14, 0
    %p119 = por %p117, %p118
    %p120 = scmp.ne.s32.totalorder %s106, %s107
    %p121 = scmp.eq.s32.totalorder %s15, 1
    %p122 = por %p120, %p121
    %p124 = scmp.ne.s32.totalorder %s107, %s123
    %p125 = scmp.eq.s32.totalorder %s15, 0
    %p126 = por %p124, %p125
    %p127 = scmp.le.s32.totalorder 1, %s9
    %p128 = scmp.lt.s32.totalorder %s9, 3
    %p129 = pnand %p127, %p128
    %p130 = pneg %p129
    // Predicated region
    $region9: #{upblock2d_forward.3} parent=5 // pred_check
      _
    $region10: #{upblock2d_forward.3} parent=5 // pred_check_branch
      %132 = sbr.rel (%p129) target = $region12
    $region11: #{upblock2d_forward.3} parent=5 // pred_region
      %s133 = ssub.s32 %s9, 1
      // Predicated region
      $region13: #{upblock2d_forward.3} parent=11 // pred_check
        %p134 = pneg %p70
      $region14: #{upblock2d_forward.3} parent=11 // pred_check_branch
        %136 = sbr.rel (%p134) target = $region16
      $region15: #{upblock2d_forward.3} parent=11 // pred_region
        _
      $region16: #{upblock2d_forward.3} parent=11 // pred_fallthru
        _
      // Predicated region
      $region17: #{upblock2d_forward.3} parent=11 // pred_check
        %p137 = pneg %p91
      $region18: #{upblock2d_forward.3} parent=11 // pred_check_branch
        %139 = sbr.rel (%p137) target = $region20
      $region19: #{upblock2d_forward.3} parent=11 // pred_region
        _
      $region20: #{upblock2d_forward.3} parent=11 // pred_fallthru
        _
    $region12: #{upblock2d_forward.3} parent=5 // pred_fallthru
      _
    %p140 = scmp.lt.s32.totalorder %s9, 2
    // Predicated region
    $region21: #{upblock2d_forward.3} parent=5 // pred_check
      %p141 = pneg %p140
    $region22: #{upblock2d_forward.3} parent=5 // pred_check_branch
      %143 = sbr.rel (%p141) target = $region24
    $region23: #{upblock2d_forward.3} parent=5 // pred_region
      // Predicated region
      $region25: #{upblock2d_forward.3} parent=23 // pred_check
        %p144 = pneg %p43
      $region26: #{upblock2d_forward.3} parent=23 // pred_check_branch
        %146 = sbr.rel (%p144) target = $region28
      $region27: #{upblock2d_forward.3} parent=23 // pred_region
        %s147 = smul.u32 4, %s17
        %p148 = scmp.lt.s32.totalorder %s16, 1
        %s149 = scalar_select %p148, %s16, 1
        %p150 = scmp.lt.s32.totalorder %s147, 3
        %s151 = scalar_select %p150, %s147, 3
        %s152 = smul.addr %s151, 2
        %s153 = smul.addr %s149, 8
        %s154 = sadd.s32 %s152, %s153
        %s155 = smul.addr %s154, 8
        %s156 = scalar_lea.vmem %s0, %s155
        %s157 = smul.u32 4, %s17
      $region28: #{upblock2d_forward.3} parent=23 // pred_fallthru
        _
    $region24: #{upblock2d_forward.3} parent=5 // pred_fallthru
      _
    %p158 = scmp.le.s32.totalorder 1, %s9
    %p159 = scmp.lt.s32.totalorder %s9, 3
    %p160 = pnand %p158, %p159
    %p161 = pneg %p160
    // Predicated region
    $region29: #{upblock2d_forward.3} parent=5 // pred_check
      _
    $region30: #{upblock2d_forward.3} parent=5 // pred_check_branch
      %163 = sbr.rel (%p160) target = $region32
    $region31: #{upblock2d_forward.3} parent=5 // pred_region
      %s164 = ssub.s32 %s9, 1
      %s165 = smul.u32 4, %s19
      %p166 = scmp.lt.s32.totalorder %s18, 1
      %s167 = scalar_select %p166, %s18, 1
      %p168 = scmp.lt.s32.totalorder %s165, 3
      %s169 = scalar_select %p168, %s165, 3
      %s170 = smul.addr %s169, 2
      %s171 = smul.addr %s167, 8
      %s172 = sadd.s32 %s170, %s171
      %s173 = smul.addr %s172, 8
      %s174 = scalar_lea.vmem %s0, %s173
      %p175 = pneg %p49
      %p176 = pneg %p46
      %p177 = pneg %p70
      %p178 = pneg %p67
      %p179 = pneg %p91
      %p180 = pneg %p88
      %p181 = pneg %p119
      %p182 = pneg %p116
      %s183 = smul.u32 4, %s19
      %p184 = scmp.lt.s32.totalorder %s18, 1
      %s185 = scalar_select %p184, %s18, 1
      %p186 = scmp.lt.s32.totalorder %s183, 3
      %s187 = scalar_select %p186, %s183, 3
      %s188 = smul.addr %s187, 2
      %s189 = smul.addr %s185, 8
      %s190 = sadd.s32 %s188, %s189
      %s191 = smul.addr %s190, 8
      %s192 = scalar_lea.vmem %s3, %s191
      %s193 = smul.u32 4, %s19
      %p194 = scmp.lt.s32.totalorder %s18, 1
      %s195 = scalar_select %p194, %s18, 1
      %p196 = scmp.lt.s32.totalorder %s193, 3
      %s197 = scalar_select %p196, %s193, 3
      %s198 = smul.addr %s197, 2
      %s199 = smul.addr %s195, 8
      %s200 = sadd.s32 %s198, %s199
      %s201 = smul.addr %s200, 8
      %s202 = scalar_lea.vmem %s0, %s201
      %s203 = smul.u32 4, %s19
      %s204 = smul.u32 4, %s19
      %p205 = scmp.lt.s32.totalorder %s18, 1
      %s206 = scalar_select %p205, %s18, 1
      %p207 = scmp.lt.s32.totalorder %s204, 3
      %s208 = scalar_select %p207, %s204, 3
      %s209 = smul.addr %s208, 2
      %s210 = smul.addr %s206, 8
      %s211 = sadd.s32 %s209, %s210
      %s212 = smul.addr %s211, 8
      %s213 = scalar_lea.vmem %s3, %s212
      %s214 = smul.u32 4, %s19
      %v215 = vld [vmem:[%s202] sm:$0xff]
      %v216 = vld [vmem:[%s202 + $0x8] sm:$0xff]
      %v217 = vld [vmem:[%s202 + $0x10] sm:$0xff]
      %v218 = vld [vmem:[%s202 + $0x18] sm:$0xff]
      %v219 = vld [vmem:[%s202 + $0x20] sm:$0xff]
      %v220 = vld [vmem:[%s202 + $0x28] sm:$0xff]
      %v221 = vld [vmem:[%s202 + $0x30] sm:$0xff]
      %v222 = vld [vmem:[%s202 + $0x38] sm:$0xff]
      %v223 = vld [vmem:[%s1] sm:$0x3]
      %v225 = vlaneseq
      %v226 = vshrl.u32 %v225, 7
      %v227 = vsub.s32 0, %v226
      %v228 = vrot.slane %v223, %v227
      %v229 = vlaneseq
      %v230 = vshrl.u32 %v229, 7
      %v231 = vsub.s32 1, %v230
      %v232 = vrot.slane %v223, %v231
      %v235 = vmul.f32 %v215, %v228
      %v236 = vmul.f32 %v216, %v232
      %v237 = vmul.f32 %v217, %v228
      %v238 = vmul.f32 %v218, %v232
      %v239 = vmul.f32 %v219, %v228
      %v240 = vmul.f32 %v220, %v232
      %v241 = vmul.f32 %v221, %v228
      %v242 = vmul.f32 %v222, %v232
      %v243 = vld [vmem:[%s2] sm:$0x3]
      %v245 = vlaneseq
      %v246 = vshrl.u32 %v245, 7
      %v247 = vsub.s32 0, %v246
      %v248 = vrot.slane %v243, %v247
      %v249 = vlaneseq
      %v250 = vshrl.u32 %v249, 7
      %v251 = vsub.s32 1, %v250
      %v252 = vrot.slane %v243, %v251
      %v255 = vadd.f32 %v235, %v248
      %v256 = vadd.f32 %v236, %v252
      %v257 = vadd.f32 %v237, %v248
      %v258 = vadd.f32 %v238, %v252
      %v259 = vadd.f32 %v239, %v248
      %v260 = vadd.f32 %v240, %v252
      %v261 = vadd.f32 %v241, %v248
      %v262 = vadd.f32 %v242, %v252
      %v263 = vmax.f32 %v255, 0.0
      %v264 = vmax.f32 %v256, 0.0
      %v265 = vmax.f32 %v257, 0.0
      %v266 = vmax.f32 %v258, 0.0
      %v267 = vmax.f32 %v259, 0.0
      %v268 = vmax.f32 %v260, 0.0
      %v269 = vmax.f32 %v261, 0.0
      %v270 = vmax.f32 %v262, 0.0
      %271 = vst [vmem:[%s213] sm:$0xff] %v263
      %272 = vst [vmem:[%s213 + $0x8] sm:$0xff] %v264
      %273 = vst [vmem:[%s213 + $0x10] sm:$0xff] %v265
      %274 = vst [vmem:[%s213 + $0x18] sm:$0xff] %v266
      %275 = vst [vmem:[%s213 + $0x20] sm:$0xff] %v267
      %276 = vst [vmem:[%s213 + $0x28] sm:$0xff] %v268
      %277 = vst [vmem:[%s213 + $0x30] sm:$0xff] %v269
      %278 = vst [vmem:[%s213 + $0x38] sm:$0xff] %v270
      %s279 = smul.u32 4, %s19
      %p280 = scmp.lt.s32.totalorder %s18, 1
      %s281 = scalar_select %p280, %s18, 1
      %p282 = scmp.lt.s32.totalorder %s279, 3
      %s283 = scalar_select %p282, %s279, 3
      %s284 = smul.addr %s283, 2
      %s285 = smul.addr %s281, 8
      %s286 = sadd.s32 %s284, %s285
      %s287 = smul.addr %s286, 8
      %s288 = scalar_lea.vmem %s3, %s287
      // Predicated region
      $region33: #{upblock2d_forward.3} parent=31 // pred_check
        %p289 = pneg %p116
      $region34: #{upblock2d_forward.3} parent=31 // pred_check_branch
        %291 = sbr.rel (%p289) target = $region36
      $region35: #{upblock2d_forward.3} parent=31 // pred_region
        %s292 = smul.u32 4, %s19
      $region36: #{upblock2d_forward.3} parent=31 // pred_fallthru
        _
    $region32: #{upblock2d_forward.3} parent=5 // pred_fallthru
      _
    %p293 = scmp.le.s32.totalorder 2, %s9
    // Predicated region
    $region37: #{upblock2d_forward.3} parent=5 // pred_check
      %p294 = pneg %p293
    $region38: #{upblock2d_forward.3} parent=5 // pred_check_branch
      %296 = sbr.rel (%p294) target = $region40
    $region39: #{upblock2d_forward.3} parent=5 // pred_region
      %s297 = ssub.s32 %s9, 2
      // Predicated region
      $region41: #{upblock2d_forward.3} parent=39 // pred_check
        %p298 = pneg %p122
      $region42: #{upblock2d_forward.3} parent=39 // pred_check_branch
        %300 = sbr.rel (%p298) target = $region44
      $region43: #{upblock2d_forward.3} parent=39 // pred_region
        %s301 = smul.u32 4, %s21
        %p302 = scmp.lt.s32.totalorder %s20, 1
        %s303 = scalar_select %p302, %s20, 1
        %p304 = scmp.lt.s32.totalorder %s301, 3
        %s305 = scalar_select %p304, %s301, 3
        %s306 = smul.addr %s305, 2
        %s307 = smul.addr %s303, 8
        %s308 = sadd.s32 %s306, %s307
        %s309 = smul.addr %s308, 8
        %s310 = scalar_lea.vmem %s3, %s309
      $region44: #{upblock2d_forward.3} parent=39 // pred_fallthru
        _
    $region40: #{upblock2d_forward.3} parent=5 // pred_fallthru
      _
  $region6: #{upblock2d_forward.3} parent=0 // loop_footer
    %s13 = sadd.s32 1, %s9
  $region7: #{upblock2d_forward.3} parent=0 // loop_footer_branch
    %8 = sbr.rel target = $region3
  $region8: #{upblock2d_forward.3} parent=0 // loop_exit
    _

// kernel: upblock2d_forward.2
$region0: #{upblock2d_forward.2}
  #allocation0 [shape = 'u32[]', space=smem, size = 0x4, offset = 0x4, fixed_abs, tag = 'smem constant byte address 0x4 - core index']
  #allocation1 [shape = 'u32[144,128]{1,0:T(1,128)}', space=vmem, size = 0x12000, scoped, tag = 'internal scratch']
  %s0 = inlined_call_operand.vmem [shape: f32[2,18,18,4], index: 0, kind: input, shape index: {}]
  %s1 = inlined_call_operand.vmem [shape: f32[36,8], index: 1, kind: input, shape index: {}]
  %s2 = inlined_call_operand.vmem [shape: f32[1,8], index: 2, kind: input, shape index: {}]
  %s3 = inlined_call_operand.vmem [shape: f32[2,32,32,8], index: 3, kind: output, shape index: {0}]
  %s4 = inlined_call_operand.vmem [shape: f32[2,2,2,8], index: 4, kind: output, shape index: {1}]
  %5 = xla_tuple %s3, %s4
  %s6 = sld [smem:[#allocation0]]
  $region53: #{upblock2d_forward.2} parent=0
    _
  %s8 = ssub.s32 1, %s6
  %s9 = scalar_select 0, %s8, %s6
  loop: start=0, step=1, limit=6
  $region2: #{upblock2d_forward.2} parent=0 // loop_pre_header
    _
  $region3: #{upblock2d_forward.2} parent=0 // loop_header
    %s11 = sphi 0, %s15
    %p12 = scmp.ge.s32.totalorder %s11, 6
    %s18 = sphi 0, %s30
    %s19 = sphi 0, %s26
    %s20 = sphi 0, %s18
    %s21 = sphi 0, %s19
    %s22 = sphi 0, %s20
    %s23 = sphi 0, %s21
    %s33 = sphi 0, %s35
    %s36 = sphi 0, %s33
    %s37 = sphi 0, %s36
    %s53 = sphi 0, %s37
    %s57 = sphi 0, %s57
    %s59 = sphi 0, %s57
    %s60 = sphi 0, %s59
    %s74 = sphi 0, %s60
    %s78 = sphi 0, %s78
    %s80 = sphi 0, %s78
    %s81 = sphi 0, %s80
    %s95 = sphi 0, %s81
    %s103 = sphi 0, %s105
    %s106 = sphi 0, %s103
    %s107 = sphi 0, %s106
    %s123 = sphi 0, %s107
    %s131 = sphi 0, %s133
    %s134 = sphi 0, %s131
    %s135 = sphi 0, %s134
    %s151 = sphi 0, %s135
  $region4: #{upblock2d_forward.2} parent=0 // loop_header_branch
    %14 = sbr.rel (%p12) target = $region8
  $region5: #{upblock2d_forward.2} parent=0 // loop_body
    %s16 = ssub.s32 %s11, 1
    %s17 = ssub.s32 %s11, 2
    %s24 = sadd.s32 1, %s19
    %p25 = scmp.ge.s32.totalorder %s24, 2
    %s26 = scalar_select %p25, 0, %s24
    %s27 = sadd.s32 1, %s18
    %s28 = scalar_select %p25, %s27, %s18
    %p29 = scmp.ge.s32.totalorder %s28, 2
    %s30 = scalar_select %p29, 0, %s28
    %s31 = ssub.s32 %s18, %s30
    %p32 = scmp.eq.s32.totalorder %s31, 0
    %s34 = sadd.s32 %s33, 1
    %s35 = scalar_select %p32, %s33, %s34
    %p38 = pneg %p32
    %p39 = scmp.eq.s32.totalorder %s11, 3
    %p40 = por %p38, %p39
    %p41 = scmp.ne.s32.totalorder %s33, %s36
    %p42 = scmp.eq.s32.totalorder %s11, 0
    %p43 = por %p41, %p42
    %p44 = scmp.ne.s32.totalorder %s33, %s36
    %p45 = scmp.eq.s32.totalorder %s16, 3
    %p46 = por %p44, %p45
    %p47 = scmp.ne.s32.totalorder %s36, %s37
    %p48 = scmp.eq.s32.totalorder %s16, 0
    %p49 = por %p47, %p48
    %p50 = scmp.ne.s32.totalorder %s36, %s37
    %p51 = scmp.eq.s32.totalorder %s17, 3
    %p52 = por %p50, %p51
    %p54 = scmp.ne.s32.totalorder %s37, %s53
    %p55 = scmp.eq.s32.totalorder %s17, 0
    %p56 = por %p54, %p55
    %s58 = sadd.s32 %s57, 1
    %p61 = scmp.eq.s32.totalorder %s11, 3
    %p62 = scmp.ne.s32.totalorder %s57, %s59
    %p63 = scmp.eq.s32.totalorder %s11, 0
    %p64 = por %p62, %p63
    %p65 = scmp.ne.s32.totalorder %s57, %s59
    %p66 = scmp.eq.s32.totalorder %s16, 3
    %p67 = por %p65, %p66
    %p68 = scmp.ne.s32.totalorder %s59, %s60
    %p69 = scmp.eq.s32.totalorder %s16, 0
    %p70 = por %p68, %p69
    %p71 = scmp.ne.s32.totalorder %s59, %s60
    %p72 = scmp.eq.s32.totalorder %s17, 3
    %p73 = por %p71, %p72
    %p75 = scmp.ne.s32.totalorder %s60, %s74
    %p76 = scmp.eq.s32.totalorder %s17, 0
    %p77 = por %p75, %p76
    %s79 = sadd.s32 %s78, 1
    %p82 = scmp.eq.s32.totalorder %s11, 3
    %p83 = scmp.ne.s32.totalorder %s78, %s80
    %p84 = scmp.eq.s32.totalorder %s11, 0
    %p85 = por %p83, %p84
    %p86 = scmp.ne.s32.totalorder %s78, %s80
    %p87 = scmp.eq.s32.totalorder %s16, 3
    %p88 = por %p86, %p87
    %p89 = scmp.ne.s32.totalorder %s80, %s81
    %p90 = scmp.eq.s32.totalorder %s16, 0
    %p91 = por %p89, %p90
    %p92 = scmp.ne.s32.totalorder %s80, %s81
    %p93 = scmp.eq.s32.totalorder %s17, 3
    %p94 = por %p92, %p93
    %p96 = scmp.ne.s32.totalorder %s81, %s95
    %p97 = scmp.eq.s32.totalorder %s17, 0
    %p98 = por %p96, %p97
    %s99 = ssub.s32 %s18, %s30
    %s100 = ssub.s32 %s19, %s26
    %s101 = sor.u32 %s99, %s100
    %p102 = scmp.eq.s32.totalorder %s101, 0
    %s104 = sadd.s32 %s103, 1
    %s105 = scalar_select %p102, %s103, %s104
    %p108 = pneg %p102
    %p109 = scmp.eq.s32.totalorder %s11, 3
    %p110 = por %p108, %p109
    %p111 = scmp.ne.s32.totalorder %s103, %s106
    %p112 = scmp.eq.s32.totalorder %s11, 0
    %p113 = por %p111, %p112
    %p114 = scmp.ne.s32.totalorder %s103, %s106
    %p115 = scmp.eq.s32.totalorder %s16, 3
    %p116 = por %p114, %p115
    %p117 = scmp.ne.s32.totalorder %s106, %s107
    %p118 = scmp.eq.s32.totalorder %s16, 0
    %p119 = por %p117, %p118
    %p120 = scmp.ne.s32.totalorder %s106, %s107
    %p121 = scmp.eq.s32.totalorder %s17, 3
    %p122 = por %p120, %p121
    %p124 = scmp.ne.s32.totalorder %s107, %s123
    %p125 = scmp.eq.s32.totalorder %s17, 0
    %p126 = por %p124, %p125
    %s127 = ssub.s32 %s18, %s30
    %s128 = ssub.s32 %s19, %s26
    %s129 = sor.u32 %s127, %s128
    %p130 = scmp.eq.s32.totalorder %s129, 0
    %s132 = sadd.s32 %s131, 1
    %s133 = scalar_select %p130, %s131, %s132
    %p136 = pneg %p130
    %p137 = scmp.eq.s32.totalorder %s11, 3
    %p138 = por %p136, %p137
    %p139 = scmp.ne.s32.totalorder %s131, %s134
    %p140 = scmp.eq.s32.totalorder %s11, 0
    %p141 = por %p139, %p140
    %p142 = scmp.ne.s32.totalorder %s131, %s134
    %p143 = scmp.eq.s32.totalorder %s16, 3
    %p144 = por %p142, %p143
    %p145 = scmp.ne.s32.totalorder %s134, %s135
    %p146 = scmp.eq.s32.totalorder %s16, 0
    %p147 = por %p145, %p146
    %p148 = scmp.ne.s32.totalorder %s134, %s135
    %p149 = scmp.eq.s32.totalorder %s17, 3
    %p150 = por %p148, %p149
    %p152 = scmp.ne.s32.totalorder %s135, %s151
    %p153 = scmp.eq.s32.totalorder %s17, 0
    %p154 = por %p152, %p153
    %p155 = scmp.le.s32.totalorder 1, %s11
    %p156 = scmp.lt.s32.totalorder %s11, 5
    %p157 = pnand %p155, %p156
    %p158 = pneg %p157
    // Predicated region
    $region9: #{upblock2d_forward.2} parent=5 // pred_check
      _
    $region10: #{upblock2d_forward.2} parent=5 // pred_check_branch
      %160 = sbr.rel (%p157) target = $region12
    $region11: #{upblock2d_forward.2} parent=5 // pred_region
      %s161 = ssub.s32 %s11, 1
      // Predicated region
      $region13: #{upblock2d_forward.2} parent=11 // pred_check
        %p162 = pneg %p70
      $region14: #{upblock2d_forward.2} parent=11 // pred_check_branch
        %164 = sbr.rel (%p162) target = $region16
      $region15: #{upblock2d_forward.2} parent=11 // pred_region
        _
      $region16: #{upblock2d_forward.2} parent=11 // pred_fallthru
        _
      // Predicated region
      $region17: #{upblock2d_forward.2} parent=11 // pred_check
        %p165 = pneg %p91
      $region18: #{upblock2d_forward.2} parent=11 // pred_check_branch
        %167 = sbr.rel (%p165) target = $region20
      $region19: #{upblock2d_forward.2} parent=11 // pred_region
        _
      $region20: #{upblock2d_forward.2} parent=11 // pred_fallthru
        _
    $region12: #{upblock2d_forward.2} parent=5 // pred_fallthru
      _
    %p168 = scmp.lt.s32.totalorder %s11, 4
    // Predicated region
    $region21: #{upblock2d_forward.2} parent=5 // pred_check
      %p169 = pneg %p168
    $region22: #{upblock2d_forward.2} parent=5 // pred_check_branch
      %171 = sbr.rel (%p169) target = $region24
    $region23: #{upblock2d_forward.2} parent=5 // pred_region
      // Predicated region
      $region25: #{upblock2d_forward.2} parent=23 // pred_check
        %p172 = pneg %p43
      $region26: #{upblock2d_forward.2} parent=23 // pred_check_branch
        %174 = sbr.rel (%p172) target = $region28
      $region27: #{upblock2d_forward.2} parent=23 // pred_region
        %p175 = scmp.lt.s32.totalorder %s18, 1
        %s176 = scalar_select %p175, %s18, 1
        %s177 = smul.addr %s176, 54
        %s178 = smul.addr %s177, 8
        %s179 = scalar_lea.vmem %s0, %s178
      $region28: #{upblock2d_forward.2} parent=23 // pred_fallthru
        _
    $region24: #{upblock2d_forward.2} parent=5 // pred_fallthru
      _
    %p180 = scmp.le.s32.totalorder 1, %s11
    %p181 = scmp.lt.s32.totalorder %s11, 5
    %p182 = pnand %p180, %p181
    %p183 = pneg %p182
    // Predicated region
    $region29: #{upblock2d_forward.2} parent=5 // pred_check
      _
    $region30: #{upblock2d_forward.2} parent=5 // pred_check_branch
      %185 = sbr.rel (%p182) target = $region32
    $region31: #{upblock2d_forward.2} parent=5 // pred_region
      %s186 = ssub.s32 %s11, 1
      %p187 = scmp.lt.s32.totalorder %s20, 1
      %s188 = scalar_select %p187, %s20, 1
      %s189 = smul.addr %s188, 54
      %s190 = smul.addr %s189, 8
      %s191 = scalar_lea.vmem %s0, %s190
      %p192 = pneg %p49
      %p193 = pneg %p46
      %p194 = pneg %p70
      %p195 = pneg %p67
      %p196 = pneg %p91
      %p197 = pneg %p88
      %p198 = pneg %p119
      %p199 = pneg %p116
      %s200 = smul.u32 16, %s21
      %p201 = scmp.lt.s32.totalorder %s20, 1
      %s202 = scalar_select %p201, %s20, 1
      %p203 = scmp.lt.s32.totalorder %s200, 31
      %s204 = scalar_select %p203, %s200, 31
      %s205 = smul.addr %s204, 4
      %s206 = smul.addr %s202, 128
      %s207 = sadd.s32 %s205, %s206
      %s208 = smul.addr %s207, 8
      %s209 = scalar_lea.vmem %s3, %s208
      %p210 = pneg %p147
      %p211 = pneg %p144
      %p212 = scmp.lt.s32.totalorder %s20, 1
      %s213 = scalar_select %p212, %s20, 1
      %p214 = scmp.lt.s32.totalorder %s21, 1
      %s215 = scalar_select %p214, %s21, 1
      %s216 = smul.addr %s213, 2
      %s217 = sadd.s32 %s215, %s216
      %s218 = smul.addr %s217, 2
      %s219 = scalar_lea.vmem %s4, %s218
      %p220 = scmp.lt.s32.totalorder %s20, 1
      %s221 = scalar_select %p220, %s20, 1
      %s222 = smul.addr %s221, 54
      %s223 = smul.addr %s222, 8
      %s224 = scalar_lea.vmem %s0, %s223
      %s225 = smul.u32 16, %s21
      %p226 = scmp.lt.s32.totalorder %s20, 1
      %s227 = scalar_select %p226, %s20, 1
      %p228 = scmp.lt.s32.totalorder %s225, 31
      %s229 = scalar_select %p228, %s225, 31
      %s230 = smul.addr %s229, 4
      %s231 = smul.addr %s227, 128
      %s232 = sadd.s32 %s230, %s231
      %s233 = smul.addr %s232, 8
      %s234 = scalar_lea.vmem %s3, %s233
      %s235 = smul.u32 16, %s21
      %p236 = scmp.lt.s32.totalorder %s20, 1
      %s237 = scalar_select %p236, %s20, 1
      %p238 = scmp.lt.s32.totalorder %s21, 1
      %s239 = scalar_select %p238, %s21, 1
      %s240 = smul.addr %s237, 2
      %s241 = sadd.s32 %s239, %s240
      %s242 = smul.addr %s241, 2
      %s243 = scalar_lea.vmem %s4, %s242
      %s244 = smul.u32 %s21, 8
      %s245 = smul.u32 %s244, 24
      %s246 = scalar_lea.vmem %s224, %s245
      %v247 = vld [vmem:[%s246] sm:$0xff]
      %v248 = vld [vmem:[%s246 + $0x8] sm:$0xff]
      %v249 = vld [vmem:[%s246 + $0x10] sm:$0x3]
      %v250 = vld [vmem:[%s246 + $0x18] sm:$0xff]
      %v251 = vld [vmem:[%s246 + $0x20] sm:$0xff]
      %v252 = vld [vmem:[%s246 + $0x28] sm:$0x3]
      %v253 = vld [vmem:[%s246 + $0x30] sm:$0xff]
      %v254 = vld [vmem:[%s246 + $0x38] sm:$0xff]
      %v255 = vld [vmem:[%s246 + $0x40] sm:$0x3]
      %v256 = vld [vmem:[%s246 + $0x48] sm:$0xff]
      %v257 = vld [vmem:[%s246 + $0x50] sm:$0xff]
      %v258 = vld [vmem:[%s246 + $0x58] sm:$0x3]
      %v259 = vld [vmem:[%s246 + $0x60] sm:$0xff]
      %v260 = vld [vmem:[%s246 + $0x68] sm:$0xff]
      %v261 = vld [vmem:[%s246 + $0x70] sm:$0x3]
      %v262 = vld [vmem:[%s246 + $0x78] sm:$0xff]
      %v263 = vld [vmem:[%s246 + $0x80] sm:$0xff]
      %v264 = vld [vmem:[%s246 + $0x88] sm:$0x3]
      %v265 = vld [vmem:[%s246 + $0x90] sm:$0xff]
      %v266 = vld [vmem:[%s246 + $0x98] sm:$0xff]
      %v267 = vld [vmem:[%s246 + $0xa0] sm:$0x3]
      %v268 = vld [vmem:[%s246 + $0xa8] sm:$0xff]
      %v269 = vld [vmem:[%s246 + $0xb0] sm:$0xff]
      %v270 = vld [vmem:[%s246 + $0xb8] sm:$0x3]
      %v271 = vld [vmem:[%s246 + $0xc0] sm:$0xff]
      %v272 = vld [vmem:[%s246 + $0xc8] sm:$0xff]
      %v273 = vld [vmem:[%s246 + $0xd0] sm:$0x3]
      %v274 = vld [vmem:[%s246 + $0xd8] sm:$0xff]
      %v275 = vld [vmem:[%s246 + $0xe0] sm:$0xff]
      %v276 = vld [vmem:[%s246 + $0xe8] sm:$0x3]
      %v308 = vunpack.c.l.s4 1966171168
      %v309 = vunpack.c.0.s8 %v308
      %v310 = vlaneseq
      %v311 = vshrl.u32 %v310, 7
      %v312 = vsub.s32 %v309, %v311
      %v313 = vrot.slane %v247, %v312
      %v315 = vunpack.c.l.s4 1966171168
      %v316 = vunpack.c.0.s8 %v315
      %v317 = vlaneseq
      %v318 = vshrl.u32 %v317, 7
      %v319 = vsub.s32 %v316, %v318
      %v320 = vrot.slane %v313, %v319
      %v322 = vunpack.c.l.s4 1966171168
      %v323 = vunpack.c.0.s8 %v322
      %v324 = vlaneseq
      %v325 = vshrl.u32 %v324, 7
      %v326 = vsub.s32 %v323, %v325
      %v327 = vrot.slane %v248, %v326
      %v329 = vunpack.c.l.s4 1966171168
      %v330 = vunpack.c.0.s8 %v329
      %v331 = vlaneseq
      %v332 = vshrl.u32 %v331, 7
      %v333 = vsub.s32 %v330, %v332
      %v334 = vrot.slane %v327, %v333
      %v336 = vunpack.c.l.s4 1966171168
      %v337 = vunpack.c.0.s8 %v336
      %v338 = vlaneseq
      %v339 = vshrl.u32 %v338, 7
      %v340 = vsub.s32 %v337, %v339
      %v341 = vrot.slane %v249, %v340
      %v343 = vunpack.c.l.s4 1966171168
      %v344 = vunpack.c.0.s8 %v343
      %v345 = vlaneseq
      %v346 = vshrl.u32 %v345, 7
      %v347 = vsub.s32 %v344, %v346
      %v348 = vrot.slane %v341, %v347
      %v349 = vcombine.high %v247, %v247
      %v351 = vunpack.c.l.s4 1966171168
      %v352 = vunpack.c.0.s8 %v351
      %v353 = vlaneseq
      %v354 = vshrl.u32 %v353, 7
      %v355 = vsub.s32 %v352, %v354
      %v356 = vrot.slane %v349, %v355
      %v357 = vcombine.high %v313, %v313
      %v358 = vcombine.high %v356, %v356
      %v360 = vunpack.c.l.s4 1966171168
      %v361 = vunpack.c.0.s8 %v360
      %v362 = vlaneseq
      %v363 = vshrl.u32 %v362, 7
      %v364 = vsub.s32 %v361, %v363
      %v365 = vrot.slane %v356, %v364
      %v367 = vunpack.c.l.s4 1966171168
      %v368 = vunpack.c.0.s8 %v367
      %v369 = vlaneseq
      %v370 = vshrl.u32 %v369, 7
      %v371 = vsub.s32 %v368, %v370
      %v372 = vrot.slane %v357, %v371
      %v374 = vunpack.c.l.s4 1966171168
      %v375 = vunpack.c.0.s8 %v374
      %v376 = vlaneseq
      %v377 = vshrl.u32 %v376, 7
      %v378 = vsub.s32 %v375, %v377
      %v379 = vrot.slane %v358, %v378
      %v380 = vcombine.high %v320, %v320
      %v381 = vcombine.high %v365, %v365
      %v382 = vcombine.high %v372, %v372
      %v383 = vcombine.high %v379, %v379
      %v384 = vcombine.high %v248, %v248
      %v386 = vunpack.c.l.s4 1966171168
      %v387 = vunpack.c.0.s8 %v386
      %v388 = vlaneseq
      %v389 = vshrl.u32 %v388, 7
      %v390 = vsub.s32 %v387, %v389
      %v391 = vrot.slane %v384, %v390
      %v392 = vcombine.high %v327, %v327
      %v393 = vcombine.high %v391, %v391
      %v395 = vunpack.c.l.s4 1966171168
      %v396 = vunpack.c.0.s8 %v395
      %v397 = vlaneseq
      %v398 = vshrl.u32 %v397, 7
      %v399 = vsub.s32 %v396, %v398
      %v400 = vrot.slane %v391, %v399
      %v402 = vunpack.c.l.s4 1966171168
      %v403 = vunpack.c.0.s8 %v402
      %v404 = vlaneseq
      %v405 = vshrl.u32 %v404, 7
      %v406 = vsub.s32 %v403, %v405
      %v407 = vrot.slane %v392, %v406
      %v409 = vunpack.c.l.s4 1966171168
      %v410 = vunpack.c.0.s8 %v409
      %v411 = vlaneseq
      %v412 = vshrl.u32 %v411, 7
      %v413 = vsub.s32 %v410, %v412
      %v414 = vrot.slane %v393, %v413
      %v415 = vcombine.high %v334, %v334
      %v416 = vcombine.high %v400, %v400
      %v417 = vcombine.high %v407, %v407
      %v418 = vcombine.high %v414, %v414
      %v419 = vcombine.high %v341, %v341
      %v421 = vunpack.c.l.s4 1966171168
      %v422 = vunpack.c.0.s8 %v421
      %v423 = vlaneseq
      %v424 = vshrl.u32 %v423, 7
      %v425 = vsub.s32 %v422, %v424
      %v426 = vrot.slane %v419, %v425
      %v427 = vcombine.high %v250, %v250
      %v429 = vunpack.c.l.s4 1966171168
      %v430 = vunpack.c.0.s8 %v429
      %v431 = vlaneseq
      %v432 = vshrl.u32 %v431, 7
      %v433 = vsub.s32 %v430, %v432
      %v434 = vrot.slane %v250, %v433
      %v436 = vunpack.c.l.s4 1966171168
      %v437 = vunpack.c.0.s8 %v436
      %v438 = vlaneseq
      %v439 = vshrl.u32 %v438, 7
      %v440 = vsub.s32 %v437, %v439
      %v441 = vrot.slane %v427, %v440
      %v442 = vcombine.high %v434, %v434
      %v443 = vcombine.high %v441, %v441
      %v445 = vunpack.c.l.s4 1966171168
      %v446 = vunpack.c.0.s8 %v445
      %v447 = vlaneseq
      %v448 = vshrl.u32 %v447, 7
      %v449 = vsub.s32 %v446, %v448
      %v450 = vrot.slane %v434, %v449
      %v452 = vunpack.c.l.s4 1966171168
      %v453 = vunpack.c.0.s8 %v452
      %v454 = vlaneseq
      %v455 = vshrl.u32 %v454, 7
      %v456 = vsub.s32 %v453, %v455
      %v457 = vrot.slane %v441, %v456
      %v459 = vunpack.c.l.s4 1966171168
      %v460 = vunpack.c.0.s8 %v459
      %v461 = vlaneseq
      %v462 = vshrl.u32 %v461, 7
      %v463 = vsub.s32 %v460, %v462
      %v464 = vrot.slane %v442, %v463
      %v466 = vunpack.c.l.s4 1966171168
      %v467 = vunpack.c.0.s8 %v466
      %v468 = vlaneseq
      %v469 = vshrl.u32 %v468, 7
      %v470 = vsub.s32 %v467, %v469
      %v471 = vrot.slane %v443, %v470
      %v472 = vcombine.high %v450, %v450
      %v473 = vcombine.high %v457, %v457
      %v474 = vcombine.high %v464, %v464
      %v475 = vcombine.high %v471, %v471
      %v476 = vcombine.high %v251, %v251
      %v478 = vunpack.c.l.s4 1966171168
      %v479 = vunpack.c.0.s8 %v478
      %v480 = vlaneseq
      %v481 = vshrl.u32 %v480, 7
      %v482 = vsub.s32 %v479, %v481
      %v483 = vrot.slane %v251, %v482
      %v485 = vunpack.c.l.s4 1966171168
      %v486 = vunpack.c.0.s8 %v485
      %v487 = vlaneseq
      %v488 = vshrl.u32 %v487, 7
      %v489 = vsub.s32 %v486, %v488
      %v490 = vrot.slane %v476, %v489
      %v491 = vcombine.high %v483, %v483
      %v492 = vcombine.high %v490, %v490
      %v494 = vunpack.c.l.s4 1966171168
      %v495 = vunpack.c.0.s8 %v494
      %v496 = vlaneseq
      %v497 = vshrl.u32 %v496, 7
      %v498 = vsub.s32 %v495, %v497
      %v499 = vrot.slane %v483, %v498
      %v501 = vunpack.c.l.s4 1966171168
      %v502 = vunpack.c.0.s8 %v501
      %v503 = vlaneseq
      %v504 = vshrl.u32 %v503, 7
      %v505 = vsub.s32 %v502, %v504
      %v506 = vrot.slane %v490, %v505
      %v508 = vunpack.c.l.s4 1966171168
      %v509 = vunpack.c.0.s8 %v508
      %v510 = vlaneseq
      %v511 = vshrl.u32 %v510, 7
      %v512 = vsub.s32 %v509, %v511
      %v513 = vrot.slane %v491, %v512
      %v515 = vunpack.c.l.s4 1966171168
      %v516 = vunpack.c.0.s8 %v515
      %v517 = vlaneseq
      %v518 = vshrl.u32 %v517, 7
      %v519 = vsub.s32 %v516, %v518
      %v520 = vrot.slane %v492, %v519
      %v521 = vcombine.high %v499, %v499
      %v522 = vcombine.high %v506, %v506
      %v523 = vcombine.high %v513, %v513
      %v524 = vcombine.high %v520, %v520
      %v526 = vunpack.c.l.s4 1966171168
      %v527 = vunpack.c.0.s8 %v526
      %v528 = vlaneseq
      %v529 = vshrl.u32 %v528, 7
      %v530 = vsub.s32 %v527, %v529
      %v531 = vrot.slane %v252, %v530
      %v532 = vcombine.high %v531, %v531
      %v534 = vunpack.c.l.s4 1966171168
      %v535 = vunpack.c.0.s8 %v534
      %v536 = vlaneseq
      %v537 = vshrl.u32 %v536, 7
      %v538 = vsub.s32 %v535, %v537
      %v539 = vrot.slane %v531, %v538
      %v541 = vunpack.c.l.s4 1966171168
      %v542 = vunpack.c.0.s8 %v541
      %v543 = vlaneseq
      %v544 = vshrl.u32 %v543, 7
      %v545 = vsub.s32 %v542, %v544
      %v546 = vrot.slane %v532, %v545
      %v547 = vcombine.high %v253, %v253
      %v549 = vunpack.c.l.s4 1966171168
      %v550 = vunpack.c.0.s8 %v549
      %v551 = vlaneseq
      %v552 = vshrl.u32 %v551, 7
      %v553 = vsub.s32 %v550, %v552
      %v554 = vrot.slane %v253, %v553
      %v556 = vunpack.c.l.s4 1966171168
      %v557 = vunpack.c.0.s8 %v556
      %v558 = vlaneseq
      %v559 = vshrl.u32 %v558, 7
      %v560 = vsub.s32 %v557, %v559
      %v561 = vrot.slane %v547, %v560
      %v562 = vcombine.high %v554, %v554
      %v563 = vcombine.high %v561, %v561
      %v565 = vunpack.c.l.s4 1966171168
      %v566 = vunpack.c.0.s8 %v565
      %v567 = vlaneseq
      %v568 = vshrl.u32 %v567, 7
      %v569 = vsub.s32 %v566, %v568
      %v570 = vrot.slane %v554, %v569
      %v572 = vunpack.c.l.s4 1966171168
      %v573 = vunpack.c.0.s8 %v572
      %v574 = vlaneseq
      %v575 = vshrl.u32 %v574, 7
      %v576 = vsub.s32 %v573, %v575
      %v577 = vrot.slane %v561, %v576
      %v579 = vunpack.c.l.s4 1966171168
      %v580 = vunpack.c.0.s8 %v579
      %v581 = vlaneseq
      %v582 = vshrl.u32 %v581, 7
      %v583 = vsub.s32 %v580, %v582
      %v584 = vrot.slane %v562, %v583
      %v586 = vunpack.c.l.s4 1966171168
      %v587 = vunpack.c.0.s8 %v586
      %v588 = vlaneseq
      %v589 = vshrl.u32 %v588, 7
      %v590 = vsub.s32 %v587, %v589
      %v591 = vrot.slane %v563, %v590
      %v592 = vcombine.high %v570, %v570
      %v593 = vcombine.high %v577, %v577
      %v594 = vcombine.high %v584, %v584
      %v595 = vcombine.high %v591, %v591
      %v596 = vcombine.high %v254, %v254
      %v598 = vunpack.c.l.s4 1966171168
      %v599 = vunpack.c.0.s8 %v598
      %v600 = vlaneseq
      %v601 = vshrl.u32 %v600, 7
      %v602 = vsub.s32 %v599, %v601
      %v603 = vrot.slane %v254, %v602
      %v605 = vunpack.c.l.s4 1966171168
      %v606 = vunpack.c.0.s8 %v605
      %v607 = vlaneseq
      %v608 = vshrl.u32 %v607, 7
      %v609 = vsub.s32 %v606, %v608
      %v610 = vrot.slane %v596, %v609
      %v611 = vcombine.high %v603, %v603
      %v612 = vcombine.high %v610, %v610
      %v614 = vunpack.c.l.s4 1966171168
      %v615 = vunpack.c.0.s8 %v614
      %v616 = vlaneseq
      %v617 = vshrl.u32 %v616, 7
      %v618 = vsub.s32 %v615, %v617
      %v619 = vrot.slane %v603, %v618
      %v621 = vunpack.c.l.s4 1966171168
      %v622 = vunpack.c.0.s8 %v621
      %v623 = vlaneseq
      %v624 = vshrl.u32 %v623, 7
      %v625 = vsub.s32 %v622, %v624
      %v626 = vrot.slane %v610, %v625
      %v628 = vunpack.c.l.s4 1966171168
      %v629 = vunpack.c.0.s8 %v628
      %v630 = vlaneseq
      %v631 = vshrl.u32 %v630, 7
      %v632 = vsub.s32 %v629, %v631
      %v633 = vrot.slane %v611, %v632
      %v635 = vunpack.c.l.s4 1966171168
      %v636 = vunpack.c.0.s8 %v635
      %v637 = vlaneseq
      %v638 = vshrl.u32 %v637, 7
      %v639 = vsub.s32 %v636, %v638
      %v640 = vrot.slane %v612, %v639
      %v641 = vcombine.high %v619, %v619
      %v642 = vcombine.high %v626, %v626
      %v643 = vcombine.high %v633, %v633
      %v644 = vcombine.high %v640, %v640
      %v646 = vunpack.c.l.s4 1966171168
      %v647 = vunpack.c.0.s8 %v646
      %v648 = vlaneseq
      %v649 = vshrl.u32 %v648, 7
      %v650 = vsub.s32 %v647, %v649
      %v651 = vrot.slane %v255, %v650
      %v652 = vcombine.high %v651, %v651
      %v654 = vunpack.c.l.s4 1966171168
      %v655 = vunpack.c.0.s8 %v654
      %v656 = vlaneseq
      %v657 = vshrl.u32 %v656, 7
      %v658 = vsub.s32 %v655, %v657
      %v659 = vrot.slane %v651, %v658
      %v661 = vunpack.c.l.s4 1966171168
      %v662 = vunpack.c.0.s8 %v661
      %v663 = vlaneseq
      %v664 = vshrl.u32 %v663, 7
      %v665 = vsub.s32 %v662, %v664
      %v666 = vrot.slane %v652, %v665
      %v667 = vcombine.high %v256, %v256
      %v669 = vunpack.c.l.s4 1966171168
      %v670 = vunpack.c.0.s8 %v669
      %v671 = vlaneseq
      %v672 = vshrl.u32 %v671, 7
      %v673 = vsub.s32 %v670, %v672
      %v674 = vrot.slane %v256, %v673
      %v676 = vunpack.c.l.s4 1966171168
      %v677 = vunpack.c.0.s8 %v676
      %v678 = vlaneseq
      %v679 = vshrl.u32 %v678, 7
      %v680 = vsub.s32 %v677, %v679
      %v681 = vrot.slane %v667, %v680
      %v682 = vcombine.high %v674, %v674
      %v683 = vcombine.high %v681, %v681
      %v685 = vunpack.c.l.s4 1966171168
      %v686 = vunpack.c.0.s8 %v685
      %v687 = vlaneseq
      %v688 = vshrl.u32 %v687, 7
      %v689 = vsub.s32 %v686, %v688
      %v690 = vrot.slane %v674, %v689
      %v692 = vunpack.c.l.s4 1966171168
      %v693 = vunpack.c.0.s8 %v692
      %v694 = vlaneseq
      %v695 = vshrl.u32 %v694, 7
      %v696 = vsub.s32 %v693, %v695
      %v697 = vrot.slane %v681, %v696
      %v699 = vunpack.c.l.s4 1966171168
      %v700 = vunpack.c.0.s8 %v699
      %v701 = vlaneseq
      %v702 = vshrl.u32 %v701, 7
      %v703 = vsub.s32 %v700, %v702
      %v704 = vrot.slane %v682, %v703
      %v706 = vunpack.c.l.s4 1966171168
      %v707 = vunpack.c.0.s8 %v706
      %v708 = vlaneseq
      %v709 = vshrl.u32 %v708, 7
      %v710 = vsub.s32 %v707, %v709
      %v711 = vrot.slane %v683, %v710
      %v712 = vcombine.high %v690, %v690
      %v713 = vcombine.high %v697, %v697
      %v714 = vcombine.high %v704, %v704
      %v715 = vcombine.high %v711, %v711
      %v716 = vcombine.high %v257, %v257
      %v718 = vunpack.c.l.s4 1966171168
      %v719 = vunpack.c.0.s8 %v718
      %v720 = vlaneseq
      %v721 = vshrl.u32 %v720, 7
      %v722 = vsub.s32 %v719, %v721
      %v723 = vrot.slane %v257, %v722
      %v725 = vunpack.c.l.s4 1966171168
      %v726 = vunpack.c.0.s8 %v725
      %v727 = vlaneseq
      %v728 = vshrl.u32 %v727, 7
      %v729 = vsub.s32 %v726, %v728
      %v730 = vrot.slane %v716, %v729
      %v731 = vcombine.high %v723, %v723
      %v732 = vcombine.high %v730, %v730
      %v734 = vunpack.c.l.s4 1966171168
      %v735 = vunpack.c.0.s8 %v734
      %v736 = vlaneseq
      %v737 = vshrl.u32 %v736, 7
      %v738 = vsub.s32 %v735, %v737
      %v739 = vrot.slane %v723, %v738
      %v741 = vunpack.c.l.s4 1966171168
      %v742 = vunpack.c.0.s8 %v741
      %v743 = vlaneseq
      %v744 = vshrl.u32 %v743, 7
      %v745 = vsub.s32 %v742, %v744
      %v746 = vrot.slane %v730, %v745
      %v748 = vunpack.c.l.s4 1966171168
      %v749 = vunpack.c.0.s8 %v748
      %v750 = vlaneseq
      %v751 = vshrl.u32 %v750, 7
      %v752 = vsub.s32 %v749, %v751
      %v753 = vrot.slane %v731, %v752
      %v755 = vunpack.c.l.s4 1966171168
      %v756 = vunpack.c.0.s8 %v755
      %v757 = vlaneseq
      %v758 = vshrl.u32 %v757, 7
      %v759 = vsub.s32 %v756, %v758
      %v760 = vrot.slane %v732, %v759
      %v761 = vcombine.high %v739, %v739
      %v762 = vcombine.high %v746, %v746
      %v763 = vcombine.high %v753, %v753
      %v764 = vcombine.high %v760, %v760
      %v766 = vunpack.c.l.s4 1966171168
      %v767 = vunpack.c.0.s8 %v766
      %v768 = vlaneseq
      %v769 = vshrl.u32 %v768, 7
      %v770 = vsub.s32 %v767, %v769
      %v771 = vrot.slane %v258, %v770
      %v772 = vcombine.high %v771, %v771
      %v774 = vunpack.c.l.s4 1966171168
      %v775 = vunpack.c.0.s8 %v774
      %v776 = vlaneseq
      %v777 = vshrl.u32 %v776, 7
      %v778 = vsub.s32 %v775, %v777
      %v779 = vrot.slane %v771, %v778
      %v781 = vunpack.c.l.s4 1966171168
      %v782 = vunpack.c.0.s8 %v781
      %v783 = vlaneseq
      %v784 = vshrl.u32 %v783, 7
      %v785 = vsub.s32 %v782, %v784
      %v786 = vrot.slane %v772, %v785
      %v787 = vcombine.high %v259, %v259
      %v789 = vunpack.c.l.s4 1966171168
      %v790 = vunpack.c.0.s8 %v789
      %v791 = vlaneseq
      %v792 = vshrl.u32 %v791, 7
      %v793 = vsub.s32 %v790, %v792
      %v794 = vrot.slane %v259, %v793
      %v796 = vunpack.c.l.s4 1966171168
      %v797 = vunpack.c.0.s8 %v796
      %v798 = vlaneseq
      %v799 = vshrl.u32 %v798, 7
      %v800 = vsub.s32 %v797, %v799
      %v801 = vrot.slane %v787, %v800
      %v802 = vcombine.high %v794, %v794
      %v803 = vcombine.high %v801, %v801
      %v805 = vunpack.c.l.s4 1966171168
      %v806 = vunpack.c.0.s8 %v805
      %v807 = vlaneseq
      %v808 = vshrl.u32 %v807, 7
      %v809 = vsub.s32 %v806, %v808
      %v810 = vrot.slane %v794, %v809
      %v812 = vunpack.c.l.s4 1966171168
      %v813 = vunpack.c.0.s8 %v812
      %v814 = vlaneseq
      %v815 = vshrl.u32 %v814, 7
      %v816 = vsub.s32 %v813, %v815
      %v817 = vrot.slane %v801, %v816
      %v819 = vunpack.c.l.s4 1966171168
      %v820 = vunpack.c.0.s8 %v819
      %v821 = vlaneseq
      %v822 = vshrl.u32 %v821, 7
      %v823 = vsub.s32 %v820, %v822
      %v824 = vrot.slane %v802, %v823
      %v826 = vunpack.c.l.s4 1966171168
      %v827 = vunpack.c.0.s8 %v826
      %v828 = vlaneseq
      %v829 = vshrl.u32 %v828, 7
      %v830 = vsub.s32 %v827, %v829
      %v831 = vrot.slane %v803, %v830
      %v832 = vcombine.high %v810, %v810
      %v833 = vcombine.high %v817, %v817
      %v834 = vcombine.high %v824, %v824
      %v835 = vcombine.high %v831, %v831
      %v836 = vcombine.high %v260, %v260
      %v838 = vunpack.c.l.s4 1966171168
      %v839 = vunpack.c.0.s8 %v838
      %v840 = vlaneseq
      %v841 = vshrl.u32 %v840, 7
      %v842 = vsub.s32 %v839, %v841
      %v843 = vrot.slane %v260, %v842
      %v845 = vunpack.c.l.s4 1966171168
      %v846 = vunpack.c.0.s8 %v845
      %v847 = vlaneseq
      %v848 = vshrl.u32 %v847, 7
      %v849 = vsub.s32 %v846, %v848
      %v850 = vrot.slane %v836, %v849
      %v851 = vcombine.high %v843, %v843
      %v852 = vcombine.high %v850, %v850
      %v854 = vunpack.c.l.s4 1966171168
      %v855 = vunpack.c.0.s8 %v854
      %v856 = vlaneseq
      %v857 = vshrl.u32 %v856, 7
      %v858 = vsub.s32 %v855, %v857
      %v859 = vrot.slane %v843, %v858
      %v861 = vunpack.c.l.s4 1966171168
      %v862 = vunpack.c.0.s8 %v861
      %v863 = vlaneseq
      %v864 = vshrl.u32 %v863, 7
      %v865 = vsub.s32 %v862, %v864
      %v866 = vrot.slane %v850, %v865
      %v868 = vunpack.c.l.s4 1966171168
      %v869 = vunpack.c.0.s8 %v868
      %v870 = vlaneseq
      %v871 = vshrl.u32 %v870, 7
      %v872 = vsub.s32 %v869, %v871
      %v873 = vrot.slane %v851, %v872
      %v875 = vunpack.c.l.s4 1966171168
      %v876 = vunpack.c.0.s8 %v875
      %v877 = vlaneseq
      %v878 = vshrl.u32 %v877, 7
      %v879 = vsub.s32 %v876, %v878
      %v880 = vrot.slane %v852, %v879
      %v881 = vcombine.high %v859, %v859
      %v882 = vcombine.high %v866, %v866
      %v883 = vcombine.high %v873, %v873
      %v884 = vcombine.high %v880, %v880
      %v886 = vunpack.c.l.s4 1966171168
      %v887 = vunpack.c.0.s8 %v886
      %v888 = vlaneseq
      %v889 = vshrl.u32 %v888, 7
      %v890 = vsub.s32 %v887, %v889
      %v891 = vrot.slane %v261, %v890
      %v892 = vcombine.high %v891, %v891
      %v894 = vunpack.c.l.s4 1966171168
      %v895 = vunpack.c.0.s8 %v894
      %v896 = vlaneseq
      %v897 = vshrl.u32 %v896, 7
      %v898 = vsub.s32 %v895, %v897
      %v899 = vrot.slane %v891, %v898
      %v901 = vunpack.c.l.s4 1966171168
      %v902 = vunpack.c.0.s8 %v901
      %v903 = vlaneseq
      %v904 = vshrl.u32 %v903, 7
      %v905 = vsub.s32 %v902, %v904
      %v906 = vrot.slane %v892, %v905
      %v907 = vcombine.high %v262, %v262
      %v909 = vunpack.c.l.s4 1966171168
      %v910 = vunpack.c.0.s8 %v909
      %v911 = vlaneseq
      %v912 = vshrl.u32 %v911, 7
      %v913 = vsub.s32 %v910, %v912
      %v914 = vrot.slane %v262, %v913
      %v916 = vunpack.c.l.s4 1966171168
      %v917 = vunpack.c.0.s8 %v916
      %v918 = vlaneseq
      %v919 = vshrl.u32 %v918, 7
      %v920 = vsub.s32 %v917, %v919
      %v921 = vrot.slane %v907, %v920
      %v922 = vcombine.high %v914, %v914
      %v923 = vcombine.high %v921, %v921
      %v925 = vunpack.c.l.s4 1966171168
      %v926 = vunpack.c.0.s8 %v925
      %v927 = vlaneseq
      %v928 = vshrl.u32 %v927, 7
      %v929 = vsub.s32 %v926, %v928
      %v930 = vrot.slane %v914, %v929
      %v932 = vunpack.c.l.s4 1966171168
      %v933 = vunpack.c.0.s8 %v932
      %v934 = vlaneseq
      %v935 = vshrl.u32 %v934, 7
      %v936 = vsub.s32 %v933, %v935
      %v937 = vrot.slane %v921, %v936
      %v939 = vunpack.c.l.s4 1966171168
      %v940 = vunpack.c.0.s8 %v939
      %v941 = vlaneseq
      %v942 = vshrl.u32 %v941, 7
      %v943 = vsub.s32 %v940, %v942
      %v944 = vrot.slane %v922, %v943
      %v946 = vunpack.c.l.s4 1966171168
      %v947 = vunpack.c.0.s8 %v946
      %v948 = vlaneseq
      %v949 = vshrl.u32 %v948, 7
      %v950 = vsub.s32 %v947, %v949
      %v951 = vrot.slane %v923, %v950
      %v952 = vcombine.high %v930, %v930
      %v953 = vcombine.high %v937, %v937
      %v954 = vcombine.high %v944, %v944
      %v955 = vcombine.high %v951, %v951
      %v956 = vcombine.high %v263, %v263
      %v958 = vunpack.c.l.s4 1966171168
      %v959 = vunpack.c.0.s8 %v958
      %v960 = vlaneseq
      %v961 = vshrl.u32 %v960, 7
      %v962 = vsub.s32 %v959, %v961
      %v963 = vrot.slane %v263, %v962
      %v965 = vunpack.c.l.s4 1966171168
      %v966 = vunpack.c.0.s8 %v965
      %v967 = vlaneseq
      %v968 = vshrl.u32 %v967, 7
      %v969 = vsub.s32 %v966, %v968
      %v970 = vrot.slane %v956, %v969
      %v971 = vcombine.high %v963, %v963
      %v972 = vcombine.high %v970, %v970
      %v974 = vunpack.c.l.s4 1966171168
      %v975 = vunpack.c.0.s8 %v974
      %v976 = vlaneseq
      %v977 = vshrl.u32 %v976, 7
      %v978 = vsub.s32 %v975, %v977
      %v979 = vrot.slane %v963, %v978
      %v981 = vunpack.c.l.s4 1966171168
      %v982 = vunpack.c.0.s8 %v981
      %v983 = vlaneseq
      %v984 = vshrl.u32 %v983, 7
      %v985 = vsub.s32 %v982, %v984
      %v986 = vrot.slane %v970, %v985
      %v988 = vunpack.c.l.s4 1966171168
      %v989 = vunpack.c.0.s8 %v988
      %v990 = vlaneseq
      %v991 = vshrl.u32 %v990, 7
      %v992 = vsub.s32 %v989, %v991
      %v993 = vrot.slane %v971, %v992
      %v995 = vunpack.c.l.s4 1966171168
      %v996 = vunpack.c.0.s8 %v995
      %v997 = vlaneseq
      %v998 = vshrl.u32 %v997, 7
      %v999 = vsub.s32 %v996, %v998
      %v1000 = vrot.slane %v972, %v999
      %v1001 = vcombine.high %v979, %v979
      %v1002 = vcombine.high %v986, %v986
      %v1003 = vcombine.high %v993, %v993
      %v1004 = vcombine.high %v1000, %v1000
      %v1006 = vunpack.c.l.s4 1966171168
      %v1007 = vunpack.c.0.s8 %v1006
      %v1008 = vlaneseq
      %v1009 = vshrl.u32 %v1008, 7
      %v1010 = vsub.s32 %v1007, %v1009
      %v1011 = vrot.slane %v264, %v1010
      %v1012 = vcombine.high %v1011, %v1011
      %v1014 = vunpack.c.l.s4 1966171168
      %v1015 = vunpack.c.0.s8 %v1014
      %v1016 = vlaneseq
      %v1017 = vshrl.u32 %v1016, 7
      %v1018 = vsub.s32 %v1015, %v1017
      %v1019 = vrot.slane %v1011, %v1018
      %v1021 = vunpack.c.l.s4 1966171168
      %v1022 = vunpack.c.0.s8 %v1021
      %v1023 = vlaneseq
      %v1024 = vshrl.u32 %v1023, 7
      %v1025 = vsub.s32 %v1022, %v1024
      %v1026 = vrot.slane %v1012, %v1025
      %v1027 = vcombine.high %v265, %v265
      %v1029 = vunpack.c.l.s4 1966171168
      %v1030 = vunpack.c.0.s8 %v1029
      %v1031 = vlaneseq
      %v1032 = vshrl.u32 %v1031, 7
      %v1033 = vsub.s32 %v1030, %v1032
      %v1034 = vrot.slane %v265, %v1033
      %v1036 = vunpack.c.l.s4 1966171168
      %v1037 = vunpack.c.0.s8 %v1036
      %v1038 = vlaneseq
      %v1039 = vshrl.u32 %v1038, 7
      %v1040 = vsub.s32 %v1037, %v1039
      %v1041 = vrot.slane %v1027, %v1040
      %v1042 = vcombine.high %v1034, %v1034
      %v1043 = vcombine.high %v1041, %v1041
      %v1045 = vunpack.c.l.s4 1966171168
      %v1046 = vunpack.c.0.s8 %v1045
      %v1047 = vlaneseq
      %v1048 = vshrl.u32 %v1047, 7
      %v1049 = vsub.s32 %v1046, %v1048
      %v1050 = vrot.slane %v1034, %v1049
      %v1052 = vunpack.c.l.s4 1966171168
      %v1053 = vunpack.c.0.s8 %v1052
      %v1054 = vlaneseq
      %v1055 = vshrl.u32 %v1054, 7
      %v1056 = vsub.s32 %v1053, %v1055
      %v1057 = vrot.slane %v1041, %v1056
      %v1059 = vunpack.c.l.s4 1966171168
      %v1060 = vunpack.c.0.s8 %v1059
      %v1061 = vlaneseq
      %v1062 = vshrl.u32 %v1061, 7
      %v1063 = vsub.s32 %v1060, %v1062
      %v1064 = vrot.slane %v1042, %v1063
      %v1066 = vunpack.c.l.s4 1966171168
      %v1067 = vunpack.c.0.s8 %v1066
      %v1068 = vlaneseq
      %v1069 = vshrl.u32 %v1068, 7
      %v1070 = vsub.s32 %v1067, %v1069
      %v1071 = vrot.slane %v1043, %v1070
      %v1072 = vcombine.high %v1050, %v1050
      %v1073 = vcombine.high %v1057, %v1057
      %v1074 = vcombine.high %v1064, %v1064
      %v1075 = vcombine.high %v1071, %v1071
      %v1076 = vcombine.high %v266, %v266
      %v1078 = vunpack.c.l.s4 1966171168
      %v1079 = vunpack.c.0.s8 %v1078
      %v1080 = vlaneseq
      %v1081 = vshrl.u32 %v1080, 7
      %v1082 = vsub.s32 %v1079, %v1081
      %v1083 = vrot.slane %v266, %v1082
      %v1085 = vunpack.c.l.s4 1966171168
      %v1086 = vunpack.c.0.s8 %v1085
      %v1087 = vlaneseq
      %v1088 = vshrl.u32 %v1087, 7
      %v1089 = vsub.s32 %v1086, %v1088
      %v1090 = vrot.slane %v1076, %v1089
      %v1091 = vcombine.high %v1083, %v1083
      %v1092 = vcombine.high %v1090, %v1090
      %v1094 = vunpack.c.l.s4 1966171168
      %v1095 = vunpack.c.0.s8 %v1094
      %v1096 = vlaneseq
      %v1097 = vshrl.u32 %v1096, 7
      %v1098 = vsub.s32 %v1095, %v1097
      %v1099 = vrot.slane %v1083, %v1098
      %v1101 = vunpack.c.l.s4 1966171168
      %v1102 = vunpack.c.0.s8 %v1101
      %v1103 = vlaneseq
      %v1104 = vshrl.u32 %v1103, 7
      %v1105 = vsub.s32 %v1102, %v1104
      %v1106 = vrot.slane %v1090, %v1105
      %v1108 = vunpack.c.l.s4 1966171168
      %v1109 = vunpack.c.0.s8 %v1108
      %v1110 = vlaneseq
      %v1111 = vshrl.u32 %v1110, 7
      %v1112 = vsub.s32 %v1109, %v1111
      %v1113 = vrot.slane %v1091, %v1112
      %v1115 = vunpack.c.l.s4 1966171168
      %v1116 = vunpack.c.0.s8 %v1115
      %v1117 = vlaneseq
      %v1118 = vshrl.u32 %v1117, 7
      %v1119 = vsub.s32 %v1116, %v1118
      %v1120 = vrot.slane %v1092, %v1119
      %v1121 = vcombine.high %v1099, %v1099
      %v1122 = vcombine.high %v1106, %v1106
      %v1123 = vcombine.high %v1113, %v1113
      %v1124 = vcombine.high %v1120, %v1120
      %v1126 = vunpack.c.l.s4 1966171168
      %v1127 = vunpack.c.0.s8 %v1126
      %v1128 = vlaneseq
      %v1129 = vshrl.u32 %v1128, 7
      %v1130 = vsub.s32 %v1127, %v1129
      %v1131 = vrot.slane %v267, %v1130
      %v1132 = vcombine.high %v1131, %v1131
      %v1134 = vunpack.c.l.s4 1966171168
      %v1135 = vunpack.c.0.s8 %v1134
      %v1136 = vlaneseq
      %v1137 = vshrl.u32 %v1136, 7
      %v1138 = vsub.s32 %v1135, %v1137
      %v1139 = vrot.slane %v1131, %v1138
      %v1141 = vunpack.c.l.s4 1966171168
      %v1142 = vunpack.c.0.s8 %v1141
      %v1143 = vlaneseq
      %v1144 = vshrl.u32 %v1143, 7
      %v1145 = vsub.s32 %v1142, %v1144
      %v1146 = vrot.slane %v1132, %v1145
      %v1147 = vcombine.high %v268, %v268
      %v1149 = vunpack.c.l.s4 1966171168
      %v1150 = vunpack.c.0.s8 %v1149
      %v1151 = vlaneseq
      %v1152 = vshrl.u32 %v1151, 7
      %v1153 = vsub.s32 %v1150, %v1152
      %v1154 = vrot.slane %v268, %v1153
      %v1156 = vunpack.c.l.s4 1966171168
      %v1157 = vunpack.c.0.s8 %v1156
      %v1158 = vlaneseq
      %v1159 = vshrl.u32 %v1158, 7
      %v1160 = vsub.s32 %v1157, %v1159
      %v1161 = vrot.slane %v1147, %v1160
      %v1162 = vcombine.high %v1154, %v1154
      %v1163 = vcombine.high %v1161, %v1161
      %v1165 = vunpack.c.l.s4 1966171168
      %v1166 = vunpack.c.0.s8 %v1165
      %v1167 = vlaneseq
      %v1168 = vshrl.u32 %v1167, 7
      %v1169 = vsub.s32 %v1166, %v1168
      %v1170 = vrot.slane %v1154, %v1169
      %v1172 = vunpack.c.l.s4 1966171168
      %v1173 = vunpack.c.0.s8 %v1172
      %v1174 = vlaneseq
      %v1175 = vshrl.u32 %v1174, 7
      %v1176 = vsub.s32 %v1173, %v1175
      %v1177 = vrot.slane %v1161, %v1176
      %v1179 = vunpack.c.l.s4 1966171168
      %v1180 = vunpack.c.0.s8 %v1179
      %v1181 = vlaneseq
      %v1182 = vshrl.u32 %v1181, 7
      %v1183 = vsub.s32 %v1180, %v1182
      %v1184 = vrot.slane %v1162, %v1183
      %v1186 = vunpack.c.l.s4 1966171168
      %v1187 = vunpack.c.0.s8 %v1186
      %v1188 = vlaneseq
      %v1189 = vshrl.u32 %v1188, 7
      %v1190 = vsub.s32 %v1187, %v1189
      %v1191 = vrot.slane %v1163, %v1190
      %v1192 = vcombine.high %v1170, %v1170
      %v1193 = vcombine.high %v1177, %v1177
      %v1194 = vcombine.high %v1184, %v1184
      %v1195 = vcombine.high %v1191, %v1191
      %v1196 = vcombine.high %v269, %v269
      %v1198 = vunpack.c.l.s4 1966171168
      %v1199 = vunpack.c.0.s8 %v1198
      %v1200 = vlaneseq
      %v1201 = vshrl.u32 %v1200, 7
      %v1202 = vsub.s32 %v1199, %v1201
      %v1203 = vrot.slane %v269, %v1202
      %v1205 = vunpack.c.l.s4 1966171168
      %v1206 = vunpack.c.0.s8 %v1205
      %v1207 = vlaneseq
      %v1208 = vshrl.u32 %v1207, 7
      %v1209 = vsub.s32 %v1206, %v1208
      %v1210 = vrot.slane %v1196, %v1209
      %v1211 = vcombine.high %v1203, %v1203
      %v1212 = vcombine.high %v1210, %v1210
      %v1214 = vunpack.c.l.s4 1966171168
      %v1215 = vunpack.c.0.s8 %v1214
      %v1216 = vlaneseq
      %v1217 = vshrl.u32 %v1216, 7
      %v1218 = vsub.s32 %v1215, %v1217
      %v1219 = vrot.slane %v1203, %v1218
      %v1221 = vunpack.c.l.s4 1966171168
      %v1222 = vunpack.c.0.s8 %v1221
      %v1223 = vlaneseq
      %v1224 = vshrl.u32 %v1223, 7
      %v1225 = vsub.s32 %v1222, %v1224
      %v1226 = vrot.slane %v1210, %v1225
      %v1228 = vunpack.c.l.s4 1966171168
      %v1229 = vunpack.c.0.s8 %v1228
      %v1230 = vlaneseq
      %v1231 = vshrl.u32 %v1230, 7
      %v1232 = vsub.s32 %v1229, %v1231
      %v1233 = vrot.slane %v1211, %v1232
      %v1235 = vunpack.c.l.s4 1966171168
      %v1236 = vunpack.c.0.s8 %v1235
      %v1237 = vlaneseq
      %v1238 = vshrl.u32 %v1237, 7
      %v1239 = vsub.s32 %v1236, %v1238
      %v1240 = vrot.slane %v1212, %v1239
      %v1241 = vcombine.high %v1219, %v1219
      %v1242 = vcombine.high %v1226, %v1226
      %v1243 = vcombine.high %v1233, %v1233
      %v1244 = vcombine.high %v1240, %v1240
      %v1246 = vunpack.c.l.s4 1966171168
      %v1247 = vunpack.c.0.s8 %v1246
      %v1248 = vlaneseq
      %v1249 = vshrl.u32 %v1248, 7
      %v1250 = vsub.s32 %v1247, %v1249
      %v1251 = vrot.slane %v270, %v1250
      %v1252 = vcombine.high %v1251, %v1251
      %v1254 = vunpack.c.l.s4 1966171168
      %v1255 = vunpack.c.0.s8 %v1254
      %v1256 = vlaneseq
      %v1257 = vshrl.u32 %v1256, 7
      %v1258 = vsub.s32 %v1255, %v1257
      %v1259 = vrot.slane %v1251, %v1258
      %v1261 = vunpack.c.l.s4 1966171168
      %v1262 = vunpack.c.0.s8 %v1261
      %v1263 = vlaneseq
      %v1264 = vshrl.u32 %v1263, 7
      %v1265 = vsub.s32 %v1262, %v1264
      %v1266 = vrot.slane %v1252, %v1265
      %v1267 = vcombine.high %v271, %v271
      %v1269 = vunpack.c.l.s4 1966171168
      %v1270 = vunpack.c.0.s8 %v1269
      %v1271 = vlaneseq
      %v1272 = vshrl.u32 %v1271, 7
      %v1273 = vsub.s32 %v1270, %v1272
      %v1274 = vrot.slane %v271, %v1273
      %v1276 = vunpack.c.l.s4 1966171168
      %v1277 = vunpack.c.0.s8 %v1276
      %v1278 = vlaneseq
      %v1279 = vshrl.u32 %v1278, 7
      %v1280 = vsub.s32 %v1277, %v1279
      %v1281 = vrot.slane %v1267, %v1280
      %v1282 = vcombine.high %v1274, %v1274
      %v1283 = vcombine.high %v1281, %v1281
      %v1285 = vunpack.c.l.s4 1966171168
      %v1286 = vunpack.c.0.s8 %v1285
      %v1287 = vlaneseq
      %v1288 = vshrl.u32 %v1287, 7
      %v1289 = vsub.s32 %v1286, %v1288
      %v1290 = vrot.slane %v1274, %v1289
      %v1292 = vunpack.c.l.s4 1966171168
      %v1293 = vunpack.c.0.s8 %v1292
      %v1294 = vlaneseq
      %v1295 = vshrl.u32 %v1294, 7
      %v1296 = vsub.s32 %v1293, %v1295
      %v1297 = vrot.slane %v1281, %v1296
      %v1299 = vunpack.c.l.s4 1966171168
      %v1300 = vunpack.c.0.s8 %v1299
      %v1301 = vlaneseq
      %v1302 = vshrl.u32 %v1301, 7
      %v1303 = vsub.s32 %v1300, %v1302
      %v1304 = vrot.slane %v1282, %v1303
      %v1306 = vunpack.c.l.s4 1966171168
      %v1307 = vunpack.c.0.s8 %v1306
      %v1308 = vlaneseq
      %v1309 = vshrl.u32 %v1308, 7
      %v1310 = vsub.s32 %v1307, %v1309
      %v1311 = vrot.slane %v1283, %v1310
      %v1312 = vcombine.high %v1290, %v1290
      %v1313 = vcombine.high %v1297, %v1297
      %v1314 = vcombine.high %v1304, %v1304
      %v1315 = vcombine.high %v1311, %v1311
      %v1316 = vcombine.high %v272, %v272
      %v1318 = vunpack.c.l.s4 1966171168
      %v1319 = vunpack.c.0.s8 %v1318
      %v1320 = vlaneseq
      %v1321 = vshrl.u32 %v1320, 7
      %v1322 = vsub.s32 %v1319, %v1321
      %v1323 = vrot.slane %v272, %v1322
      %v1325 = vunpack.c.l.s4 1966171168
      %v1326 = vunpack.c.0.s8 %v1325
      %v1327 = vlaneseq
      %v1328 = vshrl.u32 %v1327, 7
      %v1329 = vsub.s32 %v1326, %v1328
      %v1330 = vrot.slane %v1316, %v1329
      %v1331 = vcombine.high %v1323, %v1323
      %v1332 = vcombine.high %v1330, %v1330
      %v1334 = vunpack.c.l.s4 1966171168
      %v1335 = vunpack.c.0.s8 %v1334
      %v1336 = vlaneseq
      %v1337 = vshrl.u32 %v1336, 7
      %v1338 = vsub.s32 %v1335, %v1337
      %v1339 = vrot.slane %v1323, %v1338
      %v1341 = vunpack.c.l.s4 1966171168
      %v1342 = vunpack.c.0.s8 %v1341
      %v1343 = vlaneseq
      %v1344 = vshrl.u32 %v1343, 7
      %v1345 = vsub.s32 %v1342, %v1344
      %v1346 = vrot.slane %v1330, %v1345
      %v1348 = vunpack.c.l.s4 1966171168
      %v1349 = vunpack.c.0.s8 %v1348
      %v1350 = vlaneseq
      %v1351 = vshrl.u32 %v1350, 7
      %v1352 = vsub.s32 %v1349, %v1351
      %v1353 = vrot.slane %v1331, %v1352
      %v1355 = vunpack.c.l.s4 1966171168
      %v1356 = vunpack.c.0.s8 %v1355
      %v1357 = vlaneseq
      %v1358 = vshrl.u32 %v1357, 7
      %v1359 = vsub.s32 %v1356, %v1358
      %v1360 = vrot.slane %v1332, %v1359
      %v1361 = vcombine.high %v1339, %v1339
      %v1362 = vcombine.high %v1346, %v1346
      %v1363 = vcombine.high %v1353, %v1353
      %v1364 = vcombine.high %v1360, %v1360
      %v1366 = vunpack.c.l.s4 1966171168
      %v1367 = vunpack.c.0.s8 %v1366
      %v1368 = vlaneseq
      %v1369 = vshrl.u32 %v1368, 7
      %v1370 = vsub.s32 %v1367, %v1369
      %v1371 = vrot.slane %v273, %v1370
      %v1372 = vcombine.high %v1371, %v1371
      %v1374 = vunpack.c.l.s4 1966171168
      %v1375 = vunpack.c.0.s8 %v1374
      %v1376 = vlaneseq
      %v1377 = vshrl.u32 %v1376, 7
      %v1378 = vsub.s32 %v1375, %v1377
      %v1379 = vrot.slane %v1371, %v1378
      %v1381 = vunpack.c.l.s4 1966171168
      %v1382 = vunpack.c.0.s8 %v1381
      %v1383 = vlaneseq
      %v1384 = vshrl.u32 %v1383, 7
      %v1385 = vsub.s32 %v1382, %v1384
      %v1386 = vrot.slane %v1372, %v1385
      %v1387 = vcombine.high %v274, %v274
      %v1389 = vunpack.c.l.s4 1966171168
      %v1390 = vunpack.c.0.s8 %v1389
      %v1391 = vlaneseq
      %v1392 = vshrl.u32 %v1391, 7
      %v1393 = vsub.s32 %v1390, %v1392
      %v1394 = vrot.slane %v274, %v1393
      %v1396 = vunpack.c.l.s4 1966171168
      %v1397 = vunpack.c.0.s8 %v1396
      %v1398 = vlaneseq
      %v1399 = vshrl.u32 %v1398, 7
      %v1400 = vsub.s32 %v1397, %v1399
      %v1401 = vrot.slane %v1387, %v1400
      %v1402 = vcombine.high %v1394, %v1394
      %v1403 = vcombine.high %v1401, %v1401
      %v1405 = vunpack.c.l.s4 1966171168
      %v1406 = vunpack.c.0.s8 %v1405
      %v1407 = vlaneseq
      %v1408 = vshrl.u32 %v1407, 7
      %v1409 = vsub.s32 %v1406, %v1408
      %v1410 = vrot.slane %v1394, %v1409
      %v1412 = vunpack.c.l.s4 1966171168
      %v1413 = vunpack.c.0.s8 %v1412
      %v1414 = vlaneseq
      %v1415 = vshrl.u32 %v1414, 7
      %v1416 = vsub.s32 %v1413, %v1415
      %v1417 = vrot.slane %v1401, %v1416
      %v1419 = vunpack.c.l.s4 1966171168
      %v1420 = vunpack.c.0.s8 %v1419
      %v1421 = vlaneseq
      %v1422 = vshrl.u32 %v1421, 7
      %v1423 = vsub.s32 %v1420, %v1422
      %v1424 = vrot.slane %v1402, %v1423
      %v1426 = vunpack.c.l.s4 1966171168
      %v1427 = vunpack.c.0.s8 %v1426
      %v1428 = vlaneseq
      %v1429 = vshrl.u32 %v1428, 7
      %v1430 = vsub.s32 %v1427, %v1429
      %v1431 = vrot.slane %v1403, %v1430
      %v1432 = vcombine.high %v1410, %v1410
      %v1433 = vcombine.high %v1417, %v1417
      %v1434 = vcombine.high %v1424, %v1424
      %v1435 = vcombine.high %v1431, %v1431
      %v1436 = vcombine.high %v275, %v275
      %v1438 = vunpack.c.l.s4 1966171168
      %v1439 = vunpack.c.0.s8 %v1438
      %v1440 = vlaneseq
      %v1441 = vshrl.u32 %v1440, 7
      %v1442 = vsub.s32 %v1439, %v1441
      %v1443 = vrot.slane %v275, %v1442
      %v1445 = vunpack.c.l.s4 1966171168
      %v1446 = vunpack.c.0.s8 %v1445
      %v1447 = vlaneseq
      %v1448 = vshrl.u32 %v1447, 7
      %v1449 = vsub.s32 %v1446, %v1448
      %v1450 = vrot.slane %v1436, %v1449
      %v1451 = vcombine.high %v1443, %v1443
      %v1452 = vcombine.high %v1450, %v1450
      %v1454 = vunpack.c.l.s4 1966171168
      %v1455 = vunpack.c.0.s8 %v1454
      %v1456 = vlaneseq
      %v1457 = vshrl.u32 %v1456, 7
      %v1458 = vsub.s32 %v1455, %v1457
      %v1459 = vrot.slane %v1443, %v1458
      %v1461 = vunpack.c.l.s4 1966171168
      %v1462 = vunpack.c.0.s8 %v1461
      %v1463 = vlaneseq
      %v1464 = vshrl.u32 %v1463, 7
      %v1465 = vsub.s32 %v1462, %v1464
      %v1466 = vrot.slane %v1450, %v1465
      %v1468 = vunpack.c.l.s4 1966171168
      %v1469 = vunpack.c.0.s8 %v1468
      %v1470 = vlaneseq
      %v1471 = vshrl.u32 %v1470, 7
      %v1472 = vsub.s32 %v1469, %v1471
      %v1473 = vrot.slane %v1451, %v1472
      %v1475 = vunpack.c.l.s4 1966171168
      %v1476 = vunpack.c.0.s8 %v1475
      %v1477 = vlaneseq
      %v1478 = vshrl.u32 %v1477, 7
      %v1479 = vsub.s32 %v1476, %v1478
      %v1480 = vrot.slane %v1452, %v1479
      %v1481 = vcombine.high %v1459, %v1459
      %v1482 = vcombine.high %v1466, %v1466
      %v1483 = vcombine.high %v1473, %v1473
      %v1484 = vcombine.high %v1480, %v1480
      %v1486 = vunpack.c.l.s4 1966171168
      %v1487 = vunpack.c.0.s8 %v1486
      %v1488 = vlaneseq
      %v1489 = vshrl.u32 %v1488, 7
      %v1490 = vsub.s32 %v1487, %v1489
      %v1491 = vrot.slane %v276, %v1490
      %v1492 = vcombine.high %v1491, %v1491
      %v1494 = vunpack.c.l.s4 1966171168
      %v1495 = vunpack.c.0.s8 %v1494
      %v1496 = vlaneseq
      %v1497 = vshrl.u32 %v1496, 7
      %v1498 = vsub.s32 %v1495, %v1497
      %v1499 = vrot.slane %v1491, %v1498
      %v1501 = vunpack.c.l.s4 1966171168
      %v1502 = vunpack.c.0.s8 %v1501
      %v1503 = vlaneseq
      %v1504 = vshrl.u32 %v1503, 7
      %v1505 = vsub.s32 %v1502, %v1504
      %v1506 = vrot.slane %v1492, %v1505
      %v1507 = vlaneseq
      %v1508 = vshrl.u32 %v1507, 7
      %v1509 = vsub.s32 0, %v1508
      %v1510 = vrot.slane %v320, %v1509
      %v1511 = vlaneseq
      %v1512 = vshrl.u32 %v1511, 7
      %v1513 = vsub.s32 0, %v1512
      %v1514 = vrot.slane %v372, %v1513
      %v1515 = vlaneseq
      %v1516 = vshrl.u32 %v1515, 7
      %v1517 = vsub.s32 0, %v1516
      %v1518 = vrot.slane %v380, %v1517
      %v1519 = vlaneseq
      %v1520 = vshrl.u32 %v1519, 7
      %v1521 = vsub.s32 0, %v1520
      %v1522 = vrot.slane %v382, %v1521
      %v1523 = vlaneseq
      %v1524 = vshrl.u32 %v1523, 7
      %v1525 = vsub.s32 0, %v1524
      %v1526 = vrot.slane %v365, %v1525
      %v1527 = vlaneseq
      %v1528 = vshrl.u32 %v1527, 7
      %v1529 = vsub.s32 0, %v1528
      %v1530 = vrot.slane %v379, %v1529
      %v1531 = vlaneseq
      %v1532 = vshrl.u32 %v1531, 7
      %v1533 = vsub.s32 0, %v1532
      %v1534 = vrot.slane %v381, %v1533
      %v1535 = vlaneseq
      %v1536 = vshrl.u32 %v1535, 7
      %v1537 = vsub.s32 0, %v1536
      %v1538 = vrot.slane %v383, %v1537
      %v1539 = vlaneseq
      %v1540 = vshrl.u32 %v1539, 7
      %v1541 = vsub.s32 0, %v1540
      %v1542 = vrot.slane %v334, %v1541
      %v1543 = vlaneseq
      %v1544 = vshrl.u32 %v1543, 7
      %v1545 = vsub.s32 0, %v1544
      %v1546 = vrot.slane %v407, %v1545
      %v1547 = vlaneseq
      %v1548 = vshrl.u32 %v1547, 7
      %v1549 = vsub.s32 0, %v1548
      %v1550 = vrot.slane %v415, %v1549
      %v1551 = vlaneseq
      %v1552 = vshrl.u32 %v1551, 7
      %v1553 = vsub.s32 0, %v1552
      %v1554 = vrot.slane %v417, %v1553
      %v1555 = vlaneseq
      %v1556 = vshrl.u32 %v1555, 7
      %v1557 = vsub.s32 0, %v1556
      %v1558 = vrot.slane %v400, %v1557
      %v1559 = vlaneseq
      %v1560 = vshrl.u32 %v1559, 7
      %v1561 = vsub.s32 0, %v1560
      %v1562 = vrot.slane %v414, %v1561
      %v1563 = vlaneseq
      %v1564 = vshrl.u32 %v1563, 7
      %v1565 = vsub.s32 0, %v1564
      %v1566 = vrot.slane %v416, %v1565
      %v1567 = vlaneseq
      %v1568 = vshrl.u32 %v1567, 7
      %v1569 = vsub.s32 0, %v1568
      %v1570 = vrot.slane %v418, %v1569
      %v1571 = vlaneseq
      %v1572 = vshrl.u32 %v1571, 7
      %v1573 = vsub.s32 0, %v1572
      %v1574 = vrot.slane %v348, %v1573
      %v1575 = vlaneseq
      %v1576 = vshrl.u32 %v1575, 7
      %v1577 = vsub.s32 0, %v1576
      %v1578 = vrot.slane %v426, %v1577
      %v1579 = vlaneseq
      %v1580 = vshrl.u32 %v1579, 7
      %v1581 = vsub.s32 0, %v1580
      %v1582 = vrot.slane %v450, %v1581
      %v1583 = vlaneseq
      %v1584 = vshrl.u32 %v1583, 7
      %v1585 = vsub.s32 0, %v1584
      %v1586 = vrot.slane %v464, %v1585
      %v1587 = vlaneseq
      %v1588 = vshrl.u32 %v1587, 7
      %v1589 = vsub.s32 0, %v1588
      %v1590 = vrot.slane %v472, %v1589
      %v1591 = vlaneseq
      %v1592 = vshrl.u32 %v1591, 7
      %v1593 = vsub.s32 0, %v1592
      %v1594 = vrot.slane %v474, %v1593
      %v1595 = vlaneseq
      %v1596 = vshrl.u32 %v1595, 7
      %v1597 = vsub.s32 0, %v1596
      %v1598 = vrot.slane %v457, %v1597
      %v1599 = vlaneseq
      %v1600 = vshrl.u32 %v1599, 7
      %v1601 = vsub.s32 0, %v1600
      %v1602 = vrot.slane %v471, %v1601
      %v1603 = vlaneseq
      %v1604 = vshrl.u32 %v1603, 7
      %v1605 = vsub.s32 0, %v1604
      %v1606 = vrot.slane %v473, %v1605
      %v1607 = vlaneseq
      %v1608 = vshrl.u32 %v1607, 7
      %v1609 = vsub.s32 0, %v1608
      %v1610 = vrot.slane %v475, %v1609
      %v1611 = vlaneseq
      %v1612 = vshrl.u32 %v1611, 7
      %v1613 = vsub.s32 0, %v1612
      %v1614 = vrot.slane %v499, %v1613
      %v1615 = vlaneseq
      %v1616 = vshrl.u32 %v1615, 7
      %v1617 = vsub.s32 0, %v1616
      %v1618 = vrot.slane %v513, %v1617
      %v1619 = vlaneseq
      %v1620 = vshrl.u32 %v1619, 7
      %v1621 = vsub.s32 0, %v1620
      %v1622 = vrot.slane %v521, %v1621
      %v1623 = vlaneseq
      %v1624 = vshrl.u32 %v1623, 7
      %v1625 = vsub.s32 0, %v1624
      %v1626 = vrot.slane %v523, %v1625
      %v1627 = vlaneseq
      %v1628 = vshrl.u32 %v1627, 7
      %v1629 = vsub.s32 0, %v1628
      %v1630 = vrot.slane %v506, %v1629
      %v1631 = vlaneseq
      %v1632 = vshrl.u32 %v1631, 7
      %v1633 = vsub.s32 0, %v1632
      %v1634 = vrot.slane %v520, %v1633
      %v1635 = vlaneseq
      %v1636 = vshrl.u32 %v1635, 7
      %v1637 = vsub.s32 0, %v1636
      %v1638 = vrot.slane %v522, %v1637
      %v1639 = vlaneseq
      %v1640 = vshrl.u32 %v1639, 7
      %v1641 = vsub.s32 0, %v1640
      %v1642 = vrot.slane %v524, %v1641
      %v1643 = vlaneseq
      %v1644 = vshrl.u32 %v1643, 7
      %v1645 = vsub.s32 0, %v1644
      %v1646 = vrot.slane %v539, %v1645
      %v1647 = vlaneseq
      %v1648 = vshrl.u32 %v1647, 7
      %v1649 = vsub.s32 0, %v1648
      %v1650 = vrot.slane %v546, %v1649
      %v1651 = vlaneseq
      %v1652 = vshrl.u32 %v1651, 7
      %v1653 = vsub.s32 0, %v1652
      %v1654 = vrot.slane %v570, %v1653
      %v1655 = vlaneseq
      %v1656 = vshrl.u32 %v1655, 7
      %v1657 = vsub.s32 0, %v1656
      %v1658 = vrot.slane %v584, %v1657
      %v1659 = vlaneseq
      %v1660 = vshrl.u32 %v1659, 7
      %v1661 = vsub.s32 0, %v1660
      %v1662 = vrot.slane %v592, %v1661
      %v1663 = vlaneseq
      %v1664 = vshrl.u32 %v1663, 7
      %v1665 = vsub.s32 0, %v1664
      %v1666 = vrot.slane %v594, %v1665
      %v1667 = vlaneseq
      %v1668 = vshrl.u32 %v1667, 7
      %v1669 = vsub.s32 0, %v1668
      %v1670 = vrot.slane %v577, %v1669
      %v1671 = vlaneseq
      %v1672 = vshrl.u32 %v1671, 7
      %v1673 = vsub.s32 0, %v1672
      %v1674 = vrot.slane %v591, %v1673
      %v1675 = vlaneseq
      %v1676 = vshrl.u32 %v1675, 7
      %v1677 = vsub.s32 0, %v1676
      %v1678 = vrot.slane %v593, %v1677
      %v1679 = vlaneseq
      %v1680 = vshrl.u32 %v1679, 7
      %v1681 = vsub.s32 0, %v1680
      %v1682 = vrot.slane %v595, %v1681
      %v1683 = vlaneseq
      %v1684 = vshrl.u32 %v1683, 7
      %v1685 = vsub.s32 0, %v1684
      %v1686 = vrot.slane %v619, %v1685
      %v1687 = vlaneseq
      %v1688 = vshrl.u32 %v1687, 7
      %v1689 = vsub.s32 0, %v1688
      %v1690 = vrot.slane %v633, %v1689
      %v1691 = vlaneseq
      %v1692 = vshrl.u32 %v1691, 7
      %v1693 = vsub.s32 0, %v1692
      %v1694 = vrot.slane %v641, %v1693
      %v1695 = vlaneseq
      %v1696 = vshrl.u32 %v1695, 7
      %v1697 = vsub.s32 0, %v1696
      %v1698 = vrot.slane %v643, %v1697
      %v1699 = vlaneseq
      %v1700 = vshrl.u32 %v1699, 7
      %v1701 = vsub.s32 0, %v1700
      %v1702 = vrot.slane %v626, %v1701
      %v1703 = vlaneseq
      %v1704 = vshrl.u32 %v1703, 7
      %v1705 = vsub.s32 0, %v1704
      %v1706 = vrot.slane %v640, %v1705
      %v1707 = vlaneseq
      %v1708 = vshrl.u32 %v1707, 7
      %v1709 = vsub.s32 0, %v1708
      %v1710 = vrot.slane %v642, %v1709
      %v1711 = vlaneseq
      %v1712 = vshrl.u32 %v1711, 7
      %v1713 = vsub.s32 0, %v1712
      %v1714 = vrot.slane %v644, %v1713
      %v1715 = vlaneseq
      %v1716 = vshrl.u32 %v1715, 7
      %v1717 = vsub.s32 0, %v1716
      %v1718 = vrot.slane %v659, %v1717
      %v1719 = vlaneseq
      %v1720 = vshrl.u32 %v1719, 7
      %v1721 = vsub.s32 0, %v1720
      %v1722 = vrot.slane %v666, %v1721
      %v1723 = vlaneseq
      %v1724 = vshrl.u32 %v1723, 7
      %v1725 = vsub.s32 0, %v1724
      %v1726 = vrot.slane %v690, %v1725
      %v1727 = vlaneseq
      %v1728 = vshrl.u32 %v1727, 7
      %v1729 = vsub.s32 0, %v1728
      %v1730 = vrot.slane %v704, %v1729
      %v1731 = vlaneseq
      %v1732 = vshrl.u32 %v1731, 7
      %v1733 = vsub.s32 0, %v1732
      %v1734 = vrot.slane %v712, %v1733
      %v1735 = vlaneseq
      %v1736 = vshrl.u32 %v1735, 7
      %v1737 = vsub.s32 0, %v1736
      %v1738 = vrot.slane %v714, %v1737
      %v1739 = vlaneseq
      %v1740 = vshrl.u32 %v1739, 7
      %v1741 = vsub.s32 0, %v1740
      %v1742 = vrot.slane %v697, %v1741
      %v1743 = vlaneseq
      %v1744 = vshrl.u32 %v1743, 7
      %v1745 = vsub.s32 0, %v1744
      %v1746 = vrot.slane %v711, %v1745
      %v1747 = vlaneseq
      %v1748 = vshrl.u32 %v1747, 7
      %v1749 = vsub.s32 0, %v1748
      %v1750 = vrot.slane %v713, %v1749
      %v1751 = vlaneseq
      %v1752 = vshrl.u32 %v1751, 7
      %v1753 = vsub.s32 0, %v1752
      %v1754 = vrot.slane %v715, %v1753
      %v1755 = vlaneseq
      %v1756 = vshrl.u32 %v1755, 7
      %v1757 = vsub.s32 0, %v1756
      %v1758 = vrot.slane %v739, %v1757
      %v1759 = vlaneseq
      %v1760 = vshrl.u32 %v1759, 7
      %v1761 = vsub.s32 0, %v1760
      %v1762 = vrot.slane %v753, %v1761
      %v1763 = vlaneseq
      %v1764 = vshrl.u32 %v1763, 7
      %v1765 = vsub.s32 0, %v1764
      %v1766 = vrot.slane %v761, %v1765
      %v1767 = vlaneseq
      %v1768 = vshrl.u32 %v1767, 7
      %v1769 = vsub.s32 0, %v1768
      %v1770 = vrot.slane %v763, %v1769
      %v1771 = vlaneseq
      %v1772 = vshrl.u32 %v1771, 7
      %v1773 = vsub.s32 0, %v1772
      %v1774 = vrot.slane %v746, %v1773
      %v1775 = vlaneseq
      %v1776 = vshrl.u32 %v1775, 7
      %v1777 = vsub.s32 0, %v1776
      %v1778 = vrot.slane %v760, %v1777
      %v1779 = vlaneseq
      %v1780 = vshrl.u32 %v1779, 7
      %v1781 = vsub.s32 0, %v1780
      %v1782 = vrot.slane %v762, %v1781
      %v1783 = vlaneseq
      %v1784 = vshrl.u32 %v1783, 7
      %v1785 = vsub.s32 0, %v1784
      %v1786 = vrot.slane %v764, %v1785
      %v1787 = vlaneseq
      %v1788 = vshrl.u32 %v1787, 7
      %v1789 = vsub.s32 0, %v1788
      %v1790 = vrot.slane %v779, %v1789
      %v1791 = vlaneseq
      %v1792 = vshrl.u32 %v1791, 7
      %v1793 = vsub.s32 0, %v1792
      %v1794 = vrot.slane %v786, %v1793
      %v1795 = vlaneseq
      %v1796 = vshrl.u32 %v1795, 7
      %v1797 = vsub.s32 0, %v1796
      %v1798 = vrot.slane %v810, %v1797
      %v1799 = vlaneseq
      %v1800 = vshrl.u32 %v1799, 7
      %v1801 = vsub.s32 0, %v1800
      %v1802 = vrot.slane %v824, %v1801
      %v1803 = vlaneseq
      %v1804 = vshrl.u32 %v1803, 7
      %v1805 = vsub.s32 0, %v1804
      %v1806 = vrot.slane %v832, %v1805
      %v1807 = vlaneseq
      %v1808 = vshrl.u32 %v1807, 7
      %v1809 = vsub.s32 0, %v1808
      %v1810 = vrot.slane %v834, %v1809
      %v1811 = vlaneseq
      %v1812 = vshrl.u32 %v1811, 7
      %v1813 = vsub.s32 0, %v1812
      %v1814 = vrot.slane %v817, %v1813
      %v1815 = vlaneseq
      %v1816 = vshrl.u32 %v1815, 7
      %v1817 = vsub.s32 0, %v1816
      %v1818 = vrot.slane %v831, %v1817
      %v1819 = vlaneseq
      %v1820 = vshrl.u32 %v1819, 7
      %v1821 = vsub.s32 0, %v1820
      %v1822 = vrot.slane %v833, %v1821
      %v1823 = vlaneseq
      %v1824 = vshrl.u32 %v1823, 7
      %v1825 = vsub.s32 0, %v1824
      %v1826 = vrot.slane %v835, %v1825
      %v1827 = vlaneseq
      %v1828 = vshrl.u32 %v1827, 7
      %v1829 = vsub.s32 0, %v1828
      %v1830 = vrot.slane %v859, %v1829
      %v1831 = vlaneseq
      %v1832 = vshrl.u32 %v1831, 7
      %v1833 = vsub.s32 0, %v1832
      %v1834 = vrot.slane %v873, %v1833
      %v1835 = vlaneseq
      %v1836 = vshrl.u32 %v1835, 7
      %v1837 = vsub.s32 0, %v1836
      %v1838 = vrot.slane %v881, %v1837
      %v1839 = vlaneseq
      %v1840 = vshrl.u32 %v1839, 7
      %v1841 = vsub.s32 0, %v1840
      %v1842 = vrot.slane %v883, %v1841
      %v1843 = vlaneseq
      %v1844 = vshrl.u32 %v1843, 7
      %v1845 = vsub.s32 0, %v1844
      %v1846 = vrot.slane %v866, %v1845
      %v1847 = vlaneseq
      %v1848 = vshrl.u32 %v1847, 7
      %v1849 = vsub.s32 0, %v1848
      %v1850 = vrot.slane %v880, %v1849
      %v1851 = vlaneseq
      %v1852 = vshrl.u32 %v1851, 7
      %v1853 = vsub.s32 0, %v1852
      %v1854 = vrot.slane %v882, %v1853
      %v1855 = vlaneseq
      %v1856 = vshrl.u32 %v1855, 7
      %v1857 = vsub.s32 0, %v1856
      %v1858 = vrot.slane %v884, %v1857
      %v1859 = vlaneseq
      %v1860 = vshrl.u32 %v1859, 7
      %v1861 = vsub.s32 0, %v1860
      %v1862 = vrot.slane %v899, %v1861
      %v1863 = vlaneseq
      %v1864 = vshrl.u32 %v1863, 7
      %v1865 = vsub.s32 0, %v1864
      %v1866 = vrot.slane %v906, %v1865
      %v1867 = vlaneseq
      %v1868 = vshrl.u32 %v1867, 7
      %v1869 = vsub.s32 0, %v1868
      %v1870 = vrot.slane %v930, %v1869
      %v1871 = vlaneseq
      %v1872 = vshrl.u32 %v1871, 7
      %v1873 = vsub.s32 0, %v1872
      %v1874 = vrot.slane %v944, %v1873
      %v1875 = vlaneseq
      %v1876 = vshrl.u32 %v1875, 7
      %v1877 = vsub.s32 0, %v1876
      %v1878 = vrot.slane %v952, %v1877
      %v1879 = vlaneseq
      %v1880 = vshrl.u32 %v1879, 7
      %v1881 = vsub.s32 0, %v1880
      %v1882 = vrot.slane %v954, %v1881
      %v1883 = vlaneseq
      %v1884 = vshrl.u32 %v1883, 7
      %v1885 = vsub.s32 0, %v1884
      %v1886 = vrot.slane %v937, %v1885
      %v1887 = vlaneseq
      %v1888 = vshrl.u32 %v1887, 7
      %v1889 = vsub.s32 0, %v1888
      %v1890 = vrot.slane %v951, %v1889
      %v1891 = vlaneseq
      %v1892 = vshrl.u32 %v1891, 7
      %v1893 = vsub.s32 0, %v1892
      %v1894 = vrot.slane %v953, %v1893
      %v1895 = vlaneseq
      %v1896 = vshrl.u32 %v1895, 7
      %v1897 = vsub.s32 0, %v1896
      %v1898 = vrot.slane %v955, %v1897
      %v1899 = vlaneseq
      %v1900 = vshrl.u32 %v1899, 7
      %v1901 = vsub.s32 0, %v1900
      %v1902 = vrot.slane %v979, %v1901
      %v1903 = vlaneseq
      %v1904 = vshrl.u32 %v1903, 7
      %v1905 = vsub.s32 0, %v1904
      %v1906 = vrot.slane %v993, %v1905
      %v1907 = vlaneseq
      %v1908 = vshrl.u32 %v1907, 7
      %v1909 = vsub.s32 0, %v1908
      %v1910 = vrot.slane %v1001, %v1909
      %v1911 = vlaneseq
      %v1912 = vshrl.u32 %v1911, 7
      %v1913 = vsub.s32 0, %v1912
      %v1914 = vrot.slane %v1003, %v1913
      %v1915 = vlaneseq
      %v1916 = vshrl.u32 %v1915, 7
      %v1917 = vsub.s32 0, %v1916
      %v1918 = vrot.slane %v986, %v1917
      %v1919 = vlaneseq
      %v1920 = vshrl.u32 %v1919, 7
      %v1921 = vsub.s32 0, %v1920
      %v1922 = vrot.slane %v1000, %v1921
      %v1923 = vlaneseq
      %v1924 = vshrl.u32 %v1923, 7
      %v1925 = vsub.s32 0, %v1924
      %v1926 = vrot.slane %v1002, %v1925
      %v1927 = vlaneseq
      %v1928 = vshrl.u32 %v1927, 7
      %v1929 = vsub.s32 0, %v1928
      %v1930 = vrot.slane %v1004, %v1929
      %v1931 = vlaneseq
      %v1932 = vshrl.u32 %v1931, 7
      %v1933 = vsub.s32 0, %v1932
      %v1934 = vrot.slane %v1019, %v1933
      %v1935 = vlaneseq
      %v1936 = vshrl.u32 %v1935, 7
      %v1937 = vsub.s32 0, %v1936
      %v1938 = vrot.slane %v1026, %v1937
      %v1939 = vlaneseq
      %v1940 = vshrl.u32 %v1939, 7
      %v1941 = vsub.s32 0, %v1940
      %v1942 = vrot.slane %v1050, %v1941
      %v1943 = vlaneseq
      %v1944 = vshrl.u32 %v1943, 7
      %v1945 = vsub.s32 0, %v1944
      %v1946 = vrot.slane %v1064, %v1945
      %v1947 = vlaneseq
      %v1948 = vshrl.u32 %v1947, 7
      %v1949 = vsub.s32 0, %v1948
      %v1950 = vrot.slane %v1072, %v1949
      %v1951 = vlaneseq
      %v1952 = vshrl.u32 %v1951, 7
      %v1953 = vsub.s32 0, %v1952
      %v1954 = vrot.slane %v1074, %v1953
      %v1955 = vlaneseq
      %v1956 = vshrl.u32 %v1955, 7
      %v1957 = vsub.s32 0, %v1956
      %v1958 = vrot.slane %v1057, %v1957
      %v1959 = vlaneseq
      %v1960 = vshrl.u32 %v1959, 7
      %v1961 = vsub.s32 0, %v1960
      %v1962 = vrot.slane %v1071, %v1961
      %v1963 = vlaneseq
      %v1964 = vshrl.u32 %v1963, 7
      %v1965 = vsub.s32 0, %v1964
      %v1966 = vrot.slane %v1073, %v1965
      %v1967 = vlaneseq
      %v1968 = vshrl.u32 %v1967, 7
      %v1969 = vsub.s32 0, %v1968
      %v1970 = vrot.slane %v1075, %v1969
      %v1971 = vlaneseq
      %v1972 = vshrl.u32 %v1971, 7
      %v1973 = vsub.s32 0, %v1972
      %v1974 = vrot.slane %v1099, %v1973
      %v1975 = vlaneseq
      %v1976 = vshrl.u32 %v1975, 7
      %v1977 = vsub.s32 0, %v1976
      %v1978 = vrot.slane %v1113, %v1977
      %v1979 = vlaneseq
      %v1980 = vshrl.u32 %v1979, 7
      %v1981 = vsub.s32 0, %v1980
      %v1982 = vrot.slane %v1121, %v1981
      %v1983 = vlaneseq
      %v1984 = vshrl.u32 %v1983, 7
      %v1985 = vsub.s32 0, %v1984
      %v1986 = vrot.slane %v1123, %v1985
      %v1987 = vlaneseq
      %v1988 = vshrl.u32 %v1987, 7
      %v1989 = vsub.s32 0, %v1988
      %v1990 = vrot.slane %v1106, %v1989
      %v1991 = vlaneseq
      %v1992 = vshrl.u32 %v1991, 7
      %v1993 = vsub.s32 0, %v1992
      %v1994 = vrot.slane %v1120, %v1993
      %v1995 = vlaneseq
      %v1996 = vshrl.u32 %v1995, 7
      %v1997 = vsub.s32 0, %v1996
      %v1998 = vrot.slane %v1122, %v1997
      %v1999 = vlaneseq
      %v2000 = vshrl.u32 %v1999, 7
      %v2001 = vsub.s32 0, %v2000
      %v2002 = vrot.slane %v1124, %v2001
      %v2003 = vlaneseq
      %v2004 = vshrl.u32 %v2003, 7
      %v2005 = vsub.s32 0, %v2004
      %v2006 = vrot.slane %v1139, %v2005
      %v2007 = vlaneseq
      %v2008 = vshrl.u32 %v2007, 7
      %v2009 = vsub.s32 0, %v2008
      %v2010 = vrot.slane %v1146, %v2009
      %v2011 = vlaneseq
      %v2012 = vshrl.u32 %v2011, 7
      %v2013 = vsub.s32 0, %v2012
      %v2014 = vrot.slane %v1170, %v2013
      %v2015 = vlaneseq
      %v2016 = vshrl.u32 %v2015, 7
      %v2017 = vsub.s32 0, %v2016
      %v2018 = vrot.slane %v1184, %v2017
      %v2019 = vlaneseq
      %v2020 = vshrl.u32 %v2019, 7
      %v2021 = vsub.s32 0, %v2020
      %v2022 = vrot.slane %v1192, %v2021
      %v2023 = vlaneseq
      %v2024 = vshrl.u32 %v2023, 7
      %v2025 = vsub.s32 0, %v2024
      %v2026 = vrot.slane %v1194, %v2025
      %v2027 = vlaneseq
      %v2028 = vshrl.u32 %v2027, 7
      %v2029 = vsub.s32 0, %v2028
      %v2030 = vrot.slane %v1177, %v2029
      %v2031 = vlaneseq
      %v2032 = vshrl.u32 %v2031, 7
      %v2033 = vsub.s32 0, %v2032
      %v2034 = vrot.slane %v1191, %v2033
      %v2035 = vlaneseq
      %v2036 = vshrl.u32 %v2035, 7
      %v2037 = vsub.s32 0, %v2036
      %v2038 = vrot.slane %v1193, %v2037
      %v2039 = vlaneseq
      %v2040 = vshrl.u32 %v2039, 7
      %v2041 = vsub.s32 0, %v2040
      %v2042 = vrot.slane %v1195, %v2041
      %v2043 = vlaneseq
      %v2044 = vshrl.u32 %v2043, 7
      %v2045 = vsub.s32 0, %v2044
      %v2046 = vrot.slane %v1219, %v2045
      %v2047 = vlaneseq
      %v2048 = vshrl.u32 %v2047, 7
      %v2049 = vsub.s32 0, %v2048
      %v2050 = vrot.slane %v1233, %v2049
      %v2051 = vlaneseq
      %v2052 = vshrl.u32 %v2051, 7
      %v2053 = vsub.s32 0, %v2052
      %v2054 = vrot.slane %v1241, %v2053
      %v2055 = vlaneseq
      %v2056 = vshrl.u32 %v2055, 7
      %v2057 = vsub.s32 0, %v2056
      %v2058 = vrot.slane %v1243, %v2057
      %v2059 = vlaneseq
      %v2060 = vshrl.u32 %v2059, 7
      %v2061 = vsub.s32 0, %v2060
      %v2062 = vrot.slane %v1226, %v2061
      %v2063 = vlaneseq
      %v2064 = vshrl.u32 %v2063, 7
      %v2065 = vsub.s32 0, %v2064
      %v2066 = vrot.slane %v1240, %v2065
      %v2067 = vlaneseq
      %v2068 = vshrl.u32 %v2067, 7
      %v2069 = vsub.s32 0, %v2068
      %v2070 = vrot.slane %v1242, %v2069
      %v2071 = vlaneseq
      %v2072 = vshrl.u32 %v2071, 7
      %v2073 = vsub.s32 0, %v2072
      %v2074 = vrot.slane %v1244, %v2073
      %v2075 = vlaneseq
      %v2076 = vshrl.u32 %v2075, 7
      %v2077 = vsub.s32 0, %v2076
      %v2078 = vrot.slane %v1259, %v2077
      %v2079 = vlaneseq
      %v2080 = vshrl.u32 %v2079, 7
      %v2081 = vsub.s32 0, %v2080
      %v2082 = vrot.slane %v1266, %v2081
      %v2083 = vlaneseq
      %v2084 = vshrl.u32 %v2083, 7
      %v2085 = vsub.s32 0, %v2084
      %v2086 = vrot.slane %v1290, %v2085
      %v2087 = vlaneseq
      %v2088 = vshrl.u32 %v2087, 7
      %v2089 = vsub.s32 0, %v2088
      %v2090 = vrot.slane %v1304, %v2089
      %v2091 = vlaneseq
      %v2092 = vshrl.u32 %v2091, 7
      %v2093 = vsub.s32 0, %v2092
      %v2094 = vrot.slane %v1312, %v2093
      %v2095 = vlaneseq
      %v2096 = vshrl.u32 %v2095, 7
      %v2097 = vsub.s32 0, %v2096
      %v2098 = vrot.slane %v1314, %v2097
      %v2099 = vlaneseq
      %v2100 = vshrl.u32 %v2099, 7
      %v2101 = vsub.s32 0, %v2100
      %v2102 = vrot.slane %v1297, %v2101
      %v2103 = vlaneseq
      %v2104 = vshrl.u32 %v2103, 7
      %v2105 = vsub.s32 0, %v2104
      %v2106 = vrot.slane %v1311, %v2105
      %v2107 = vlaneseq
      %v2108 = vshrl.u32 %v2107, 7
      %v2109 = vsub.s32 0, %v2108
      %v2110 = vrot.slane %v1313, %v2109
      %v2111 = vlaneseq
      %v2112 = vshrl.u32 %v2111, 7
      %v2113 = vsub.s32 0, %v2112
      %v2114 = vrot.slane %v1315, %v2113
      %v2115 = vlaneseq
      %v2116 = vshrl.u32 %v2115, 7
      %v2117 = vsub.s32 0, %v2116
      %v2118 = vrot.slane %v1339, %v2117
      %v2119 = vlaneseq
      %v2120 = vshrl.u32 %v2119, 7
      %v2121 = vsub.s32 0, %v2120
      %v2122 = vrot.slane %v1353, %v2121
      %v2123 = vlaneseq
      %v2124 = vshrl.u32 %v2123, 7
      %v2125 = vsub.s32 0, %v2124
      %v2126 = vrot.slane %v1361, %v2125
      %v2127 = vlaneseq
      %v2128 = vshrl.u32 %v2127, 7
      %v2129 = vsub.s32 0, %v2128
      %v2130 = vrot.slane %v1363, %v2129
      %v2131 = vlaneseq
      %v2132 = vshrl.u32 %v2131, 7
      %v2133 = vsub.s32 0, %v2132
      %v2134 = vrot.slane %v1346, %v2133
      %v2135 = vlaneseq
      %v2136 = vshrl.u32 %v2135, 7
      %v2137 = vsub.s32 0, %v2136
      %v2138 = vrot.slane %v1360, %v2137
      %v2139 = vlaneseq
      %v2140 = vshrl.u32 %v2139, 7
      %v2141 = vsub.s32 0, %v2140
      %v2142 = vrot.slane %v1362, %v2141
      %v2143 = vlaneseq
      %v2144 = vshrl.u32 %v2143, 7
      %v2145 = vsub.s32 0, %v2144
      %v2146 = vrot.slane %v1364, %v2145
      %v2147 = vlaneseq
      %v2148 = vshrl.u32 %v2147, 7
      %v2149 = vsub.s32 0, %v2148
      %v2150 = vrot.slane %v1379, %v2149
      %v2151 = vlaneseq
      %v2152 = vshrl.u32 %v2151, 7
      %v2153 = vsub.s32 0, %v2152
      %v2154 = vrot.slane %v1386, %v2153
      %v2155 = vlaneseq
      %v2156 = vshrl.u32 %v2155, 7
      %v2157 = vsub.s32 0, %v2156
      %v2158 = vrot.slane %v1410, %v2157
      %v2159 = vlaneseq
      %v2160 = vshrl.u32 %v2159, 7
      %v2161 = vsub.s32 0, %v2160
      %v2162 = vrot.slane %v1424, %v2161
      %v2163 = vlaneseq
      %v2164 = vshrl.u32 %v2163, 7
      %v2165 = vsub.s32 0, %v2164
      %v2166 = vrot.slane %v1432, %v2165
      %v2167 = vlaneseq
      %v2168 = vshrl.u32 %v2167, 7
      %v2169 = vsub.s32 0, %v2168
      %v2170 = vrot.slane %v1434, %v2169
      %v2171 = vlaneseq
      %v2172 = vshrl.u32 %v2171, 7
      %v2173 = vsub.s32 0, %v2172
      %v2174 = vrot.slane %v1417, %v2173
      %v2175 = vlaneseq
      %v2176 = vshrl.u32 %v2175, 7
      %v2177 = vsub.s32 0, %v2176
      %v2178 = vrot.slane %v1431, %v2177
      %v2179 = vlaneseq
      %v2180 = vshrl.u32 %v2179, 7
      %v2181 = vsub.s32 0, %v2180
      %v2182 = vrot.slane %v1433, %v2181
      %v2183 = vlaneseq
      %v2184 = vshrl.u32 %v2183, 7
      %v2185 = vsub.s32 0, %v2184
      %v2186 = vrot.slane %v1435, %v2185
      %v2187 = vlaneseq
      %v2188 = vshrl.u32 %v2187, 7
      %v2189 = vsub.s32 0, %v2188
      %v2190 = vrot.slane %v1459, %v2189
      %v2191 = vlaneseq
      %v2192 = vshrl.u32 %v2191, 7
      %v2193 = vsub.s32 0, %v2192
      %v2194 = vrot.slane %v1473, %v2193
      %v2195 = vlaneseq
      %v2196 = vshrl.u32 %v2195, 7
      %v2197 = vsub.s32 0, %v2196
      %v2198 = vrot.slane %v1481, %v2197
      %v2199 = vlaneseq
      %v2200 = vshrl.u32 %v2199, 7
      %v2201 = vsub.s32 0, %v2200
      %v2202 = vrot.slane %v1483, %v2201
      %v2203 = vlaneseq
      %v2204 = vshrl.u32 %v2203, 7
      %v2205 = vsub.s32 0, %v2204
      %v2206 = vrot.slane %v1466, %v2205
      %v2207 = vlaneseq
      %v2208 = vshrl.u32 %v2207, 7
      %v2209 = vsub.s32 0, %v2208
      %v2210 = vrot.slane %v1480, %v2209
      %v2211 = vlaneseq
      %v2212 = vshrl.u32 %v2211, 7
      %v2213 = vsub.s32 0, %v2212
      %v2214 = vrot.slane %v1482, %v2213
      %v2215 = vlaneseq
      %v2216 = vshrl.u32 %v2215, 7
      %v2217 = vsub.s32 0, %v2216
      %v2218 = vrot.slane %v1484, %v2217
      %v2219 = vlaneseq
      %v2220 = vshrl.u32 %v2219, 7
      %v2221 = vsub.s32 0, %v2220
      %v2222 = vrot.slane %v1499, %v2221
      %v2223 = vlaneseq
      %v2224 = vshrl.u32 %v2223, 7
      %v2225 = vsub.s32 0, %v2224
      %v2226 = vrot.slane %v1506, %v2225
      %v2227 = vcombine.low %v1510, %v1514
      %v2228 = vcombine.low %v1518, %v1522
      %v2230 = vunpack.c.l.s4 1983009808
      %v2231 = vunpack.c.0.s8 %v2230
      %v2232 = vlaneseq
      %v2233 = vshrl.u32 %v2232, 7
      %v2234 = vsub.s32 %v2231, %v2233
      %v2235 = vrot.slane %v2227, %v2234
      %v2237 = vunpack.c.l.s4 1983009808
      %v2238 = vunpack.c.0.s8 %v2237
      %v2239 = vlaneseq
      %v2240 = vshrl.u32 %v2239, 7
      %v2241 = vsub.s32 %v2238, %v2240
      %v2242 = vrot.slane %v2228, %v2241
      %v2243 = vcombine.low %v2235, %v2242
      %v2244 = vcombine.low %v1526, %v1530
      %v2245 = vcombine.low %v1534, %v1538
      %v2247 = vunpack.c.l.s4 1983009808
      %v2248 = vunpack.c.0.s8 %v2247
      %v2249 = vlaneseq
      %v2250 = vshrl.u32 %v2249, 7
      %v2251 = vsub.s32 %v2248, %v2250
      %v2252 = vrot.slane %v2244, %v2251
      %v2254 = vunpack.c.l.s4 1983009808
      %v2255 = vunpack.c.0.s8 %v2254
      %v2256 = vlaneseq
      %v2257 = vshrl.u32 %v2256, 7
      %v2258 = vsub.s32 %v2255, %v2257
      %v2259 = vrot.slane %v2245, %v2258
      %v2260 = vcombine.low %v2252, %v2259
      %v2261 = vcombine.low %v1542, %v1546
      %v2262 = vcombine.low %v1550, %v1554
      %v2264 = vunpack.c.l.s4 1983009808
      %v2265 = vunpack.c.0.s8 %v2264
      %v2266 = vlaneseq
      %v2267 = vshrl.u32 %v2266, 7
      %v2268 = vsub.s32 %v2265, %v2267
      %v2269 = vrot.slane %v2261, %v2268
      %v2271 = vunpack.c.l.s4 1983009808
      %v2272 = vunpack.c.0.s8 %v2271
      %v2273 = vlaneseq
      %v2274 = vshrl.u32 %v2273, 7
      %v2275 = vsub.s32 %v2272, %v2274
      %v2276 = vrot.slane %v2262, %v2275
      %v2277 = vcombine.low %v2269, %v2276
      %v2278 = vcombine.low %v1558, %v1562
      %v2279 = vcombine.low %v1566, %v1570
      %v2281 = vunpack.c.l.s4 1983009808
      %v2282 = vunpack.c.0.s8 %v2281
      %v2283 = vlaneseq
      %v2284 = vshrl.u32 %v2283, 7
      %v2285 = vsub.s32 %v2282, %v2284
      %v2286 = vrot.slane %v2278, %v2285
      %v2288 = vunpack.c.l.s4 1983009808
      %v2289 = vunpack.c.0.s8 %v2288
      %v2290 = vlaneseq
      %v2291 = vshrl.u32 %v2290, 7
      %v2292 = vsub.s32 %v2289, %v2291
      %v2293 = vrot.slane %v2279, %v2292
      %v2294 = vcombine.low %v2286, %v2293
      %v2296 = vunpack.c.l.s4 1983009808
      %v2297 = vunpack.c.0.s8 %v2296
      %v2298 = vlaneseq
      %v2299 = vshrl.u32 %v2298, 7
      %v2300 = vsub.s32 %v2297, %v2299
      %v2301 = vrot.slane %v1574, %v2300
      %v2302 = vcombine.low %v1582, %v1586
      %v2303 = vcombine.low %v1590, %v1594
      %v2305 = vunpack.c.l.s4 1983009808
      %v2306 = vunpack.c.0.s8 %v2305
      %v2307 = vlaneseq
      %v2308 = vshrl.u32 %v2307, 7
      %v2309 = vsub.s32 %v2306, %v2308
      %v2310 = vrot.slane %v2302, %v2309
      %v2312 = vunpack.c.l.s4 1983009808
      %v2313 = vunpack.c.0.s8 %v2312
      %v2314 = vlaneseq
      %v2315 = vshrl.u32 %v2314, 7
      %v2316 = vsub.s32 %v2313, %v2315
      %v2317 = vrot.slane %v2303, %v2316
      %v2318 = vcombine.low %v2310, %v2317
      %v2319 = vcombine.low %v1598, %v1602
      %v2320 = vcombine.low %v1606, %v1610
      %v2322 = vunpack.c.l.s4 1983009808
      %v2323 = vunpack.c.0.s8 %v2322
      %v2324 = vlaneseq
      %v2325 = vshrl.u32 %v2324, 7
      %v2326 = vsub.s32 %v2323, %v2325
      %v2327 = vrot.slane %v2319, %v2326
      %v2329 = vunpack.c.l.s4 1983009808
      %v2330 = vunpack.c.0.s8 %v2329
      %v2331 = vlaneseq
      %v2332 = vshrl.u32 %v2331, 7
      %v2333 = vsub.s32 %v2330, %v2332
      %v2334 = vrot.slane %v2320, %v2333
      %v2335 = vcombine.low %v2327, %v2334
      %v2336 = vcombine.low %v1614, %v1618
      %v2337 = vcombine.low %v1622, %v1626
      %v2339 = vunpack.c.l.s4 1983009808
      %v2340 = vunpack.c.0.s8 %v2339
      %v2341 = vlaneseq
      %v2342 = vshrl.u32 %v2341, 7
      %v2343 = vsub.s32 %v2340, %v2342
      %v2344 = vrot.slane %v2336, %v2343
      %v2346 = vunpack.c.l.s4 1983009808
      %v2347 = vunpack.c.0.s8 %v2346
      %v2348 = vlaneseq
      %v2349 = vshrl.u32 %v2348, 7
      %v2350 = vsub.s32 %v2347, %v2349
      %v2351 = vrot.slane %v2337, %v2350
      %v2352 = vcombine.low %v2344, %v2351
      %v2353 = vcombine.low %v1630, %v1634
      %v2354 = vcombine.low %v1638, %v1642
      %v2356 = vunpack.c.l.s4 1983009808
      %v2357 = vunpack.c.0.s8 %v2356
      %v2358 = vlaneseq
      %v2359 = vshrl.u32 %v2358, 7
      %v2360 = vsub.s32 %v2357, %v2359
      %v2361 = vrot.slane %v2353, %v2360
      %v2363 = vunpack.c.l.s4 1983009808
      %v2364 = vunpack.c.0.s8 %v2363
      %v2365 = vlaneseq
      %v2366 = vshrl.u32 %v2365, 7
      %v2367 = vsub.s32 %v2364, %v2366
      %v2368 = vrot.slane %v2354, %v2367
      %v2369 = vcombine.low %v2361, %v2368
      %v2371 = vunpack.c.l.s4 1983009808
      %v2372 = vunpack.c.0.s8 %v2371
      %v2373 = vlaneseq
      %v2374 = vshrl.u32 %v2373, 7
      %v2375 = vsub.s32 %v2372, %v2374
      %v2376 = vrot.slane %v1646, %v2375
      %v2377 = vcombine.low %v1654, %v1658
      %v2378 = vcombine.low %v1662, %v1666
      %v2380 = vunpack.c.l.s4 1983009808
      %v2381 = vunpack.c.0.s8 %v2380
      %v2382 = vlaneseq
      %v2383 = vshrl.u32 %v2382, 7
      %v2384 = vsub.s32 %v2381, %v2383
      %v2385 = vrot.slane %v2377, %v2384
      %v2387 = vunpack.c.l.s4 1983009808
      %v2388 = vunpack.c.0.s8 %v2387
      %v2389 = vlaneseq
      %v2390 = vshrl.u32 %v2389, 7
      %v2391 = vsub.s32 %v2388, %v2390
      %v2392 = vrot.slane %v2378, %v2391
      %v2393 = vcombine.low %v2385, %v2392
      %v2394 = vcombine.low %v1670, %v1674
      %v2395 = vcombine.low %v1678, %v1682
      %v2397 = vunpack.c.l.s4 1983009808
      %v2398 = vunpack.c.0.s8 %v2397
      %v2399 = vlaneseq
      %v2400 = vshrl.u32 %v2399, 7
      %v2401 = vsub.s32 %v2398, %v2400
      %v2402 = vrot.slane %v2394, %v2401
      %v2404 = vunpack.c.l.s4 1983009808
      %v2405 = vunpack.c.0.s8 %v2404
      %v2406 = vlaneseq
      %v2407 = vshrl.u32 %v2406, 7
      %v2408 = vsub.s32 %v2405, %v2407
      %v2409 = vrot.slane %v2395, %v2408
      %v2410 = vcombine.low %v2402, %v2409
      %v2411 = vcombine.low %v1686, %v1690
      %v2412 = vcombine.low %v1694, %v1698
      %v2414 = vunpack.c.l.s4 1983009808
      %v2415 = vunpack.c.0.s8 %v2414
      %v2416 = vlaneseq
      %v2417 = vshrl.u32 %v2416, 7
      %v2418 = vsub.s32 %v2415, %v2417
      %v2419 = vrot.slane %v2411, %v2418
      %v2421 = vunpack.c.l.s4 1983009808
      %v2422 = vunpack.c.0.s8 %v2421
      %v2423 = vlaneseq
      %v2424 = vshrl.u32 %v2423, 7
      %v2425 = vsub.s32 %v2422, %v2424
      %v2426 = vrot.slane %v2412, %v2425
      %v2427 = vcombine.low %v2419, %v2426
      %v2428 = vcombine.low %v1702, %v1706
      %v2429 = vcombine.low %v1710, %v1714
      %v2431 = vunpack.c.l.s4 1983009808
      %v2432 = vunpack.c.0.s8 %v2431
      %v2433 = vlaneseq
      %v2434 = vshrl.u32 %v2433, 7
      %v2435 = vsub.s32 %v2432, %v2434
      %v2436 = vrot.slane %v2428, %v2435
      %v2438 = vunpack.c.l.s4 1983009808
      %v2439 = vunpack.c.0.s8 %v2438
      %v2440 = vlaneseq
      %v2441 = vshrl.u32 %v2440, 7
      %v2442 = vsub.s32 %v2439, %v2441
      %v2443 = vrot.slane %v2429, %v2442
      %v2444 = vcombine.low %v2436, %v2443
      %v2446 = vunpack.c.l.s4 1983009808
      %v2447 = vunpack.c.0.s8 %v2446
      %v2448 = vlaneseq
      %v2449 = vshrl.u32 %v2448, 7
      %v2450 = vsub.s32 %v2447, %v2449
      %v2451 = vrot.slane %v1718, %v2450
      %v2452 = vcombine.low %v1726, %v1730
      %v2453 = vcombine.low %v1734, %v1738
      %v2455 = vunpack.c.l.s4 1983009808
      %v2456 = vunpack.c.0.s8 %v2455
      %v2457 = vlaneseq
      %v2458 = vshrl.u32 %v2457, 7
      %v2459 = vsub.s32 %v2456, %v2458
      %v2460 = vrot.slane %v2452, %v2459
      %v2462 = vunpack.c.l.s4 1983009808
      %v2463 = vunpack.c.0.s8 %v2462
      %v2464 = vlaneseq
      %v2465 = vshrl.u32 %v2464, 7
      %v2466 = vsub.s32 %v2463, %v2465
      %v2467 = vrot.slane %v2453, %v2466
      %v2468 = vcombine.low %v2460, %v2467
      %v2469 = vcombine.low %v1742, %v1746
      %v2470 = vcombine.low %v1750, %v1754
      %v2472 = vunpack.c.l.s4 1983009808
      %v2473 = vunpack.c.0.s8 %v2472
      %v2474 = vlaneseq
      %v2475 = vshrl.u32 %v2474, 7
      %v2476 = vsub.s32 %v2473, %v2475
      %v2477 = vrot.slane %v2469, %v2476
      %v2479 = vunpack.c.l.s4 1983009808
      %v2480 = vunpack.c.0.s8 %v2479
      %v2481 = vlaneseq
      %v2482 = vshrl.u32 %v2481, 7
      %v2483 = vsub.s32 %v2480, %v2482
      %v2484 = vrot.slane %v2470, %v2483
      %v2485 = vcombine.low %v2477, %v2484
      %v2486 = vcombine.low %v1758, %v1762
      %v2487 = vcombine.low %v1766, %v1770
      %v2489 = vunpack.c.l.s4 1983009808
      %v2490 = vunpack.c.0.s8 %v2489
      %v2491 = vlaneseq
      %v2492 = vshrl.u32 %v2491, 7
      %v2493 = vsub.s32 %v2490, %v2492
      %v2494 = vrot.slane %v2486, %v2493
      %v2496 = vunpack.c.l.s4 1983009808
      %v2497 = vunpack.c.0.s8 %v2496
      %v2498 = vlaneseq
      %v2499 = vshrl.u32 %v2498, 7
      %v2500 = vsub.s32 %v2497, %v2499
      %v2501 = vrot.slane %v2487, %v2500
      %v2502 = vcombine.low %v2494, %v2501
      %v2503 = vcombine.low %v1774, %v1778
      %v2504 = vcombine.low %v1782, %v1786
      %v2506 = vunpack.c.l.s4 1983009808
      %v2507 = vunpack.c.0.s8 %v2506
      %v2508 = vlaneseq
      %v2509 = vshrl.u32 %v2508, 7
      %v2510 = vsub.s32 %v2507, %v2509
      %v2511 = vrot.slane %v2503, %v2510
      %v2513 = vunpack.c.l.s4 1983009808
      %v2514 = vunpack.c.0.s8 %v2513
      %v2515 = vlaneseq
      %v2516 = vshrl.u32 %v2515, 7
      %v2517 = vsub.s32 %v2514, %v2516
      %v2518 = vrot.slane %v2504, %v2517
      %v2519 = vcombine.low %v2511, %v2518
      %v2521 = vunpack.c.l.s4 1983009808
      %v2522 = vunpack.c.0.s8 %v2521
      %v2523 = vlaneseq
      %v2524 = vshrl.u32 %v2523, 7
      %v2525 = vsub.s32 %v2522, %v2524
      %v2526 = vrot.slane %v1790, %v2525
      %v2527 = vcombine.low %v1798, %v1802
      %v2528 = vcombine.low %v1806, %v1810
      %v2530 = vunpack.c.l.s4 1983009808
      %v2531 = vunpack.c.0.s8 %v2530
      %v2532 = vlaneseq
      %v2533 = vshrl.u32 %v2532, 7
      %v2534 = vsub.s32 %v2531, %v2533
      %v2535 = vrot.slane %v2527, %v2534
      %v2537 = vunpack.c.l.s4 1983009808
      %v2538 = vunpack.c.0.s8 %v2537
      %v2539 = vlaneseq
      %v2540 = vshrl.u32 %v2539, 7
      %v2541 = vsub.s32 %v2538, %v2540
      %v2542 = vrot.slane %v2528, %v2541
      %v2543 = vcombine.low %v2535, %v2542
      %v2544 = vcombine.low %v1814, %v1818
      %v2545 = vcombine.low %v1822, %v1826
      %v2547 = vunpack.c.l.s4 1983009808
      %v2548 = vunpack.c.0.s8 %v2547
      %v2549 = vlaneseq
      %v2550 = vshrl.u32 %v2549, 7
      %v2551 = vsub.s32 %v2548, %v2550
      %v2552 = vrot.slane %v2544, %v2551
      %v2554 = vunpack.c.l.s4 1983009808
      %v2555 = vunpack.c.0.s8 %v2554
      %v2556 = vlaneseq
      %v2557 = vshrl.u32 %v2556, 7
      %v2558 = vsub.s32 %v2555, %v2557
      %v2559 = vrot.slane %v2545, %v2558
      %v2560 = vcombine.low %v2552, %v2559
      %v2561 = vcombine.low %v1830, %v1834
      %v2562 = vcombine.low %v1838, %v1842
      %v2564 = vunpack.c.l.s4 1983009808
      %v2565 = vunpack.c.0.s8 %v2564
      %v2566 = vlaneseq
      %v2567 = vshrl.u32 %v2566, 7
      %v2568 = vsub.s32 %v2565, %v2567
      %v2569 = vrot.slane %v2561, %v2568
      %v2571 = vunpack.c.l.s4 1983009808
      %v2572 = vunpack.c.0.s8 %v2571
      %v2573 = vlaneseq
      %v2574 = vshrl.u32 %v2573, 7
      %v2575 = vsub.s32 %v2572, %v2574
      %v2576 = vrot.slane %v2562, %v2575
      %v2577 = vcombine.low %v2569, %v2576
      %v2578 = vcombine.low %v1846, %v1850
      %v2579 = vcombine.low %v1854, %v1858
      %v2581 = vunpack.c.l.s4 1983009808
      %v2582 = vunpack.c.0.s8 %v2581
      %v2583 = vlaneseq
      %v2584 = vshrl.u32 %v2583, 7
      %v2585 = vsub.s32 %v2582, %v2584
      %v2586 = vrot.slane %v2578, %v2585
      %v2588 = vunpack.c.l.s4 1983009808
      %v2589 = vunpack.c.0.s8 %v2588
      %v2590 = vlaneseq
      %v2591 = vshrl.u32 %v2590, 7
      %v2592 = vsub.s32 %v2589, %v2591
      %v2593 = vrot.slane %v2579, %v2592
      %v2594 = vcombine.low %v2586, %v2593
      %v2596 = vunpack.c.l.s4 1983009808
      %v2597 = vunpack.c.0.s8 %v2596
      %v2598 = vlaneseq
      %v2599 = vshrl.u32 %v2598, 7
      %v2600 = vsub.s32 %v2597, %v2599
      %v2601 = vrot.slane %v1862, %v2600
      %v2602 = vcombine.low %v1870, %v1874
      %v2603 = vcombine.low %v1878, %v1882
      %v2605 = vunpack.c.l.s4 1983009808
      %v2606 = vunpack.c.0.s8 %v2605
      %v2607 = vlaneseq
      %v2608 = vshrl.u32 %v2607, 7
      %v2609 = vsub.s32 %v2606, %v2608
      %v2610 = vrot.slane %v2602, %v2609
      %v2612 = vunpack.c.l.s4 1983009808
      %v2613 = vunpack.c.0.s8 %v2612
      %v2614 = vlaneseq
      %v2615 = vshrl.u32 %v2614, 7
      %v2616 = vsub.s32 %v2613, %v2615
      %v2617 = vrot.slane %v2603, %v2616
      %v2618 = vcombine.low %v2610, %v2617
      %v2619 = vcombine.low %v1886, %v1890
      %v2620 = vcombine.low %v1894, %v1898
      %v2622 = vunpack.c.l.s4 1983009808
      %v2623 = vunpack.c.0.s8 %v2622
      %v2624 = vlaneseq
      %v2625 = vshrl.u32 %v2624, 7
      %v2626 = vsub.s32 %v2623, %v2625
      %v2627 = vrot.slane %v2619, %v2626
      %v2629 = vunpack.c.l.s4 1983009808
      %v2630 = vunpack.c.0.s8 %v2629
      %v2631 = vlaneseq
      %v2632 = vshrl.u32 %v2631, 7
      %v2633 = vsub.s32 %v2630, %v2632
      %v2634 = vrot.slane %v2620, %v2633
      %v2635 = vcombine.low %v2627, %v2634
      %v2636 = vcombine.low %v1902, %v1906
      %v2637 = vcombine.low %v1910, %v1914
      %v2639 = vunpack.c.l.s4 1983009808
      %v2640 = vunpack.c.0.s8 %v2639
      %v2641 = vlaneseq
      %v2642 = vshrl.u32 %v2641, 7
      %v2643 = vsub.s32 %v2640, %v2642
      %v2644 = vrot.slane %v2636, %v2643
      %v2646 = vunpack.c.l.s4 1983009808
      %v2647 = vunpack.c.0.s8 %v2646
      %v2648 = vlaneseq
      %v2649 = vshrl.u32 %v2648, 7
      %v2650 = vsub.s32 %v2647, %v2649
      %v2651 = vrot.slane %v2637, %v2650
      %v2652 = vcombine.low %v2644, %v2651
      %v2653 = vcombine.low %v1918, %v1922
      %v2654 = vcombine.low %v1926, %v1930
      %v2656 = vunpack.c.l.s4 1983009808
      %v2657 = vunpack.c.0.s8 %v2656
      %v2658 = vlaneseq
      %v2659 = vshrl.u32 %v2658, 7
      %v2660 = vsub.s32 %v2657, %v2659
      %v2661 = vrot.slane %v2653, %v2660
      %v2663 = vunpack.c.l.s4 1983009808
      %v2664 = vunpack.c.0.s8 %v2663
      %v2665 = vlaneseq
      %v2666 = vshrl.u32 %v2665, 7
      %v2667 = vsub.s32 %v2664, %v2666
      %v2668 = vrot.slane %v2654, %v2667
      %v2669 = vcombine.low %v2661, %v2668
      %v2671 = vunpack.c.l.s4 1983009808
      %v2672 = vunpack.c.0.s8 %v2671
      %v2673 = vlaneseq
      %v2674 = vshrl.u32 %v2673, 7
      %v2675 = vsub.s32 %v2672, %v2674
      %v2676 = vrot.slane %v1934, %v2675
      %v2677 = vcombine.low %v1942, %v1946
      %v2678 = vcombine.low %v1950, %v1954
      %v2680 = vunpack.c.l.s4 1983009808
      %v2681 = vunpack.c.0.s8 %v2680
      %v2682 = vlaneseq
      %v2683 = vshrl.u32 %v2682, 7
      %v2684 = vsub.s32 %v2681, %v2683
      %v2685 = vrot.slane %v2677, %v2684
      %v2687 = vunpack.c.l.s4 1983009808
      %v2688 = vunpack.c.0.s8 %v2687
      %v2689 = vlaneseq
      %v2690 = vshrl.u32 %v2689, 7
      %v2691 = vsub.s32 %v2688, %v2690
      %v2692 = vrot.slane %v2678, %v2691
      %v2693 = vcombine.low %v2685, %v2692
      %v2694 = vcombine.low %v1958, %v1962
      %v2695 = vcombine.low %v1966, %v1970
      %v2697 = vunpack.c.l.s4 1983009808
      %v2698 = vunpack.c.0.s8 %v2697
      %v2699 = vlaneseq
      %v2700 = vshrl.u32 %v2699, 7
      %v2701 = vsub.s32 %v2698, %v2700
      %v2702 = vrot.slane %v2694, %v2701
      %v2704 = vunpack.c.l.s4 1983009808
      %v2705 = vunpack.c.0.s8 %v2704
      %v2706 = vlaneseq
      %v2707 = vshrl.u32 %v2706, 7
      %v2708 = vsub.s32 %v2705, %v2707
      %v2709 = vrot.slane %v2695, %v2708
      %v2710 = vcombine.low %v2702, %v2709
      %v2711 = vcombine.low %v1974, %v1978
      %v2712 = vcombine.low %v1982, %v1986
      %v2714 = vunpack.c.l.s4 1983009808
      %v2715 = vunpack.c.0.s8 %v2714
      %v2716 = vlaneseq
      %v2717 = vshrl.u32 %v2716, 7
      %v2718 = vsub.s32 %v2715, %v2717
      %v2719 = vrot.slane %v2711, %v2718
      %v2721 = vunpack.c.l.s4 1983009808
      %v2722 = vunpack.c.0.s8 %v2721
      %v2723 = vlaneseq
      %v2724 = vshrl.u32 %v2723, 7
      %v2725 = vsub.s32 %v2722, %v2724
      %v2726 = vrot.slane %v2712, %v2725
      %v2727 = vcombine.low %v2719, %v2726
      %v2728 = vcombine.low %v1990, %v1994
      %v2729 = vcombine.low %v1998, %v2002
      %v2731 = vunpack.c.l.s4 1983009808
      %v2732 = vunpack.c.0.s8 %v2731
      %v2733 = vlaneseq
      %v2734 = vshrl.u32 %v2733, 7
      %v2735 = vsub.s32 %v2732, %v2734
      %v2736 = vrot.slane %v2728, %v2735
      %v2738 = vunpack.c.l.s4 1983009808
      %v2739 = vunpack.c.0.s8 %v2738
      %v2740 = vlaneseq
      %v2741 = vshrl.u32 %v2740, 7
      %v2742 = vsub.s32 %v2739, %v2741
      %v2743 = vrot.slane %v2729, %v2742
      %v2744 = vcombine.low %v2736, %v2743
      %v2746 = vunpack.c.l.s4 1983009808
      %v2747 = vunpack.c.0.s8 %v2746
      %v2748 = vlaneseq
      %v2749 = vshrl.u32 %v2748, 7
      %v2750 = vsub.s32 %v2747, %v2749
      %v2751 = vrot.slane %v2006, %v2750
      %v2752 = vcombine.low %v2014, %v2018
      %v2753 = vcombine.low %v2022, %v2026
      %v2755 = vunpack.c.l.s4 1983009808
      %v2756 = vunpack.c.0.s8 %v2755
      %v2757 = vlaneseq
      %v2758 = vshrl.u32 %v2757, 7
      %v2759 = vsub.s32 %v2756, %v2758
      %v2760 = vrot.slane %v2752, %v2759
      %v2762 = vunpack.c.l.s4 1983009808
      %v2763 = vunpack.c.0.s8 %v2762
      %v2764 = vlaneseq
      %v2765 = vshrl.u32 %v2764, 7
      %v2766 = vsub.s32 %v2763, %v2765
      %v2767 = vrot.slane %v2753, %v2766
      %v2768 = vcombine.low %v2760, %v2767
      %v2769 = vcombine.low %v2030, %v2034
      %v2770 = vcombine.low %v2038, %v2042
      %v2772 = vunpack.c.l.s4 1983009808
      %v2773 = vunpack.c.0.s8 %v2772
      %v2774 = vlaneseq
      %v2775 = vshrl.u32 %v2774, 7
      %v2776 = vsub.s32 %v2773, %v2775
      %v2777 = vrot.slane %v2769, %v2776
      %v2779 = vunpack.c.l.s4 1983009808
      %v2780 = vunpack.c.0.s8 %v2779
      %v2781 = vlaneseq
      %v2782 = vshrl.u32 %v2781, 7
      %v2783 = vsub.s32 %v2780, %v2782
      %v2784 = vrot.slane %v2770, %v2783
      %v2785 = vcombine.low %v2777, %v2784
      %v2786 = vcombine.low %v2046, %v2050
      %v2787 = vcombine.low %v2054, %v2058
      %v2789 = vunpack.c.l.s4 1983009808
      %v2790 = vunpack.c.0.s8 %v2789
      %v2791 = vlaneseq
      %v2792 = vshrl.u32 %v2791, 7
      %v2793 = vsub.s32 %v2790, %v2792
      %v2794 = vrot.slane %v2786, %v2793
      %v2796 = vunpack.c.l.s4 1983009808
      %v2797 = vunpack.c.0.s8 %v2796
      %v2798 = vlaneseq
      %v2799 = vshrl.u32 %v2798, 7
      %v2800 = vsub.s32 %v2797, %v2799
      %v2801 = vrot.slane %v2787, %v2800
      %v2802 = vcombine.low %v2794, %v2801
      %v2803 = vcombine.low %v2062, %v2066
      %v2804 = vcombine.low %v2070, %v2074
      %v2806 = vunpack.c.l.s4 1983009808
      %v2807 = vunpack.c.0.s8 %v2806
      %v2808 = vlaneseq
      %v2809 = vshrl.u32 %v2808, 7
      %v2810 = vsub.s32 %v2807, %v2809
      %v2811 = vrot.slane %v2803, %v2810
      %v2813 = vunpack.c.l.s4 1983009808
      %v2814 = vunpack.c.0.s8 %v2813
      %v2815 = vlaneseq
      %v2816 = vshrl.u32 %v2815, 7
      %v2817 = vsub.s32 %v2814, %v2816
      %v2818 = vrot.slane %v2804, %v2817
      %v2819 = vcombine.low %v2811, %v2818
      %v2821 = vunpack.c.l.s4 1983009808
      %v2822 = vunpack.c.0.s8 %v2821
      %v2823 = vlaneseq
      %v2824 = vshrl.u32 %v2823, 7
      %v2825 = vsub.s32 %v2822, %v2824
      %v2826 = vrot.slane %v2078, %v2825
      %v2827 = vcombine.low %v2086, %v2090
      %v2828 = vcombine.low %v2094, %v2098
      %v2830 = vunpack.c.l.s4 1983009808
      %v2831 = vunpack.c.0.s8 %v2830
      %v2832 = vlaneseq
      %v2833 = vshrl.u32 %v2832, 7
      %v2834 = vsub.s32 %v2831, %v2833
      %v2835 = vrot.slane %v2827, %v2834
      %v2837 = vunpack.c.l.s4 1983009808
      %v2838 = vunpack.c.0.s8 %v2837
      %v2839 = vlaneseq
      %v2840 = vshrl.u32 %v2839, 7
      %v2841 = vsub.s32 %v2838, %v2840
      %v2842 = vrot.slane %v2828, %v2841
      %v2843 = vcombine.low %v2835, %v2842
      %v2844 = vcombine.low %v2102, %v2106
      %v2845 = vcombine.low %v2110, %v2114
      %v2847 = vunpack.c.l.s4 1983009808
      %v2848 = vunpack.c.0.s8 %v2847
      %v2849 = vlaneseq
      %v2850 = vshrl.u32 %v2849, 7
      %v2851 = vsub.s32 %v2848, %v2850
      %v2852 = vrot.slane %v2844, %v2851
      %v2854 = vunpack.c.l.s4 1983009808
      %v2855 = vunpack.c.0.s8 %v2854
      %v2856 = vlaneseq
      %v2857 = vshrl.u32 %v2856, 7
      %v2858 = vsub.s32 %v2855, %v2857
      %v2859 = vrot.slane %v2845, %v2858
      %v2860 = vcombine.low %v2852, %v2859
      %v2861 = vcombine.low %v2118, %v2122
      %v2862 = vcombine.low %v2126, %v2130
      %v2864 = vunpack.c.l.s4 1983009808
      %v2865 = vunpack.c.0.s8 %v2864
      %v2866 = vlaneseq
      %v2867 = vshrl.u32 %v2866, 7
      %v2868 = vsub.s32 %v2865, %v2867
      %v2869 = vrot.slane %v2861, %v2868
      %v2871 = vunpack.c.l.s4 1983009808
      %v2872 = vunpack.c.0.s8 %v2871
      %v2873 = vlaneseq
      %v2874 = vshrl.u32 %v2873, 7
      %v2875 = vsub.s32 %v2872, %v2874
      %v2876 = vrot.slane %v2862, %v2875
      %v2877 = vcombine.low %v2869, %v2876
      %v2878 = vcombine.low %v2134, %v2138
      %v2879 = vcombine.low %v2142, %v2146
      %v2881 = vunpack.c.l.s4 1983009808
      %v2882 = vunpack.c.0.s8 %v2881
      %v2883 = vlaneseq
      %v2884 = vshrl.u32 %v2883, 7
      %v2885 = vsub.s32 %v2882, %v2884
      %v2886 = vrot.slane %v2878, %v2885
      %v2888 = vunpack.c.l.s4 1983009808
      %v2889 = vunpack.c.0.s8 %v2888
      %v2890 = vlaneseq
      %v2891 = vshrl.u32 %v2890, 7
      %v2892 = vsub.s32 %v2889, %v2891
      %v2893 = vrot.slane %v2879, %v2892
      %v2894 = vcombine.low %v2886, %v2893
      %v2896 = vunpack.c.l.s4 1983009808
      %v2897 = vunpack.c.0.s8 %v2896
      %v2898 = vlaneseq
      %v2899 = vshrl.u32 %v2898, 7
      %v2900 = vsub.s32 %v2897, %v2899
      %v2901 = vrot.slane %v2150, %v2900
      %v2947 = vcombine.low %v1514, %v1518
      %v2948 = vcombine.low %v1522, %v1526
      %v2950 = vunpack.c.l.s4 1983009808
      %v2951 = vunpack.c.0.s8 %v2950
      %v2952 = vlaneseq
      %v2953 = vshrl.u32 %v2952, 7
      %v2954 = vsub.s32 %v2951, %v2953
      %v2955 = vrot.slane %v2947, %v2954
      %v2957 = vunpack.c.l.s4 1983009808
      %v2958 = vunpack.c.0.s8 %v2957
      %v2959 = vlaneseq
      %v2960 = vshrl.u32 %v2959, 7
      %v2961 = vsub.s32 %v2958, %v2960
      %v2962 = vrot.slane %v2948, %v2961
      %v2963 = vcombine.low %v2955, %v2962
      %v2964 = vcombine.low %v1530, %v1534
      %v2965 = vcombine.low %v1538, %v1542
      %v2967 = vunpack.c.l.s4 1983009808
      %v2968 = vunpack.c.0.s8 %v2967
      %v2969 = vlaneseq
      %v2970 = vshrl.u32 %v2969, 7
      %v2971 = vsub.s32 %v2968, %v2970
      %v2972 = vrot.slane %v2964, %v2971
      %v2974 = vunpack.c.l.s4 1983009808
      %v2975 = vunpack.c.0.s8 %v2974
      %v2976 = vlaneseq
      %v2977 = vshrl.u32 %v2976, 7
      %v2978 = vsub.s32 %v2975, %v2977
      %v2979 = vrot.slane %v2965, %v2978
      %v2980 = vcombine.low %v2972, %v2979
      %v2981 = vcombine.low %v1546, %v1550
      %v2982 = vcombine.low %v1554, %v1558
      %v2984 = vunpack.c.l.s4 1983009808
      %v2985 = vunpack.c.0.s8 %v2984
      %v2986 = vlaneseq
      %v2987 = vshrl.u32 %v2986, 7
      %v2988 = vsub.s32 %v2985, %v2987
      %v2989 = vrot.slane %v2981, %v2988
      %v2991 = vunpack.c.l.s4 1983009808
      %v2992 = vunpack.c.0.s8 %v2991
      %v2993 = vlaneseq
      %v2994 = vshrl.u32 %v2993, 7
      %v2995 = vsub.s32 %v2992, %v2994
      %v2996 = vrot.slane %v2982, %v2995
      %v2997 = vcombine.low %v2989, %v2996
      %v2998 = vcombine.low %v1562, %v1566
      %v2999 = vcombine.low %v1570, %v1574
      %v3001 = vunpack.c.l.s4 1983009808
      %v3002 = vunpack.c.0.s8 %v3001
      %v3003 = vlaneseq
      %v3004 = vshrl.u32 %v3003, 7
      %v3005 = vsub.s32 %v3002, %v3004
      %v3006 = vrot.slane %v2998, %v3005
      %v3008 = vunpack.c.l.s4 1983009808
      %v3009 = vunpack.c.0.s8 %v3008
      %v3010 = vlaneseq
      %v3011 = vshrl.u32 %v3010, 7
      %v3012 = vsub.s32 %v3009, %v3011
      %v3013 = vrot.slane %v2999, %v3012
      %v3014 = vcombine.low %v3006, %v3013
      %v3015 = vcombine.low %v1586, %v1590
      %v3016 = vcombine.low %v1594, %v1598
      %v3018 = vunpack.c.l.s4 1983009808
      %v3019 = vunpack.c.0.s8 %v3018
      %v3020 = vlaneseq
      %v3021 = vshrl.u32 %v3020, 7
      %v3022 = vsub.s32 %v3019, %v3021
      %v3023 = vrot.slane %v3015, %v3022
      %v3025 = vunpack.c.l.s4 1983009808
      %v3026 = vunpack.c.0.s8 %v3025
      %v3027 = vlaneseq
      %v3028 = vshrl.u32 %v3027, 7
      %v3029 = vsub.s32 %v3026, %v3028
      %v3030 = vrot.slane %v3016, %v3029
      %v3031 = vcombine.low %v3023, %v3030
      %v3032 = vcombine.low %v1602, %v1606
      %v3033 = vcombine.low %v1610, %v1614
      %v3035 = vunpack.c.l.s4 1983009808
      %v3036 = vunpack.c.0.s8 %v3035
      %v3037 = vlaneseq
      %v3038 = vshrl.u32 %v3037, 7
      %v3039 = vsub.s32 %v3036, %v3038
      %v3040 = vrot.slane %v3032, %v3039
      %v3042 = vunpack.c.l.s4 1983009808
      %v3043 = vunpack.c.0.s8 %v3042
      %v3044 = vlaneseq
      %v3045 = vshrl.u32 %v3044, 7
      %v3046 = vsub.s32 %v3043, %v3045
      %v3047 = vrot.slane %v3033, %v3046
      %v3048 = vcombine.low %v3040, %v3047
      %v3049 = vcombine.low %v1618, %v1622
      %v3050 = vcombine.low %v1626, %v1630
      %v3052 = vunpack.c.l.s4 1983009808
      %v3053 = vunpack.c.0.s8 %v3052
      %v3054 = vlaneseq
      %v3055 = vshrl.u32 %v3054, 7
      %v3056 = vsub.s32 %v3053, %v3055
      %v3057 = vrot.slane %v3049, %v3056
      %v3059 = vunpack.c.l.s4 1983009808
      %v3060 = vunpack.c.0.s8 %v3059
      %v3061 = vlaneseq
      %v3062 = vshrl.u32 %v3061, 7
      %v3063 = vsub.s32 %v3060, %v3062
      %v3064 = vrot.slane %v3050, %v3063
      %v3065 = vcombine.low %v3057, %v3064
      %v3066 = vcombine.low %v1634, %v1638
      %v3067 = vcombine.low %v1642, %v1646
      %v3069 = vunpack.c.l.s4 1983009808
      %v3070 = vunpack.c.0.s8 %v3069
      %v3071 = vlaneseq
      %v3072 = vshrl.u32 %v3071, 7
      %v3073 = vsub.s32 %v3070, %v3072
      %v3074 = vrot.slane %v3066, %v3073
      %v3076 = vunpack.c.l.s4 1983009808
      %v3077 = vunpack.c.0.s8 %v3076
      %v3078 = vlaneseq
      %v3079 = vshrl.u32 %v3078, 7
      %v3080 = vsub.s32 %v3077, %v3079
      %v3081 = vrot.slane %v3067, %v3080
      %v3082 = vcombine.low %v3074, %v3081
      %v3083 = vcombine.low %v1658, %v1662
      %v3084 = vcombine.low %v1666, %v1670
      %v3086 = vunpack.c.l.s4 1983009808
      %v3087 = vunpack.c.0.s8 %v3086
      %v3088 = vlaneseq
      %v3089 = vshrl.u32 %v3088, 7
      %v3090 = vsub.s32 %v3087, %v3089
      %v3091 = vrot.slane %v3083, %v3090
      %v3093 = vunpack.c.l.s4 1983009808
      %v3094 = vunpack.c.0.s8 %v3093
      %v3095 = vlaneseq
      %v3096 = vshrl.u32 %v3095, 7
      %v3097 = vsub.s32 %v3094, %v3096
      %v3098 = vrot.slane %v3084, %v3097
      %v3099 = vcombine.low %v3091, %v3098
      %v3100 = vcombine.low %v1674, %v1678
      %v3101 = vcombine.low %v1682, %v1686
      %v3103 = vunpack.c.l.s4 1983009808
      %v3104 = vunpack.c.0.s8 %v3103
      %v3105 = vlaneseq
      %v3106 = vshrl.u32 %v3105, 7
      %v3107 = vsub.s32 %v3104, %v3106
      %v3108 = vrot.slane %v3100, %v3107
      %v3110 = vunpack.c.l.s4 1983009808
      %v3111 = vunpack.c.0.s8 %v3110
      %v3112 = vlaneseq
      %v3113 = vshrl.u32 %v3112, 7
      %v3114 = vsub.s32 %v3111, %v3113
      %v3115 = vrot.slane %v3101, %v3114
      %v3116 = vcombine.low %v3108, %v3115
      %v3117 = vcombine.low %v1690, %v1694
      %v3118 = vcombine.low %v1698, %v1702
      %v3120 = vunpack.c.l.s4 1983009808
      %v3121 = vunpack.c.0.s8 %v3120
      %v3122 = vlaneseq
      %v3123 = vshrl.u32 %v3122, 7
      %v3124 = vsub.s32 %v3121, %v3123
      %v3125 = vrot.slane %v3117, %v3124
      %v3127 = vunpack.c.l.s4 1983009808
      %v3128 = vunpack.c.0.s8 %v3127
      %v3129 = vlaneseq
      %v3130 = vshrl.u32 %v3129, 7
      %v3131 = vsub.s32 %v3128, %v3130
      %v3132 = vrot.slane %v3118, %v3131
      %v3133 = vcombine.low %v3125, %v3132
      %v3134 = vcombine.low %v1706, %v1710
      %v3135 = vcombine.low %v1714, %v1718
      %v3137 = vunpack.c.l.s4 1983009808
      %v3138 = vunpack.c.0.s8 %v3137
      %v3139 = vlaneseq
      %v3140 = vshrl.u32 %v3139, 7
      %v3141 = vsub.s32 %v3138, %v3140
      %v3142 = vrot.slane %v3134, %v3141
      %v3144 = vunpack.c.l.s4 1983009808
      %v3145 = vunpack.c.0.s8 %v3144
      %v3146 = vlaneseq
      %v3147 = vshrl.u32 %v3146, 7
      %v3148 = vsub.s32 %v3145, %v3147
      %v3149 = vrot.slane %v3135, %v3148
      %v3150 = vcombine.low %v3142, %v3149
      %v3151 = vcombine.low %v1730, %v1734
      %v3152 = vcombine.low %v1738, %v1742
      %v3154 = vunpack.c.l.s4 1983009808
      %v3155 = vunpack.c.0.s8 %v3154
      %v3156 = vlaneseq
      %v3157 = vshrl.u32 %v3156, 7
      %v3158 = vsub.s32 %v3155, %v3157
      %v3159 = vrot.slane %v3151, %v3158
      %v3161 = vunpack.c.l.s4 1983009808
      %v3162 = vunpack.c.0.s8 %v3161
      %v3163 = vlaneseq
      %v3164 = vshrl.u32 %v3163, 7
      %v3165 = vsub.s32 %v3162, %v3164
      %v3166 = vrot.slane %v3152, %v3165
      %v3167 = vcombine.low %v3159, %v3166
      %v3168 = vcombine.low %v1746, %v1750
      %v3169 = vcombine.low %v1754, %v1758
      %v3171 = vunpack.c.l.s4 1983009808
      %v3172 = vunpack.c.0.s8 %v3171
      %v3173 = vlaneseq
      %v3174 = vshrl.u32 %v3173, 7
      %v3175 = vsub.s32 %v3172, %v3174
      %v3176 = vrot.slane %v3168, %v3175
      %v3178 = vunpack.c.l.s4 1983009808
      %v3179 = vunpack.c.0.s8 %v3178
      %v3180 = vlaneseq
      %v3181 = vshrl.u32 %v3180, 7
      %v3182 = vsub.s32 %v3179, %v3181
      %v3183 = vrot.slane %v3169, %v3182
      %v3184 = vcombine.low %v3176, %v3183
      %v3185 = vcombine.low %v1762, %v1766
      %v3186 = vcombine.low %v1770, %v1774
      %v3188 = vunpack.c.l.s4 1983009808
      %v3189 = vunpack.c.0.s8 %v3188
      %v3190 = vlaneseq
      %v3191 = vshrl.u32 %v3190, 7
      %v3192 = vsub.s32 %v3189, %v3191
      %v3193 = vrot.slane %v3185, %v3192
      %v3195 = vunpack.c.l.s4 1983009808
      %v3196 = vunpack.c.0.s8 %v3195
      %v3197 = vlaneseq
      %v3198 = vshrl.u32 %v3197, 7
      %v3199 = vsub.s32 %v3196, %v3198
      %v3200 = vrot.slane %v3186, %v3199
      %v3201 = vcombine.low %v3193, %v3200
      %v3202 = vcombine.low %v1778, %v1782
      %v3203 = vcombine.low %v1786, %v1790
      %v3205 = vunpack.c.l.s4 1983009808
      %v3206 = vunpack.c.0.s8 %v3205
      %v3207 = vlaneseq
      %v3208 = vshrl.u32 %v3207, 7
      %v3209 = vsub.s32 %v3206, %v3208
      %v3210 = vrot.slane %v3202, %v3209
      %v3212 = vunpack.c.l.s4 1983009808
      %v3213 = vunpack.c.0.s8 %v3212
      %v3214 = vlaneseq
      %v3215 = vshrl.u32 %v3214, 7
      %v3216 = vsub.s32 %v3213, %v3215
      %v3217 = vrot.slane %v3203, %v3216
      %v3218 = vcombine.low %v3210, %v3217
      %v3219 = vcombine.low %v1802, %v1806
      %v3220 = vcombine.low %v1810, %v1814
      %v3222 = vunpack.c.l.s4 1983009808
      %v3223 = vunpack.c.0.s8 %v3222
      %v3224 = vlaneseq
      %v3225 = vshrl.u32 %v3224, 7
      %v3226 = vsub.s32 %v3223, %v3225
      %v3227 = vrot.slane %v3219, %v3226
      %v3229 = vunpack.c.l.s4 1983009808
      %v3230 = vunpack.c.0.s8 %v3229
      %v3231 = vlaneseq
      %v3232 = vshrl.u32 %v3231, 7
      %v3233 = vsub.s32 %v3230, %v3232
      %v3234 = vrot.slane %v3220, %v3233
      %v3235 = vcombine.low %v3227, %v3234
      %v3236 = vcombine.low %v1818, %v1822
      %v3237 = vcombine.low %v1826, %v1830
      %v3239 = vunpack.c.l.s4 1983009808
      %v3240 = vunpack.c.0.s8 %v3239
      %v3241 = vlaneseq
      %v3242 = vshrl.u32 %v3241, 7
      %v3243 = vsub.s32 %v3240, %v3242
      %v3244 = vrot.slane %v3236, %v3243
      %v3246 = vunpack.c.l.s4 1983009808
      %v3247 = vunpack.c.0.s8 %v3246
      %v3248 = vlaneseq
      %v3249 = vshrl.u32 %v3248, 7
      %v3250 = vsub.s32 %v3247, %v3249
      %v3251 = vrot.slane %v3237, %v3250
      %v3252 = vcombine.low %v3244, %v3251
      %v3253 = vcombine.low %v1834, %v1838
      %v3254 = vcombine.low %v1842, %v1846
      %v3256 = vunpack.c.l.s4 1983009808
      %v3257 = vunpack.c.0.s8 %v3256
      %v3258 = vlaneseq
      %v3259 = vshrl.u32 %v3258, 7
      %v3260 = vsub.s32 %v3257, %v3259
      %v3261 = vrot.slane %v3253, %v3260
      %v3263 = vunpack.c.l.s4 1983009808
      %v3264 = vunpack.c.0.s8 %v3263
      %v3265 = vlaneseq
      %v3266 = vshrl.u32 %v3265, 7
      %v3267 = vsub.s32 %v3264, %v3266
      %v3268 = vrot.slane %v3254, %v3267
      %v3269 = vcombine.low %v3261, %v3268
      %v3270 = vcombine.low %v1850, %v1854
      %v3271 = vcombine.low %v1858, %v1862
      %v3273 = vunpack.c.l.s4 1983009808
      %v3274 = vunpack.c.0.s8 %v3273
      %v3275 = vlaneseq
      %v3276 = vshrl.u32 %v3275, 7
      %v3277 = vsub.s32 %v3274, %v3276
      %v3278 = vrot.slane %v3270, %v3277
      %v3280 = vunpack.c.l.s4 1983009808
      %v3281 = vunpack.c.0.s8 %v3280
      %v3282 = vlaneseq
      %v3283 = vshrl.u32 %v3282, 7
      %v3284 = vsub.s32 %v3281, %v3283
      %v3285 = vrot.slane %v3271, %v3284
      %v3286 = vcombine.low %v3278, %v3285
      %v3287 = vcombine.low %v1874, %v1878
      %v3288 = vcombine.low %v1882, %v1886
      %v3290 = vunpack.c.l.s4 1983009808
      %v3291 = vunpack.c.0.s8 %v3290
      %v3292 = vlaneseq
      %v3293 = vshrl.u32 %v3292, 7
      %v3294 = vsub.s32 %v3291, %v3293
      %v3295 = vrot.slane %v3287, %v3294
      %v3297 = vunpack.c.l.s4 1983009808
      %v3298 = vunpack.c.0.s8 %v3297
      %v3299 = vlaneseq
      %v3300 = vshrl.u32 %v3299, 7
      %v3301 = vsub.s32 %v3298, %v3300
      %v3302 = vrot.slane %v3288, %v3301
      %v3303 = vcombine.low %v3295, %v3302
      %v3304 = vcombine.low %v1890, %v1894
      %v3305 = vcombine.low %v1898, %v1902
      %v3307 = vunpack.c.l.s4 1983009808
      %v3308 = vunpack.c.0.s8 %v3307
      %v3309 = vlaneseq
      %v3310 = vshrl.u32 %v3309, 7
      %v3311 = vsub.s32 %v3308, %v3310
      %v3312 = vrot.slane %v3304, %v3311
      %v3314 = vunpack.c.l.s4 1983009808
      %v3315 = vunpack.c.0.s8 %v3314
      %v3316 = vlaneseq
      %v3317 = vshrl.u32 %v3316, 7
      %v3318 = vsub.s32 %v3315, %v3317
      %v3319 = vrot.slane %v3305, %v3318
      %v3320 = vcombine.low %v3312, %v3319
      %v3321 = vcombine.low %v1906, %v1910
      %v3322 = vcombine.low %v1914, %v1918
      %v3324 = vunpack.c.l.s4 1983009808
      %v3325 = vunpack.c.0.s8 %v3324
      %v3326 = vlaneseq
      %v3327 = vshrl.u32 %v3326, 7
      %v3328 = vsub.s32 %v3325, %v3327
      %v3329 = vrot.slane %v3321, %v3328
      %v3331 = vunpack.c.l.s4 1983009808
      %v3332 = vunpack.c.0.s8 %v3331
      %v3333 = vlaneseq
      %v3334 = vshrl.u32 %v3333, 7
      %v3335 = vsub.s32 %v3332, %v3334
      %v3336 = vrot.slane %v3322, %v3335
      %v3337 = vcombine.low %v3329, %v3336
      %v3338 = vcombine.low %v1922, %v1926
      %v3339 = vcombine.low %v1930, %v1934
      %v3341 = vunpack.c.l.s4 1983009808
      %v3342 = vunpack.c.0.s8 %v3341
      %v3343 = vlaneseq
      %v3344 = vshrl.u32 %v3343, 7
      %v3345 = vsub.s32 %v3342, %v3344
      %v3346 = vrot.slane %v3338, %v3345
      %v3348 = vunpack.c.l.s4 1983009808
      %v3349 = vunpack.c.0.s8 %v3348
      %v3350 = vlaneseq
      %v3351 = vshrl.u32 %v3350, 7
      %v3352 = vsub.s32 %v3349, %v3351
      %v3353 = vrot.slane %v3339, %v3352
      %v3354 = vcombine.low %v3346, %v3353
      %v3355 = vcombine.low %v1946, %v1950
      %v3356 = vcombine.low %v1954, %v1958
      %v3358 = vunpack.c.l.s4 1983009808
      %v3359 = vunpack.c.0.s8 %v3358
      %v3360 = vlaneseq
      %v3361 = vshrl.u32 %v3360, 7
      %v3362 = vsub.s32 %v3359, %v3361
      %v3363 = vrot.slane %v3355, %v3362
      %v3365 = vunpack.c.l.s4 1983009808
      %v3366 = vunpack.c.0.s8 %v3365
      %v3367 = vlaneseq
      %v3368 = vshrl.u32 %v3367, 7
      %v3369 = vsub.s32 %v3366, %v3368
      %v3370 = vrot.slane %v3356, %v3369
      %v3371 = vcombine.low %v3363, %v3370
      %v3372 = vcombine.low %v1962, %v1966
      %v3373 = vcombine.low %v1970, %v1974
      %v3375 = vunpack.c.l.s4 1983009808
      %v3376 = vunpack.c.0.s8 %v3375
      %v3377 = vlaneseq
      %v3378 = vshrl.u32 %v3377, 7
      %v3379 = vsub.s32 %v3376, %v3378
      %v3380 = vrot.slane %v3372, %v3379
      %v3382 = vunpack.c.l.s4 1983009808
      %v3383 = vunpack.c.0.s8 %v3382
      %v3384 = vlaneseq
      %v3385 = vshrl.u32 %v3384, 7
      %v3386 = vsub.s32 %v3383, %v3385
      %v3387 = vrot.slane %v3373, %v3386
      %v3388 = vcombine.low %v3380, %v3387
      %v3389 = vcombine.low %v1978, %v1982
      %v3390 = vcombine.low %v1986, %v1990
      %v3392 = vunpack.c.l.s4 1983009808
      %v3393 = vunpack.c.0.s8 %v3392
      %v3394 = vlaneseq
      %v3395 = vshrl.u32 %v3394, 7
      %v3396 = vsub.s32 %v3393, %v3395
      %v3397 = vrot.slane %v3389, %v3396
      %v3399 = vunpack.c.l.s4 1983009808
      %v3400 = vunpack.c.0.s8 %v3399
      %v3401 = vlaneseq
      %v3402 = vshrl.u32 %v3401, 7
      %v3403 = vsub.s32 %v3400, %v3402
      %v3404 = vrot.slane %v3390, %v3403
      %v3405 = vcombine.low %v3397, %v3404
      %v3406 = vcombine.low %v1994, %v1998
      %v3407 = vcombine.low %v2002, %v2006
      %v3409 = vunpack.c.l.s4 1983009808
      %v3410 = vunpack.c.0.s8 %v3409
      %v3411 = vlaneseq
      %v3412 = vshrl.u32 %v3411, 7
      %v3413 = vsub.s32 %v3410, %v3412
      %v3414 = vrot.slane %v3406, %v3413
      %v3416 = vunpack.c.l.s4 1983009808
      %v3417 = vunpack.c.0.s8 %v3416
      %v3418 = vlaneseq
      %v3419 = vshrl.u32 %v3418, 7
      %v3420 = vsub.s32 %v3417, %v3419
      %v3421 = vrot.slane %v3407, %v3420
      %v3422 = vcombine.low %v3414, %v3421
      %v3423 = vcombine.low %v2018, %v2022
      %v3424 = vcombine.low %v2026, %v2030
      %v3426 = vunpack.c.l.s4 1983009808
      %v3427 = vunpack.c.0.s8 %v3426
      %v3428 = vlaneseq
      %v3429 = vshrl.u32 %v3428, 7
      %v3430 = vsub.s32 %v3427, %v3429
      %v3431 = vrot.slane %v3423, %v3430
      %v3433 = vunpack.c.l.s4 1983009808
      %v3434 = vunpack.c.0.s8 %v3433
      %v3435 = vlaneseq
      %v3436 = vshrl.u32 %v3435, 7
      %v3437 = vsub.s32 %v3434, %v3436
      %v3438 = vrot.slane %v3424, %v3437
      %v3439 = vcombine.low %v3431, %v3438
      %v3440 = vcombine.low %v2034, %v2038
      %v3441 = vcombine.low %v2042, %v2046
      %v3443 = vunpack.c.l.s4 1983009808
      %v3444 = vunpack.c.0.s8 %v3443
      %v3445 = vlaneseq
      %v3446 = vshrl.u32 %v3445, 7
      %v3447 = vsub.s32 %v3444, %v3446
      %v3448 = vrot.slane %v3440, %v3447
      %v3450 = vunpack.c.l.s4 1983009808
      %v3451 = vunpack.c.0.s8 %v3450
      %v3452 = vlaneseq
      %v3453 = vshrl.u32 %v3452, 7
      %v3454 = vsub.s32 %v3451, %v3453
      %v3455 = vrot.slane %v3441, %v3454
      %v3456 = vcombine.low %v3448, %v3455
      %v3457 = vcombine.low %v2050, %v2054
      %v3458 = vcombine.low %v2058, %v2062
      %v3460 = vunpack.c.l.s4 1983009808
      %v3461 = vunpack.c.0.s8 %v3460
      %v3462 = vlaneseq
      %v3463 = vshrl.u32 %v3462, 7
      %v3464 = vsub.s32 %v3461, %v3463
      %v3465 = vrot.slane %v3457, %v3464
      %v3467 = vunpack.c.l.s4 1983009808
      %v3468 = vunpack.c.0.s8 %v3467
      %v3469 = vlaneseq
      %v3470 = vshrl.u32 %v3469, 7
      %v3471 = vsub.s32 %v3468, %v3470
      %v3472 = vrot.slane %v3458, %v3471
      %v3473 = vcombine.low %v3465, %v3472
      %v3474 = vcombine.low %v2066, %v2070
      %v3475 = vcombine.low %v2074, %v2078
      %v3477 = vunpack.c.l.s4 1983009808
      %v3478 = vunpack.c.0.s8 %v3477
      %v3479 = vlaneseq
      %v3480 = vshrl.u32 %v3479, 7
      %v3481 = vsub.s32 %v3478, %v3480
      %v3482 = vrot.slane %v3474, %v3481
      %v3484 = vunpack.c.l.s4 1983009808
      %v3485 = vunpack.c.0.s8 %v3484
      %v3486 = vlaneseq
      %v3487 = vshrl.u32 %v3486, 7
      %v3488 = vsub.s32 %v3485, %v3487
      %v3489 = vrot.slane %v3475, %v3488
      %v3490 = vcombine.low %v3482, %v3489
      %v3491 = vcombine.low %v2090, %v2094
      %v3492 = vcombine.low %v2098, %v2102
      %v3494 = vunpack.c.l.s4 1983009808
      %v3495 = vunpack.c.0.s8 %v3494
      %v3496 = vlaneseq
      %v3497 = vshrl.u32 %v3496, 7
      %v3498 = vsub.s32 %v3495, %v3497
      %v3499 = vrot.slane %v3491, %v3498
      %v3501 = vunpack.c.l.s4 1983009808
      %v3502 = vunpack.c.0.s8 %v3501
      %v3503 = vlaneseq
      %v3504 = vshrl.u32 %v3503, 7
      %v3505 = vsub.s32 %v3502, %v3504
      %v3506 = vrot.slane %v3492, %v3505
      %v3507 = vcombine.low %v3499, %v3506
      %v3508 = vcombine.low %v2106, %v2110
      %v3509 = vcombine.low %v2114, %v2118
      %v3511 = vunpack.c.l.s4 1983009808
      %v3512 = vunpack.c.0.s8 %v3511
      %v3513 = vlaneseq
      %v3514 = vshrl.u32 %v3513, 7
      %v3515 = vsub.s32 %v3512, %v3514
      %v3516 = vrot.slane %v3508, %v3515
      %v3518 = vunpack.c.l.s4 1983009808
      %v3519 = vunpack.c.0.s8 %v3518
      %v3520 = vlaneseq
      %v3521 = vshrl.u32 %v3520, 7
      %v3522 = vsub.s32 %v3519, %v3521
      %v3523 = vrot.slane %v3509, %v3522
      %v3524 = vcombine.low %v3516, %v3523
      %v3525 = vcombine.low %v2122, %v2126
      %v3526 = vcombine.low %v2130, %v2134
      %v3528 = vunpack.c.l.s4 1983009808
      %v3529 = vunpack.c.0.s8 %v3528
      %v3530 = vlaneseq
      %v3531 = vshrl.u32 %v3530, 7
      %v3532 = vsub.s32 %v3529, %v3531
      %v3533 = vrot.slane %v3525, %v3532
      %v3535 = vunpack.c.l.s4 1983009808
      %v3536 = vunpack.c.0.s8 %v3535
      %v3537 = vlaneseq
      %v3538 = vshrl.u32 %v3537, 7
      %v3539 = vsub.s32 %v3536, %v3538
      %v3540 = vrot.slane %v3526, %v3539
      %v3541 = vcombine.low %v3533, %v3540
      %v3542 = vcombine.low %v2138, %v2142
      %v3543 = vcombine.low %v2146, %v2150
      %v3545 = vunpack.c.l.s4 1983009808
      %v3546 = vunpack.c.0.s8 %v3545
      %v3547 = vlaneseq
      %v3548 = vshrl.u32 %v3547, 7
      %v3549 = vsub.s32 %v3546, %v3548
      %v3550 = vrot.slane %v3542, %v3549
      %v3552 = vunpack.c.l.s4 1983009808
      %v3553 = vunpack.c.0.s8 %v3552
      %v3554 = vlaneseq
      %v3555 = vshrl.u32 %v3554, 7
      %v3556 = vsub.s32 %v3553, %v3555
      %v3557 = vrot.slane %v3543, %v3556
      %v3558 = vcombine.low %v3550, %v3557
      %vm3559 = vcmask 1040384
      %v3560 = vrot.slane %v2963, 7
      %v3561 = vrot.slane %v2980, 7
      %v3562 = vsel %vm3559, %v3560, %v3561
      %v3563 = vrot.slane %v2997, 7
      %v3564 = vsel %vm3559, %v3561, %v3563
      %v3565 = vrot.slane %v3014, 7
      %v3566 = vsel %vm3559, %v3563, %v3565
      %v3567 = vrot.slane %v3031, 7
      %v3568 = vrot.slane %v3048, 7
      %v3569 = vsel %vm3559, %v3567, %v3568
      %v3570 = vrot.slane %v3065, 7
      %v3571 = vsel %vm3559, %v3568, %v3570
      %v3572 = vrot.slane %v3082, 7
      %v3573 = vsel %vm3559, %v3570, %v3572
      %v3574 = vrot.slane %v3099, 7
      %v3575 = vrot.slane %v3116, 7
      %v3576 = vsel %vm3559, %v3574, %v3575
      %v3577 = vrot.slane %v3133, 7
      %v3578 = vsel %vm3559, %v3575, %v3577
      %v3579 = vrot.slane %v3150, 7
      %v3580 = vsel %vm3559, %v3577, %v3579
      %v3581 = vrot.slane %v3167, 7
      %v3582 = vrot.slane %v3184, 7
      %v3583 = vsel %vm3559, %v3581, %v3582
      %v3584 = vrot.slane %v3201, 7
      %v3585 = vsel %vm3559, %v3582, %v3584
      %v3586 = vrot.slane %v3218, 7
      %v3587 = vsel %vm3559, %v3584, %v3586
      %v3588 = vrot.slane %v3235, 7
      %v3589 = vrot.slane %v3252, 7
      %v3590 = vsel %vm3559, %v3588, %v3589
      %v3591 = vrot.slane %v3269, 7
      %v3592 = vsel %vm3559, %v3589, %v3591
      %v3593 = vrot.slane %v3286, 7
      %v3594 = vsel %vm3559, %v3591, %v3593
      %v3595 = vrot.slane %v3303, 7
      %v3596 = vrot.slane %v3320, 7
      %v3597 = vsel %vm3559, %v3595, %v3596
      %v3598 = vrot.slane %v3337, 7
      %v3599 = vsel %vm3559, %v3596, %v3598
      %v3600 = vrot.slane %v3354, 7
      %v3601 = vsel %vm3559, %v3598, %v3600
      %v3602 = vrot.slane %v3371, 7
      %v3603 = vrot.slane %v3388, 7
      %v3604 = vsel %vm3559, %v3602, %v3603
      %v3605 = vrot.slane %v3405, 7
      %v3606 = vsel %vm3559, %v3603, %v3605
      %v3607 = vrot.slane %v3422, 7
      %v3608 = vsel %vm3559, %v3605, %v3607
      %v3609 = vrot.slane %v3439, 7
      %v3610 = vrot.slane %v3456, 7
      %v3611 = vsel %vm3559, %v3609, %v3610
      %v3612 = vrot.slane %v3473, 7
      %v3613 = vsel %vm3559, %v3610, %v3612
      %v3614 = vrot.slane %v3490, 7
      %v3615 = vsel %vm3559, %v3612, %v3614
      %v3616 = vrot.slane %v3507, 7
      %v3617 = vrot.slane %v3524, 7
      %v3618 = vsel %vm3559, %v3616, %v3617
      %v3619 = vrot.slane %v3541, 7
      %v3620 = vsel %vm3559, %v3617, %v3619
      %v3621 = vrot.slane %v3558, 7
      %v3622 = vsel %vm3559, %v3619, %v3621
      %3623 = vrot.lane.b32.xlu0 %v3560, 4
      %v3624 = vpop.permute.xlu0 %3623
      %3625 = vrot.lane.b32.xlu0 %v3562, 4
      %v3626 = vpop.permute.xlu0 %3625
      %3627 = vrot.lane.b32.xlu0 %v3564, 4
      %v3628 = vpop.permute.xlu0 %3627
      %3629 = vrot.lane.b32.xlu0 %v3566, 4
      %v3630 = vpop.permute.xlu0 %3629
      %3631 = vrot.lane.b32.xlu0 %v3565, 4
      %v3632 = vpop.permute.xlu0 %3631
      %3633 = vrot.lane.b32.xlu0 %v3567, 4
      %v3634 = vpop.permute.xlu0 %3633
      %3635 = vrot.lane.b32.xlu0 %v3569, 4
      %v3636 = vpop.permute.xlu0 %3635
      %3637 = vrot.lane.b32.xlu0 %v3571, 4
      %v3638 = vpop.permute.xlu0 %3637
      %3639 = vrot.lane.b32.xlu0 %v3573, 4
      %v3640 = vpop.permute.xlu0 %3639
      %3641 = vrot.lane.b32.xlu0 %v3572, 4
      %v3642 = vpop.permute.xlu0 %3641
      %3643 = vrot.lane.b32.xlu0 %v3574, 4
      %v3644 = vpop.permute.xlu0 %3643
      %3645 = vrot.lane.b32.xlu0 %v3576, 4
      %v3646 = vpop.permute.xlu0 %3645
      %3647 = vrot.lane.b32.xlu0 %v3578, 4
      %v3648 = vpop.permute.xlu0 %3647
      %3649 = vrot.lane.b32.xlu0 %v3580, 4
      %v3650 = vpop.permute.xlu0 %3649
      %3651 = vrot.lane.b32.xlu0 %v3579, 4
      %v3652 = vpop.permute.xlu0 %3651
      %3653 = vrot.lane.b32.xlu0 %v3581, 4
      %v3654 = vpop.permute.xlu0 %3653
      %3655 = vrot.lane.b32.xlu0 %v3583, 4
      %v3656 = vpop.permute.xlu0 %3655
      %3657 = vrot.lane.b32.xlu0 %v3585, 4
      %v3658 = vpop.permute.xlu0 %3657
      %3659 = vrot.lane.b32.xlu0 %v3587, 4
      %v3660 = vpop.permute.xlu0 %3659
      %3661 = vrot.lane.b32.xlu0 %v3586, 4
      %v3662 = vpop.permute.xlu0 %3661
      %3663 = vrot.lane.b32.xlu0 %v3588, 4
      %v3664 = vpop.permute.xlu0 %3663
      %3665 = vrot.lane.b32.xlu0 %v3590, 4
      %v3666 = vpop.permute.xlu0 %3665
      %3667 = vrot.lane.b32.xlu0 %v3592, 4
      %v3668 = vpop.permute.xlu0 %3667
      %3669 = vrot.lane.b32.xlu0 %v3594, 4
      %v3670 = vpop.permute.xlu0 %3669
      %3671 = vrot.lane.b32.xlu0 %v3593, 4
      %v3672 = vpop.permute.xlu0 %3671
      %3673 = vrot.lane.b32.xlu0 %v3595, 4
      %v3674 = vpop.permute.xlu0 %3673
      %3675 = vrot.lane.b32.xlu0 %v3597, 4
      %v3676 = vpop.permute.xlu0 %3675
      %3677 = vrot.lane.b32.xlu0 %v3599, 4
      %v3678 = vpop.permute.xlu0 %3677
      %3679 = vrot.lane.b32.xlu0 %v3601, 4
      %v3680 = vpop.permute.xlu0 %3679
      %3681 = vrot.lane.b32.xlu0 %v3600, 4
      %v3682 = vpop.permute.xlu0 %3681
      %3683 = vrot.lane.b32.xlu0 %v3602, 4
      %v3684 = vpop.permute.xlu0 %3683
      %3685 = vrot.lane.b32.xlu0 %v3604, 4
      %v3686 = vpop.permute.xlu0 %3685
      %3687 = vrot.lane.b32.xlu0 %v3606, 4
      %v3688 = vpop.permute.xlu0 %3687
      %3689 = vrot.lane.b32.xlu0 %v3608, 4
      %v3690 = vpop.permute.xlu0 %3689
      %3691 = vrot.lane.b32.xlu0 %v3607, 4
      %v3692 = vpop.permute.xlu0 %3691
      %3693 = vrot.lane.b32.xlu0 %v3609, 4
      %v3694 = vpop.permute.xlu0 %3693
      %3695 = vrot.lane.b32.xlu0 %v3611, 4
      %v3696 = vpop.permute.xlu0 %3695
      %3697 = vrot.lane.b32.xlu0 %v3613, 4
      %v3698 = vpop.permute.xlu0 %3697
      %3699 = vrot.lane.b32.xlu0 %v3615, 4
      %v3700 = vpop.permute.xlu0 %3699
      %3701 = vrot.lane.b32.xlu0 %v3614, 4
      %v3702 = vpop.permute.xlu0 %3701
      %3703 = vrot.lane.b32.xlu0 %v3616, 4
      %v3704 = vpop.permute.xlu0 %3703
      %3705 = vrot.lane.b32.xlu0 %v3618, 4
      %v3706 = vpop.permute.xlu0 %3705
      %3707 = vrot.lane.b32.xlu0 %v3620, 4
      %v3708 = vpop.permute.xlu0 %3707
      %3709 = vrot.lane.b32.xlu0 %v3622, 4
      %v3710 = vpop.permute.xlu0 %3709
      %3711 = vrot.lane.b32.xlu0 %v3621, 4
      %v3712 = vpop.permute.xlu0 %3711
      %v3759 = vunpack.c.l.s4 1983009808
      %v3760 = vunpack.c.0.s8 %v3759
      %v3761 = vlaneseq
      %v3762 = vshrl.u32 %v3761, 7
      %v3763 = vsub.s32 %v3760, %v3762
      %v3764 = vrot.slane %v1578, %v3763
      %v3766 = vunpack.c.l.s4 1983009808
      %v3767 = vunpack.c.0.s8 %v3766
      %v3768 = vlaneseq
      %v3769 = vshrl.u32 %v3768, 7
      %v3770 = vsub.s32 %v3767, %v3769
      %v3771 = vrot.slane %v1650, %v3770
      %v3773 = vunpack.c.l.s4 1983009808
      %v3774 = vunpack.c.0.s8 %v3773
      %v3775 = vlaneseq
      %v3776 = vshrl.u32 %v3775, 7
      %v3777 = vsub.s32 %v3774, %v3776
      %v3778 = vrot.slane %v1722, %v3777
      %v3780 = vunpack.c.l.s4 1983009808
      %v3781 = vunpack.c.0.s8 %v3780
      %v3782 = vlaneseq
      %v3783 = vshrl.u32 %v3782, 7
      %v3784 = vsub.s32 %v3781, %v3783
      %v3785 = vrot.slane %v1794, %v3784
      %v3787 = vunpack.c.l.s4 1983009808
      %v3788 = vunpack.c.0.s8 %v3787
      %v3789 = vlaneseq
      %v3790 = vshrl.u32 %v3789, 7
      %v3791 = vsub.s32 %v3788, %v3790
      %v3792 = vrot.slane %v1866, %v3791
      %v3794 = vunpack.c.l.s4 1983009808
      %v3795 = vunpack.c.0.s8 %v3794
      %v3796 = vlaneseq
      %v3797 = vshrl.u32 %v3796, 7
      %v3798 = vsub.s32 %v3795, %v3797
      %v3799 = vrot.slane %v1938, %v3798
      %v3801 = vunpack.c.l.s4 1983009808
      %v3802 = vunpack.c.0.s8 %v3801
      %v3803 = vlaneseq
      %v3804 = vshrl.u32 %v3803, 7
      %v3805 = vsub.s32 %v3802, %v3804
      %v3806 = vrot.slane %v2010, %v3805
      %v3808 = vunpack.c.l.s4 1983009808
      %v3809 = vunpack.c.0.s8 %v3808
      %v3810 = vlaneseq
      %v3811 = vshrl.u32 %v3810, 7
      %v3812 = vsub.s32 %v3809, %v3811
      %v3813 = vrot.slane %v2082, %v3812
      %v3815 = vunpack.c.l.s4 1983009808
      %v3816 = vunpack.c.0.s8 %v3815
      %v3817 = vlaneseq
      %v3818 = vshrl.u32 %v3817, 7
      %v3819 = vsub.s32 %v3816, %v3818
      %v3820 = vrot.slane %v2154, %v3819
      %3821 = vrot.lane.b32.xlu0 %v2963, 8
      %v3822 = vpop.permute.xlu0 %3821
      %3823 = vrot.lane.b32.xlu0 %v2980, 8
      %v3824 = vpop.permute.xlu0 %3823
      %3825 = vrot.lane.b32.xlu0 %v2997, 8
      %v3826 = vpop.permute.xlu0 %3825
      %3827 = vrot.lane.b32.xlu0 %v3014, 8
      %v3828 = vpop.permute.xlu0 %3827
      %3829 = vrot.lane.b32.xlu0 %v3764, 8
      %v3830 = vpop.permute.xlu0 %3829
      %3831 = vrot.lane.b32.xlu0 %v3031, 8
      %v3832 = vpop.permute.xlu0 %3831
      %3833 = vrot.lane.b32.xlu0 %v3048, 8
      %v3834 = vpop.permute.xlu0 %3833
      %3835 = vrot.lane.b32.xlu0 %v3065, 8
      %v3836 = vpop.permute.xlu0 %3835
      %3837 = vrot.lane.b32.xlu0 %v3082, 8
      %v3838 = vpop.permute.xlu0 %3837
      %3839 = vrot.lane.b32.xlu0 %v3771, 8
      %v3840 = vpop.permute.xlu0 %3839
      %3841 = vrot.lane.b32.xlu0 %v3099, 8
      %v3842 = vpop.permute.xlu0 %3841
      %3843 = vrot.lane.b32.xlu0 %v3116, 8
      %v3844 = vpop.permute.xlu0 %3843
      %3845 = vrot.lane.b32.xlu0 %v3133, 8
      %v3846 = vpop.permute.xlu0 %3845
      %3847 = vrot.lane.b32.xlu0 %v3150, 8
      %v3848 = vpop.permute.xlu0 %3847
      %3849 = vrot.lane.b32.xlu0 %v3778, 8
      %v3850 = vpop.permute.xlu0 %3849
      %3851 = vrot.lane.b32.xlu0 %v3167, 8
      %v3852 = vpop.permute.xlu0 %3851
      %3853 = vrot.lane.b32.xlu0 %v3184, 8
      %v3854 = vpop.permute.xlu0 %3853
      %3855 = vrot.lane.b32.xlu0 %v3201, 8
      %v3856 = vpop.permute.xlu0 %3855
      %3857 = vrot.lane.b32.xlu0 %v3218, 8
      %v3858 = vpop.permute.xlu0 %3857
      %3859 = vrot.lane.b32.xlu0 %v3785, 8
      %v3860 = vpop.permute.xlu0 %3859
      %3861 = vrot.lane.b32.xlu0 %v3235, 8
      %v3862 = vpop.permute.xlu0 %3861
      %3863 = vrot.lane.b32.xlu0 %v3252, 8
      %v3864 = vpop.permute.xlu0 %3863
      %3865 = vrot.lane.b32.xlu0 %v3269, 8
      %v3866 = vpop.permute.xlu0 %3865
      %3867 = vrot.lane.b32.xlu0 %v3286, 8
      %v3868 = vpop.permute.xlu0 %3867
      %3869 = vrot.lane.b32.xlu0 %v3792, 8
      %v3870 = vpop.permute.xlu0 %3869
      %3871 = vrot.lane.b32.xlu0 %v3303, 8
      %v3872 = vpop.permute.xlu0 %3871
      %3873 = vrot.lane.b32.xlu0 %v3320, 8
      %v3874 = vpop.permute.xlu0 %3873
      %3875 = vrot.lane.b32.xlu0 %v3337, 8
      %v3876 = vpop.permute.xlu0 %3875
      %3877 = vrot.lane.b32.xlu0 %v3354, 8
      %v3878 = vpop.permute.xlu0 %3877
      %3879 = vrot.lane.b32.xlu0 %v3799, 8
      %v3880 = vpop.permute.xlu0 %3879
      %3881 = vrot.lane.b32.xlu0 %v3371, 8
      %v3882 = vpop.permute.xlu0 %3881
      %3883 = vrot.lane.b32.xlu0 %v3388, 8
      %v3884 = vpop.permute.xlu0 %3883
      %3885 = vrot.lane.b32.xlu0 %v3405, 8
      %v3886 = vpop.permute.xlu0 %3885
      %3887 = vrot.lane.b32.xlu0 %v3422, 8
      %v3888 = vpop.permute.xlu0 %3887
      %3889 = vrot.lane.b32.xlu0 %v3806, 8
      %v3890 = vpop.permute.xlu0 %3889
      %3891 = vrot.lane.b32.xlu0 %v3439, 8
      %v3892 = vpop.permute.xlu0 %3891
      %3893 = vrot.lane.b32.xlu0 %v3456, 8
      %v3894 = vpop.permute.xlu0 %3893
      %3895 = vrot.lane.b32.xlu0 %v3473, 8
      %v3896 = vpop.permute.xlu0 %3895
      %3897 = vrot.lane.b32.xlu0 %v3490, 8
      %v3898 = vpop.permute.xlu0 %3897
      %3899 = vrot.lane.b32.xlu0 %v3813, 8
      %v3900 = vpop.permute.xlu0 %3899
      %3901 = vrot.lane.b32.xlu0 %v3507, 8
      %v3902 = vpop.permute.xlu0 %3901
      %3903 = vrot.lane.b32.xlu0 %v3524, 8
      %v3904 = vpop.permute.xlu0 %3903
      %3905 = vrot.lane.b32.xlu0 %v3541, 8
      %v3906 = vpop.permute.xlu0 %3905
      %3907 = vrot.lane.b32.xlu0 %v3558, 8
      %v3908 = vpop.permute.xlu0 %3907
      %3909 = vrot.lane.b32.xlu0 %v3820, 8
      %v3910 = vpop.permute.xlu0 %3909
      %3956 = vrot.lane.b32.xlu0 %v2318, 12
      %v3957 = vpop.permute.xlu0 %3956
      %3958 = vrot.lane.b32.xlu0 %v2335, 12
      %v3959 = vpop.permute.xlu0 %3958
      %3960 = vrot.lane.b32.xlu0 %v2352, 12
      %v3961 = vpop.permute.xlu0 %3960
      %3962 = vrot.lane.b32.xlu0 %v2369, 12
      %v3963 = vpop.permute.xlu0 %3962
      %3964 = vrot.lane.b32.xlu0 %v2376, 12
      %v3965 = vpop.permute.xlu0 %3964
      %3966 = vrot.lane.b32.xlu0 %v2393, 12
      %v3967 = vpop.permute.xlu0 %3966
      %3968 = vrot.lane.b32.xlu0 %v2410, 12
      %v3969 = vpop.permute.xlu0 %3968
      %3970 = vrot.lane.b32.xlu0 %v2427, 12
      %v3971 = vpop.permute.xlu0 %3970
      %3972 = vrot.lane.b32.xlu0 %v2444, 12
      %v3973 = vpop.permute.xlu0 %3972
      %3974 = vrot.lane.b32.xlu0 %v2451, 12
      %v3975 = vpop.permute.xlu0 %3974
      %3976 = vrot.lane.b32.xlu0 %v2468, 12
      %v3977 = vpop.permute.xlu0 %3976
      %3978 = vrot.lane.b32.xlu0 %v2485, 12
      %v3979 = vpop.permute.xlu0 %3978
      %3980 = vrot.lane.b32.xlu0 %v2502, 12
      %v3981 = vpop.permute.xlu0 %3980
      %3982 = vrot.lane.b32.xlu0 %v2519, 12
      %v3983 = vpop.permute.xlu0 %3982
      %3984 = vrot.lane.b32.xlu0 %v2526, 12
      %v3985 = vpop.permute.xlu0 %3984
      %3986 = vrot.lane.b32.xlu0 %v2543, 12
      %v3987 = vpop.permute.xlu0 %3986
      %3988 = vrot.lane.b32.xlu0 %v2560, 12
      %v3989 = vpop.permute.xlu0 %3988
      %3990 = vrot.lane.b32.xlu0 %v2577, 12
      %v3991 = vpop.permute.xlu0 %3990
      %3992 = vrot.lane.b32.xlu0 %v2594, 12
      %v3993 = vpop.permute.xlu0 %3992
      %3994 = vrot.lane.b32.xlu0 %v2601, 12
      %v3995 = vpop.permute.xlu0 %3994
      %3996 = vrot.lane.b32.xlu0 %v2618, 12
      %v3997 = vpop.permute.xlu0 %3996
      %3998 = vrot.lane.b32.xlu0 %v2635, 12
      %v3999 = vpop.permute.xlu0 %3998
      %4000 = vrot.lane.b32.xlu0 %v2652, 12
      %v4001 = vpop.permute.xlu0 %4000
      %4002 = vrot.lane.b32.xlu0 %v2669, 12
      %v4003 = vpop.permute.xlu0 %4002
      %4004 = vrot.lane.b32.xlu0 %v2676, 12
      %v4005 = vpop.permute.xlu0 %4004
      %4006 = vrot.lane.b32.xlu0 %v2693, 12
      %v4007 = vpop.permute.xlu0 %4006
      %4008 = vrot.lane.b32.xlu0 %v2710, 12
      %v4009 = vpop.permute.xlu0 %4008
      %4010 = vrot.lane.b32.xlu0 %v2727, 12
      %v4011 = vpop.permute.xlu0 %4010
      %4012 = vrot.lane.b32.xlu0 %v2744, 12
      %v4013 = vpop.permute.xlu0 %4012
      %4014 = vrot.lane.b32.xlu0 %v2751, 12
      %v4015 = vpop.permute.xlu0 %4014
      %4016 = vrot.lane.b32.xlu0 %v2768, 12
      %v4017 = vpop.permute.xlu0 %4016
      %4018 = vrot.lane.b32.xlu0 %v2785, 12
      %v4019 = vpop.permute.xlu0 %4018
      %4020 = vrot.lane.b32.xlu0 %v2802, 12
      %v4021 = vpop.permute.xlu0 %4020
      %4022 = vrot.lane.b32.xlu0 %v2819, 12
      %v4023 = vpop.permute.xlu0 %4022
      %4024 = vrot.lane.b32.xlu0 %v2826, 12
      %v4025 = vpop.permute.xlu0 %4024
      %4026 = vrot.lane.b32.xlu0 %v2843, 12
      %v4027 = vpop.permute.xlu0 %4026
      %4028 = vrot.lane.b32.xlu0 %v2860, 12
      %v4029 = vpop.permute.xlu0 %4028
      %4030 = vrot.lane.b32.xlu0 %v2877, 12
      %v4031 = vpop.permute.xlu0 %4030
      %4032 = vrot.lane.b32.xlu0 %v2894, 12
      %v4033 = vpop.permute.xlu0 %4032
      %4034 = vrot.lane.b32.xlu0 %v2901, 12
      %v4035 = vpop.permute.xlu0 %4034
      %4076 = vrot.lane.b32.xlu0 %v3567, 16
      %v4077 = vpop.permute.xlu0 %4076
      %4078 = vrot.lane.b32.xlu0 %v3569, 16
      %v4079 = vpop.permute.xlu0 %4078
      %4080 = vrot.lane.b32.xlu0 %v3571, 16
      %v4081 = vpop.permute.xlu0 %4080
      %4082 = vrot.lane.b32.xlu0 %v3573, 16
      %v4083 = vpop.permute.xlu0 %4082
      %4084 = vrot.lane.b32.xlu0 %v3572, 16
      %v4085 = vpop.permute.xlu0 %4084
      %4086 = vrot.lane.b32.xlu0 %v3574, 16
      %v4087 = vpop.permute.xlu0 %4086
      %4088 = vrot.lane.b32.xlu0 %v3576, 16
      %v4089 = vpop.permute.xlu0 %4088
      %4090 = vrot.lane.b32.xlu0 %v3578, 16
      %v4091 = vpop.permute.xlu0 %4090
      %4092 = vrot.lane.b32.xlu0 %v3580, 16
      %v4093 = vpop.permute.xlu0 %4092
      %4094 = vrot.lane.b32.xlu0 %v3579, 16
      %v4095 = vpop.permute.xlu0 %4094
      %4096 = vrot.lane.b32.xlu0 %v3581, 16
      %v4097 = vpop.permute.xlu0 %4096
      %4098 = vrot.lane.b32.xlu0 %v3583, 16
      %v4099 = vpop.permute.xlu0 %4098
      %4100 = vrot.lane.b32.xlu0 %v3585, 16
      %v4101 = vpop.permute.xlu0 %4100
      %4102 = vrot.lane.b32.xlu0 %v3587, 16
      %v4103 = vpop.permute.xlu0 %4102
      %4104 = vrot.lane.b32.xlu0 %v3586, 16
      %v4105 = vpop.permute.xlu0 %4104
      %4106 = vrot.lane.b32.xlu0 %v3588, 16
      %v4107 = vpop.permute.xlu0 %4106
      %4108 = vrot.lane.b32.xlu0 %v3590, 16
      %v4109 = vpop.permute.xlu0 %4108
      %4110 = vrot.lane.b32.xlu0 %v3592, 16
      %v4111 = vpop.permute.xlu0 %4110
      %4112 = vrot.lane.b32.xlu0 %v3594, 16
      %v4113 = vpop.permute.xlu0 %4112
      %4114 = vrot.lane.b32.xlu0 %v3593, 16
      %v4115 = vpop.permute.xlu0 %4114
      %4116 = vrot.lane.b32.xlu0 %v3595, 16
      %v4117 = vpop.permute.xlu0 %4116
      %4118 = vrot.lane.b32.xlu0 %v3597, 16
      %v4119 = vpop.permute.xlu0 %4118
      %4120 = vrot.lane.b32.xlu0 %v3599, 16
      %v4121 = vpop.permute.xlu0 %4120
      %4122 = vrot.lane.b32.xlu0 %v3601, 16
      %v4123 = vpop.permute.xlu0 %4122
      %4124 = vrot.lane.b32.xlu0 %v3600, 16
      %v4125 = vpop.permute.xlu0 %4124
      %4126 = vrot.lane.b32.xlu0 %v3602, 16
      %v4127 = vpop.permute.xlu0 %4126
      %4128 = vrot.lane.b32.xlu0 %v3604, 16
      %v4129 = vpop.permute.xlu0 %4128
      %4130 = vrot.lane.b32.xlu0 %v3606, 16
      %v4131 = vpop.permute.xlu0 %4130
      %4132 = vrot.lane.b32.xlu0 %v3608, 16
      %v4133 = vpop.permute.xlu0 %4132
      %4134 = vrot.lane.b32.xlu0 %v3607, 16
      %v4135 = vpop.permute.xlu0 %4134
      %4136 = vrot.lane.b32.xlu0 %v3609, 16
      %v4137 = vpop.permute.xlu0 %4136
      %4138 = vrot.lane.b32.xlu0 %v3611, 16
      %v4139 = vpop.permute.xlu0 %4138
      %4140 = vrot.lane.b32.xlu0 %v3613, 16
      %v4141 = vpop.permute.xlu0 %4140
      %4142 = vrot.lane.b32.xlu0 %v3615, 16
      %v4143 = vpop.permute.xlu0 %4142
      %4144 = vrot.lane.b32.xlu0 %v3614, 16
      %v4145 = vpop.permute.xlu0 %4144
      %4146 = vrot.lane.b32.xlu0 %v3616, 16
      %v4147 = vpop.permute.xlu0 %4146
      %4148 = vrot.lane.b32.xlu0 %v3618, 16
      %v4149 = vpop.permute.xlu0 %4148
      %4150 = vrot.lane.b32.xlu0 %v3620, 16
      %v4151 = vpop.permute.xlu0 %4150
      %4152 = vrot.lane.b32.xlu0 %v3622, 16
      %v4153 = vpop.permute.xlu0 %4152
      %4154 = vrot.lane.b32.xlu0 %v3621, 16
      %v4155 = vpop.permute.xlu0 %4154
      %4196 = vrot.lane.b32.xlu0 %v3031, 20
      %v4197 = vpop.permute.xlu0 %4196
      %4198 = vrot.lane.b32.xlu0 %v3048, 20
      %v4199 = vpop.permute.xlu0 %4198
      %4200 = vrot.lane.b32.xlu0 %v3065, 20
      %v4201 = vpop.permute.xlu0 %4200
      %4202 = vrot.lane.b32.xlu0 %v3082, 20
      %v4203 = vpop.permute.xlu0 %4202
      %4204 = vrot.lane.b32.xlu0 %v3771, 20
      %v4205 = vpop.permute.xlu0 %4204
      %4206 = vrot.lane.b32.xlu0 %v3099, 20
      %v4207 = vpop.permute.xlu0 %4206
      %4208 = vrot.lane.b32.xlu0 %v3116, 20
      %v4209 = vpop.permute.xlu0 %4208
      %4210 = vrot.lane.b32.xlu0 %v3133, 20
      %v4211 = vpop.permute.xlu0 %4210
      %4212 = vrot.lane.b32.xlu0 %v3150, 20
      %v4213 = vpop.permute.xlu0 %4212
      %4214 = vrot.lane.b32.xlu0 %v3778, 20
      %v4215 = vpop.permute.xlu0 %4214
      %4216 = vrot.lane.b32.xlu0 %v3167, 20
      %v4217 = vpop.permute.xlu0 %4216
      %4218 = vrot.lane.b32.xlu0 %v3184, 20
      %v4219 = vpop.permute.xlu0 %4218
      %4220 = vrot.lane.b32.xlu0 %v3201, 20
      %v4221 = vpop.permute.xlu0 %4220
      %4222 = vrot.lane.b32.xlu0 %v3218, 20
      %v4223 = vpop.permute.xlu0 %4222
      %4224 = vrot.lane.b32.xlu0 %v3785, 20
      %v4225 = vpop.permute.xlu0 %4224
      %4226 = vrot.lane.b32.xlu0 %v3235, 20
      %v4227 = vpop.permute.xlu0 %4226
      %4228 = vrot.lane.b32.xlu0 %v3252, 20
      %v4229 = vpop.permute.xlu0 %4228
      %4230 = vrot.lane.b32.xlu0 %v3269, 20
      %v4231 = vpop.permute.xlu0 %4230
      %4232 = vrot.lane.b32.xlu0 %v3286, 20
      %v4233 = vpop.permute.xlu0 %4232
      %4234 = vrot.lane.b32.xlu0 %v3792, 20
      %v4235 = vpop.permute.xlu0 %4234
      %4236 = vrot.lane.b32.xlu0 %v3303, 20
      %v4237 = vpop.permute.xlu0 %4236
      %4238 = vrot.lane.b32.xlu0 %v3320, 20
      %v4239 = vpop.permute.xlu0 %4238
      %4240 = vrot.lane.b32.xlu0 %v3337, 20
      %v4241 = vpop.permute.xlu0 %4240
      %4242 = vrot.lane.b32.xlu0 %v3354, 20
      %v4243 = vpop.permute.xlu0 %4242
      %4244 = vrot.lane.b32.xlu0 %v3799, 20
      %v4245 = vpop.permute.xlu0 %4244
      %4246 = vrot.lane.b32.xlu0 %v3371, 20
      %v4247 = vpop.permute.xlu0 %4246
      %4248 = vrot.lane.b32.xlu0 %v3388, 20
      %v4249 = vpop.permute.xlu0 %4248
      %4250 = vrot.lane.b32.xlu0 %v3405, 20
      %v4251 = vpop.permute.xlu0 %4250
      %4252 = vrot.lane.b32.xlu0 %v3422, 20
      %v4253 = vpop.permute.xlu0 %4252
      %4254 = vrot.lane.b32.xlu0 %v3806, 20
      %v4255 = vpop.permute.xlu0 %4254
      %4256 = vrot.lane.b32.xlu0 %v3439, 20
      %v4257 = vpop.permute.xlu0 %4256
      %4258 = vrot.lane.b32.xlu0 %v3456, 20
      %v4259 = vpop.permute.xlu0 %4258
      %4260 = vrot.lane.b32.xlu0 %v3473, 20
      %v4261 = vpop.permute.xlu0 %4260
      %4262 = vrot.lane.b32.xlu0 %v3490, 20
      %v4263 = vpop.permute.xlu0 %4262
      %4264 = vrot.lane.b32.xlu0 %v3813, 20
      %v4265 = vpop.permute.xlu0 %4264
      %4266 = vrot.lane.b32.xlu0 %v3507, 20
      %v4267 = vpop.permute.xlu0 %4266
      %4268 = vrot.lane.b32.xlu0 %v3524, 20
      %v4269 = vpop.permute.xlu0 %4268
      %4270 = vrot.lane.b32.xlu0 %v3541, 20
      %v4271 = vpop.permute.xlu0 %4270
      %4272 = vrot.lane.b32.xlu0 %v3558, 20
      %v4273 = vpop.permute.xlu0 %4272
      %4274 = vrot.lane.b32.xlu0 %v3820, 20
      %v4275 = vpop.permute.xlu0 %4274
      %v4316 = vcombine.low %v2158, %v2162
      %v4317 = vcombine.low %v2166, %v2170
      %v4319 = vunpack.c.l.s4 1983009808
      %v4320 = vunpack.c.0.s8 %v4319
      %v4321 = vlaneseq
      %v4322 = vshrl.u32 %v4321, 7
      %v4323 = vsub.s32 %v4320, %v4322
      %v4324 = vrot.slane %v4316, %v4323
      %v4326 = vunpack.c.l.s4 1983009808
      %v4327 = vunpack.c.0.s8 %v4326
      %v4328 = vlaneseq
      %v4329 = vshrl.u32 %v4328, 7
      %v4330 = vsub.s32 %v4327, %v4329
      %v4331 = vrot.slane %v4317, %v4330
      %v4332 = vcombine.low %v4324, %v4331
      %v4333 = vcombine.low %v2174, %v2178
      %v4334 = vcombine.low %v2182, %v2186
      %v4336 = vunpack.c.l.s4 1983009808
      %v4337 = vunpack.c.0.s8 %v4336
      %v4338 = vlaneseq
      %v4339 = vshrl.u32 %v4338, 7
      %v4340 = vsub.s32 %v4337, %v4339
      %v4341 = vrot.slane %v4333, %v4340
      %v4343 = vunpack.c.l.s4 1983009808
      %v4344 = vunpack.c.0.s8 %v4343
      %v4345 = vlaneseq
      %v4346 = vshrl.u32 %v4345, 7
      %v4347 = vsub.s32 %v4344, %v4346
      %v4348 = vrot.slane %v4334, %v4347
      %v4349 = vcombine.low %v4341, %v4348
      %v4350 = vcombine.low %v2190, %v2194
      %v4351 = vcombine.low %v2198, %v2202
      %v4353 = vunpack.c.l.s4 1983009808
      %v4354 = vunpack.c.0.s8 %v4353
      %v4355 = vlaneseq
      %v4356 = vshrl.u32 %v4355, 7
      %v4357 = vsub.s32 %v4354, %v4356
      %v4358 = vrot.slane %v4350, %v4357
      %v4360 = vunpack.c.l.s4 1983009808
      %v4361 = vunpack.c.0.s8 %v4360
      %v4362 = vlaneseq
      %v4363 = vshrl.u32 %v4362, 7
      %v4364 = vsub.s32 %v4361, %v4363
      %v4365 = vrot.slane %v4351, %v4364
      %v4366 = vcombine.low %v4358, %v4365
      %v4367 = vcombine.low %v2206, %v2210
      %v4368 = vcombine.low %v2214, %v2218
      %v4370 = vunpack.c.l.s4 1983009808
      %v4371 = vunpack.c.0.s8 %v4370
      %v4372 = vlaneseq
      %v4373 = vshrl.u32 %v4372, 7
      %v4374 = vsub.s32 %v4371, %v4373
      %v4375 = vrot.slane %v4367, %v4374
      %v4377 = vunpack.c.l.s4 1983009808
      %v4378 = vunpack.c.0.s8 %v4377
      %v4379 = vlaneseq
      %v4380 = vshrl.u32 %v4379, 7
      %v4381 = vsub.s32 %v4378, %v4380
      %v4382 = vrot.slane %v4368, %v4381
      %v4383 = vcombine.low %v4375, %v4382
      %v4385 = vunpack.c.l.s4 1983009808
      %v4386 = vunpack.c.0.s8 %v4385
      %v4387 = vlaneseq
      %v4388 = vshrl.u32 %v4387, 7
      %v4389 = vsub.s32 %v4386, %v4388
      %v4390 = vrot.slane %v2222, %v4389
      %4391 = vrot.lane.b32.xlu0 %v2318, 24
      %v4392 = vpop.permute.xlu0 %4391
      %4393 = vrot.lane.b32.xlu0 %v2335, 24
      %v4394 = vpop.permute.xlu0 %4393
      %4395 = vrot.lane.b32.xlu0 %v2352, 24
      %v4396 = vpop.permute.xlu0 %4395
      %4397 = vrot.lane.b32.xlu0 %v2369, 24
      %v4398 = vpop.permute.xlu0 %4397
      %4399 = vrot.lane.b32.xlu0 %v2376, 24
      %v4400 = vpop.permute.xlu0 %4399
      %4401 = vrot.lane.b32.xlu0 %v2393, 24
      %v4402 = vpop.permute.xlu0 %4401
      %4403 = vrot.lane.b32.xlu0 %v2410, 24
      %v4404 = vpop.permute.xlu0 %4403
      %4405 = vrot.lane.b32.xlu0 %v2427, 24
      %v4406 = vpop.permute.xlu0 %4405
      %4407 = vrot.lane.b32.xlu0 %v2444, 24
      %v4408 = vpop.permute.xlu0 %4407
      %4409 = vrot.lane.b32.xlu0 %v2451, 24
      %v4410 = vpop.permute.xlu0 %4409
      %4411 = vrot.lane.b32.xlu0 %v2468, 24
      %v4412 = vpop.permute.xlu0 %4411
      %4413 = vrot.lane.b32.xlu0 %v2485, 24
      %v4414 = vpop.permute.xlu0 %4413
      %4415 = vrot.lane.b32.xlu0 %v2502, 24
      %v4416 = vpop.permute.xlu0 %4415
      %4417 = vrot.lane.b32.xlu0 %v2519, 24
      %v4418 = vpop.permute.xlu0 %4417
      %4419 = vrot.lane.b32.xlu0 %v2526, 24
      %v4420 = vpop.permute.xlu0 %4419
      %4421 = vrot.lane.b32.xlu0 %v2543, 24
      %v4422 = vpop.permute.xlu0 %4421
      %4423 = vrot.lane.b32.xlu0 %v2560, 24
      %v4424 = vpop.permute.xlu0 %4423
      %4425 = vrot.lane.b32.xlu0 %v2577, 24
      %v4426 = vpop.permute.xlu0 %4425
      %4427 = vrot.lane.b32.xlu0 %v2594, 24
      %v4428 = vpop.permute.xlu0 %4427
      %4429 = vrot.lane.b32.xlu0 %v2601, 24
      %v4430 = vpop.permute.xlu0 %4429
      %4431 = vrot.lane.b32.xlu0 %v2618, 24
      %v4432 = vpop.permute.xlu0 %4431
      %4433 = vrot.lane.b32.xlu0 %v2635, 24
      %v4434 = vpop.permute.xlu0 %4433
      %4435 = vrot.lane.b32.xlu0 %v2652, 24
      %v4436 = vpop.permute.xlu0 %4435
      %4437 = vrot.lane.b32.xlu0 %v2669, 24
      %v4438 = vpop.permute.xlu0 %4437
      %4439 = vrot.lane.b32.xlu0 %v2676, 24
      %v4440 = vpop.permute.xlu0 %4439
      %4441 = vrot.lane.b32.xlu0 %v2693, 24
      %v4442 = vpop.permute.xlu0 %4441
      %4443 = vrot.lane.b32.xlu0 %v2710, 24
      %v4444 = vpop.permute.xlu0 %4443
      %4445 = vrot.lane.b32.xlu0 %v2727, 24
      %v4446 = vpop.permute.xlu0 %4445
      %4447 = vrot.lane.b32.xlu0 %v2744, 24
      %v4448 = vpop.permute.xlu0 %4447
      %4449 = vrot.lane.b32.xlu0 %v2751, 24
      %v4450 = vpop.permute.xlu0 %4449
      %4451 = vrot.lane.b32.xlu0 %v2768, 24
      %v4452 = vpop.permute.xlu0 %4451
      %4453 = vrot.lane.b32.xlu0 %v2785, 24
      %v4454 = vpop.permute.xlu0 %4453
      %4455 = vrot.lane.b32.xlu0 %v2802, 24
      %v4456 = vpop.permute.xlu0 %4455
      %4457 = vrot.lane.b32.xlu0 %v2819, 24
      %v4458 = vpop.permute.xlu0 %4457
      %4459 = vrot.lane.b32.xlu0 %v2826, 24
      %v4460 = vpop.permute.xlu0 %4459
      %4461 = vrot.lane.b32.xlu0 %v2843, 24
      %v4462 = vpop.permute.xlu0 %4461
      %4463 = vrot.lane.b32.xlu0 %v2860, 24
      %v4464 = vpop.permute.xlu0 %4463
      %4465 = vrot.lane.b32.xlu0 %v2877, 24
      %v4466 = vpop.permute.xlu0 %4465
      %4467 = vrot.lane.b32.xlu0 %v2894, 24
      %v4468 = vpop.permute.xlu0 %4467
      %4469 = vrot.lane.b32.xlu0 %v2901, 24
      %v4470 = vpop.permute.xlu0 %4469
      %4471 = vrot.lane.b32.xlu0 %v4332, 24
      %v4472 = vpop.permute.xlu0 %4471
      %4473 = vrot.lane.b32.xlu0 %v4349, 24
      %v4474 = vpop.permute.xlu0 %4473
      %4475 = vrot.lane.b32.xlu0 %v4366, 24
      %v4476 = vpop.permute.xlu0 %4475
      %4477 = vrot.lane.b32.xlu0 %v4383, 24
      %v4478 = vpop.permute.xlu0 %4477
      %4479 = vrot.lane.b32.xlu0 %v4390, 24
      %v4480 = vpop.permute.xlu0 %4479
      %v4526 = vcombine.low %v2162, %v2166
      %v4527 = vcombine.low %v2170, %v2174
      %v4529 = vunpack.c.l.s4 1983009808
      %v4530 = vunpack.c.0.s8 %v4529
      %v4531 = vlaneseq
      %v4532 = vshrl.u32 %v4531, 7
      %v4533 = vsub.s32 %v4530, %v4532
      %v4534 = vrot.slane %v4526, %v4533
      %v4536 = vunpack.c.l.s4 1983009808
      %v4537 = vunpack.c.0.s8 %v4536
      %v4538 = vlaneseq
      %v4539 = vshrl.u32 %v4538, 7
      %v4540 = vsub.s32 %v4537, %v4539
      %v4541 = vrot.slane %v4527, %v4540
      %v4542 = vcombine.low %v4534, %v4541
      %v4543 = vcombine.low %v2178, %v2182
      %v4544 = vcombine.low %v2186, %v2190
      %v4546 = vunpack.c.l.s4 1983009808
      %v4547 = vunpack.c.0.s8 %v4546
      %v4548 = vlaneseq
      %v4549 = vshrl.u32 %v4548, 7
      %v4550 = vsub.s32 %v4547, %v4549
      %v4551 = vrot.slane %v4543, %v4550
      %v4553 = vunpack.c.l.s4 1983009808
      %v4554 = vunpack.c.0.s8 %v4553
      %v4555 = vlaneseq
      %v4556 = vshrl.u32 %v4555, 7
      %v4557 = vsub.s32 %v4554, %v4556
      %v4558 = vrot.slane %v4544, %v4557
      %v4559 = vcombine.low %v4551, %v4558
      %v4560 = vcombine.low %v2194, %v2198
      %v4561 = vcombine.low %v2202, %v2206
      %v4563 = vunpack.c.l.s4 1983009808
      %v4564 = vunpack.c.0.s8 %v4563
      %v4565 = vlaneseq
      %v4566 = vshrl.u32 %v4565, 7
      %v4567 = vsub.s32 %v4564, %v4566
      %v4568 = vrot.slane %v4560, %v4567
      %v4570 = vunpack.c.l.s4 1983009808
      %v4571 = vunpack.c.0.s8 %v4570
      %v4572 = vlaneseq
      %v4573 = vshrl.u32 %v4572, 7
      %v4574 = vsub.s32 %v4571, %v4573
      %v4575 = vrot.slane %v4561, %v4574
      %v4576 = vcombine.low %v4568, %v4575
      %v4577 = vcombine.low %v2210, %v2214
      %v4578 = vcombine.low %v2218, %v2222
      %v4580 = vunpack.c.l.s4 1983009808
      %v4581 = vunpack.c.0.s8 %v4580
      %v4582 = vlaneseq
      %v4583 = vshrl.u32 %v4582, 7
      %v4584 = vsub.s32 %v4581, %v4583
      %v4585 = vrot.slane %v4577, %v4584
      %v4587 = vunpack.c.l.s4 1983009808
      %v4588 = vunpack.c.0.s8 %v4587
      %v4589 = vlaneseq
      %v4590 = vshrl.u32 %v4589, 7
      %v4591 = vsub.s32 %v4588, %v4590
      %v4592 = vrot.slane %v4578, %v4591
      %v4593 = vcombine.low %v4585, %v4592
      %v4594 = vrot.slane %v4542, 7
      %v4595 = vrot.slane %v4559, 7
      %v4596 = vsel %vm3559, %v4594, %v4595
      %v4597 = vrot.slane %v4576, 7
      %v4598 = vsel %vm3559, %v4595, %v4597
      %v4599 = vrot.slane %v4593, 7
      %v4600 = vsel %vm3559, %v4597, %v4599
      %4601 = vrot.lane.b32.xlu0 %v3567, 28
      %v4602 = vpop.permute.xlu0 %4601
      %4603 = vrot.lane.b32.xlu0 %v3569, 28
      %v4604 = vpop.permute.xlu0 %4603
      %4605 = vrot.lane.b32.xlu0 %v3571, 28
      %v4606 = vpop.permute.xlu0 %4605
      %4607 = vrot.lane.b32.xlu0 %v3573, 28
      %v4608 = vpop.permute.xlu0 %4607
      %4609 = vrot.lane.b32.xlu0 %v3572, 28
      %v4610 = vpop.permute.xlu0 %4609
      %4611 = vrot.lane.b32.xlu0 %v3574, 28
      %v4612 = vpop.permute.xlu0 %4611
      %4613 = vrot.lane.b32.xlu0 %v3576, 28
      %v4614 = vpop.permute.xlu0 %4613
      %4615 = vrot.lane.b32.xlu0 %v3578, 28
      %v4616 = vpop.permute.xlu0 %4615
      %4617 = vrot.lane.b32.xlu0 %v3580, 28
      %v4618 = vpop.permute.xlu0 %4617
      %4619 = vrot.lane.b32.xlu0 %v3579, 28
      %v4620 = vpop.permute.xlu0 %4619
      %4621 = vrot.lane.b32.xlu0 %v3581, 28
      %v4622 = vpop.permute.xlu0 %4621
      %4623 = vrot.lane.b32.xlu0 %v3583, 28
      %v4624 = vpop.permute.xlu0 %4623
      %4625 = vrot.lane.b32.xlu0 %v3585, 28
      %v4626 = vpop.permute.xlu0 %4625
      %4627 = vrot.lane.b32.xlu0 %v3587, 28
      %v4628 = vpop.permute.xlu0 %4627
      %4629 = vrot.lane.b32.xlu0 %v3586, 28
      %v4630 = vpop.permute.xlu0 %4629
      %4631 = vrot.lane.b32.xlu0 %v3588, 28
      %v4632 = vpop.permute.xlu0 %4631
      %4633 = vrot.lane.b32.xlu0 %v3590, 28
      %v4634 = vpop.permute.xlu0 %4633
      %4635 = vrot.lane.b32.xlu0 %v3592, 28
      %v4636 = vpop.permute.xlu0 %4635
      %4637 = vrot.lane.b32.xlu0 %v3594, 28
      %v4638 = vpop.permute.xlu0 %4637
      %4639 = vrot.lane.b32.xlu0 %v3593, 28
      %v4640 = vpop.permute.xlu0 %4639
      %4641 = vrot.lane.b32.xlu0 %v3595, 28
      %v4642 = vpop.permute.xlu0 %4641
      %4643 = vrot.lane.b32.xlu0 %v3597, 28
      %v4644 = vpop.permute.xlu0 %4643
      %4645 = vrot.lane.b32.xlu0 %v3599, 28
      %v4646 = vpop.permute.xlu0 %4645
      %4647 = vrot.lane.b32.xlu0 %v3601, 28
      %v4648 = vpop.permute.xlu0 %4647
      %4649 = vrot.lane.b32.xlu0 %v3600, 28
      %v4650 = vpop.permute.xlu0 %4649
      %4651 = vrot.lane.b32.xlu0 %v3602, 28
      %v4652 = vpop.permute.xlu0 %4651
      %4653 = vrot.lane.b32.xlu0 %v3604, 28
      %v4654 = vpop.permute.xlu0 %4653
      %4655 = vrot.lane.b32.xlu0 %v3606, 28
      %v4656 = vpop.permute.xlu0 %4655
      %4657 = vrot.lane.b32.xlu0 %v3608, 28
      %v4658 = vpop.permute.xlu0 %4657
      %4659 = vrot.lane.b32.xlu0 %v3607, 28
      %v4660 = vpop.permute.xlu0 %4659
      %4661 = vrot.lane.b32.xlu0 %v3609, 28
      %v4662 = vpop.permute.xlu0 %4661
      %4663 = vrot.lane.b32.xlu0 %v3611, 28
      %v4664 = vpop.permute.xlu0 %4663
      %4665 = vrot.lane.b32.xlu0 %v3613, 28
      %v4666 = vpop.permute.xlu0 %4665
      %4667 = vrot.lane.b32.xlu0 %v3615, 28
      %v4668 = vpop.permute.xlu0 %4667
      %4669 = vrot.lane.b32.xlu0 %v3614, 28
      %v4670 = vpop.permute.xlu0 %4669
      %4671 = vrot.lane.b32.xlu0 %v3616, 28
      %v4672 = vpop.permute.xlu0 %4671
      %4673 = vrot.lane.b32.xlu0 %v3618, 28
      %v4674 = vpop.permute.xlu0 %4673
      %4675 = vrot.lane.b32.xlu0 %v3620, 28
      %v4676 = vpop.permute.xlu0 %4675
      %4677 = vrot.lane.b32.xlu0 %v3622, 28
      %v4678 = vpop.permute.xlu0 %4677
      %4679 = vrot.lane.b32.xlu0 %v3621, 28
      %v4680 = vpop.permute.xlu0 %4679
      %4681 = vrot.lane.b32.xlu0 %v4594, 28
      %v4682 = vpop.permute.xlu0 %4681
      %4683 = vrot.lane.b32.xlu0 %v4596, 28
      %v4684 = vpop.permute.xlu0 %4683
      %4685 = vrot.lane.b32.xlu0 %v4598, 28
      %v4686 = vpop.permute.xlu0 %4685
      %4687 = vrot.lane.b32.xlu0 %v4600, 28
      %v4688 = vpop.permute.xlu0 %4687
      %4689 = vrot.lane.b32.xlu0 %v4599, 28
      %v4690 = vpop.permute.xlu0 %4689
      %v4737 = vunpack.c.l.s4 1983009808
      %v4738 = vunpack.c.0.s8 %v4737
      %v4739 = vlaneseq
      %v4740 = vshrl.u32 %v4739, 7
      %v4741 = vsub.s32 %v4738, %v4740
      %v4742 = vrot.slane %v2226, %v4741
      %4743 = vrot.lane.b32.xlu0 %v3031, 32
      %v4744 = vpop.permute.xlu0 %4743
      %4745 = vrot.lane.b32.xlu0 %v3048, 32
      %v4746 = vpop.permute.xlu0 %4745
      %4747 = vrot.lane.b32.xlu0 %v3065, 32
      %v4748 = vpop.permute.xlu0 %4747
      %4749 = vrot.lane.b32.xlu0 %v3082, 32
      %v4750 = vpop.permute.xlu0 %4749
      %4751 = vrot.lane.b32.xlu0 %v3771, 32
      %v4752 = vpop.permute.xlu0 %4751
      %4753 = vrot.lane.b32.xlu0 %v3099, 32
      %v4754 = vpop.permute.xlu0 %4753
      %4755 = vrot.lane.b32.xlu0 %v3116, 32
      %v4756 = vpop.permute.xlu0 %4755
      %4757 = vrot.lane.b32.xlu0 %v3133, 32
      %v4758 = vpop.permute.xlu0 %4757
      %4759 = vrot.lane.b32.xlu0 %v3150, 32
      %v4760 = vpop.permute.xlu0 %4759
      %4761 = vrot.lane.b32.xlu0 %v3778, 32
      %v4762 = vpop.permute.xlu0 %4761
      %4763 = vrot.lane.b32.xlu0 %v3167, 32
      %v4764 = vpop.permute.xlu0 %4763
      %4765 = vrot.lane.b32.xlu0 %v3184, 32
      %v4766 = vpop.permute.xlu0 %4765
      %4767 = vrot.lane.b32.xlu0 %v3201, 32
      %v4768 = vpop.permute.xlu0 %4767
      %4769 = vrot.lane.b32.xlu0 %v3218, 32
      %v4770 = vpop.permute.xlu0 %4769
      %4771 = vrot.lane.b32.xlu0 %v3785, 32
      %v4772 = vpop.permute.xlu0 %4771
      %4773 = vrot.lane.b32.xlu0 %v3235, 32
      %v4774 = vpop.permute.xlu0 %4773
      %4775 = vrot.lane.b32.xlu0 %v3252, 32
      %v4776 = vpop.permute.xlu0 %4775
      %4777 = vrot.lane.b32.xlu0 %v3269, 32
      %v4778 = vpop.permute.xlu0 %4777
      %4779 = vrot.lane.b32.xlu0 %v3286, 32
      %v4780 = vpop.permute.xlu0 %4779
      %4781 = vrot.lane.b32.xlu0 %v3792, 32
      %v4782 = vpop.permute.xlu0 %4781
      %4783 = vrot.lane.b32.xlu0 %v3303, 32
      %v4784 = vpop.permute.xlu0 %4783
      %4785 = vrot.lane.b32.xlu0 %v3320, 32
      %v4786 = vpop.permute.xlu0 %4785
      %4787 = vrot.lane.b32.xlu0 %v3337, 32
      %v4788 = vpop.permute.xlu0 %4787
      %4789 = vrot.lane.b32.xlu0 %v3354, 32
      %v4790 = vpop.permute.xlu0 %4789
      %4791 = vrot.lane.b32.xlu0 %v3799, 32
      %v4792 = vpop.permute.xlu0 %4791
      %4793 = vrot.lane.b32.xlu0 %v3371, 32
      %v4794 = vpop.permute.xlu0 %4793
      %4795 = vrot.lane.b32.xlu0 %v3388, 32
      %v4796 = vpop.permute.xlu0 %4795
      %4797 = vrot.lane.b32.xlu0 %v3405, 32
      %v4798 = vpop.permute.xlu0 %4797
      %4799 = vrot.lane.b32.xlu0 %v3422, 32
      %v4800 = vpop.permute.xlu0 %4799
      %4801 = vrot.lane.b32.xlu0 %v3806, 32
      %v4802 = vpop.permute.xlu0 %4801
      %4803 = vrot.lane.b32.xlu0 %v3439, 32
      %v4804 = vpop.permute.xlu0 %4803
      %4805 = vrot.lane.b32.xlu0 %v3456, 32
      %v4806 = vpop.permute.xlu0 %4805
      %4807 = vrot.lane.b32.xlu0 %v3473, 32
      %v4808 = vpop.permute.xlu0 %4807
      %4809 = vrot.lane.b32.xlu0 %v3490, 32
      %v4810 = vpop.permute.xlu0 %4809
      %4811 = vrot.lane.b32.xlu0 %v3813, 32
      %v4812 = vpop.permute.xlu0 %4811
      %4813 = vrot.lane.b32.xlu0 %v3507, 32
      %v4814 = vpop.permute.xlu0 %4813
      %4815 = vrot.lane.b32.xlu0 %v3524, 32
      %v4816 = vpop.permute.xlu0 %4815
      %4817 = vrot.lane.b32.xlu0 %v3541, 32
      %v4818 = vpop.permute.xlu0 %4817
      %4819 = vrot.lane.b32.xlu0 %v3558, 32
      %v4820 = vpop.permute.xlu0 %4819
      %4821 = vrot.lane.b32.xlu0 %v3820, 32
      %v4822 = vpop.permute.xlu0 %4821
      %4823 = vrot.lane.b32.xlu0 %v4542, 32
      %v4824 = vpop.permute.xlu0 %4823
      %4825 = vrot.lane.b32.xlu0 %v4559, 32
      %v4826 = vpop.permute.xlu0 %4825
      %4827 = vrot.lane.b32.xlu0 %v4576, 32
      %v4828 = vpop.permute.xlu0 %4827
      %4829 = vrot.lane.b32.xlu0 %v4593, 32
      %v4830 = vpop.permute.xlu0 %4829
      %4831 = vrot.lane.b32.xlu0 %v4742, 32
      %v4832 = vpop.permute.xlu0 %4831
      %vm4878 = vcmask 31744
      %v4879 = vsel %vm4878, %v2243, %v3624
      %v4880 = vsel %vm4878, %v2260, %v3626
      %v4881 = vsel %vm4878, %v2277, %v3628
      %v4882 = vsel %vm4878, %v2294, %v3630
      %v4883 = vsel %vm4878, %v2301, %v3632
      %v4884 = vsel %vm4878, %v2318, %v3634
      %v4885 = vsel %vm4878, %v2335, %v3636
      %v4886 = vsel %vm4878, %v2352, %v3638
      %v4887 = vsel %vm4878, %v2369, %v3640
      %v4888 = vsel %vm4878, %v2376, %v3642
      %v4889 = vsel %vm4878, %v2393, %v3644
      %v4890 = vsel %vm4878, %v2410, %v3646
      %v4891 = vsel %vm4878, %v2427, %v3648
      %v4892 = vsel %vm4878, %v2444, %v3650
      %v4893 = vsel %vm4878, %v2451, %v3652
      %v4894 = vsel %vm4878, %v2468, %v3654
      %v4895 = vsel %vm4878, %v2485, %v3656
      %v4896 = vsel %vm4878, %v2502, %v3658
      %v4897 = vsel %vm4878, %v2519, %v3660
      %v4898 = vsel %vm4878, %v2526, %v3662
      %v4899 = vsel %vm4878, %v2543, %v3664
      %v4900 = vsel %vm4878, %v2560, %v3666
      %v4901 = vsel %vm4878, %v2577, %v3668
      %v4902 = vsel %vm4878, %v2594, %v3670
      %v4903 = vsel %vm4878, %v2601, %v3672
      %v4904 = vsel %vm4878, %v2618, %v3674
      %v4905 = vsel %vm4878, %v2635, %v3676
      %v4906 = vsel %vm4878, %v2652, %v3678
      %v4907 = vsel %vm4878, %v2669, %v3680
      %v4908 = vsel %vm4878, %v2676, %v3682
      %v4909 = vsel %vm4878, %v2693, %v3684
      %v4910 = vsel %vm4878, %v2710, %v3686
      %v4911 = vsel %vm4878, %v2727, %v3688
      %v4912 = vsel %vm4878, %v2744, %v3690
      %v4913 = vsel %vm4878, %v2751, %v3692
      %v4914 = vsel %vm4878, %v2768, %v3694
      %v4915 = vsel %vm4878, %v2785, %v3696
      %v4916 = vsel %vm4878, %v2802, %v3698
      %v4917 = vsel %vm4878, %v2819, %v3700
      %v4918 = vsel %vm4878, %v2826, %v3702
      %v4919 = vsel %vm4878, %v2843, %v3704
      %v4920 = vsel %vm4878, %v2860, %v3706
      %v4921 = vsel %vm4878, %v2877, %v3708
      %v4922 = vsel %vm4878, %v2894, %v3710
      %v4923 = vsel %vm4878, %v2901, %v3712
      %vm4924 = vcmask 64512
      %v4925 = vsel %vm4924, %v4879, %v3822
      %v4926 = vsel %vm4924, %v4880, %v3824
      %v4927 = vsel %vm4924, %v4881, %v3826
      %v4928 = vsel %vm4924, %v4882, %v3828
      %v4929 = vsel %vm4924, %v4883, %v3830
      %v4930 = vsel %vm4924, %v4884, %v3832
      %v4931 = vsel %vm4924, %v4885, %v3834
      %v4932 = vsel %vm4924, %v4886, %v3836
      %v4933 = vsel %vm4924, %v4887, %v3838
      %v4934 = vsel %vm4924, %v4888, %v3840
      %v4935 = vsel %vm4924, %v4889, %v3842
      %v4936 = vsel %vm4924, %v4890, %v3844
      %v4937 = vsel %vm4924, %v4891, %v3846
      %v4938 = vsel %vm4924, %v4892, %v3848
      %v4939 = vsel %vm4924, %v4893, %v3850
      %v4940 = vsel %vm4924, %v4894, %v3852
      %v4941 = vsel %vm4924, %v4895, %v3854
      %v4942 = vsel %vm4924, %v4896, %v3856
      %v4943 = vsel %vm4924, %v4897, %v3858
      %v4944 = vsel %vm4924, %v4898, %v3860
      %v4945 = vsel %vm4924, %v4899, %v3862
      %v4946 = vsel %vm4924, %v4900, %v3864
      %v4947 = vsel %vm4924, %v4901, %v3866
      %v4948 = vsel %vm4924, %v4902, %v3868
      %v4949 = vsel %vm4924, %v4903, %v3870
      %v4950 = vsel %vm4924, %v4904, %v3872
      %v4951 = vsel %vm4924, %v4905, %v3874
      %v4952 = vsel %vm4924, %v4906, %v3876
      %v4953 = vsel %vm4924, %v4907, %v3878
      %v4954 = vsel %vm4924, %v4908, %v3880
      %v4955 = vsel %vm4924, %v4909, %v3882
      %v4956 = vsel %vm4924, %v4910, %v3884
      %v4957 = vsel %vm4924, %v4911, %v3886
      %v4958 = vsel %vm4924, %v4912, %v3888
      %v4959 = vsel %vm4924, %v4913, %v3890
      %v4960 = vsel %vm4924, %v4914, %v3892
      %v4961 = vsel %vm4924, %v4915, %v3894
      %v4962 = vsel %vm4924, %v4916, %v3896
      %v4963 = vsel %vm4924, %v4917, %v3898
      %v4964 = vsel %vm4924, %v4918, %v3900
      %v4965 = vsel %vm4924, %v4919, %v3902
      %v4966 = vsel %vm4924, %v4920, %v3904
      %v4967 = vsel %vm4924, %v4921, %v3906
      %v4968 = vsel %vm4924, %v4922, %v3908
      %v4969 = vsel %vm4924, %v4923, %v3910
      %vm4970 = vcmask 97280
      %v4971 = vsel %vm4970, %v4925, %v3957
      %v4972 = vsel %vm4970, %v4926, %v3959
      %v4973 = vsel %vm4970, %v4927, %v3961
      %v4974 = vsel %vm4970, %v4928, %v3963
      %v4975 = vsel %vm4970, %v4929, %v3965
      %v4976 = vsel %vm4970, %v4930, %v3957
      %v4977 = vsel %vm4970, %v4931, %v3959
      %v4978 = vsel %vm4970, %v4932, %v3961
      %v4979 = vsel %vm4970, %v4933, %v3963
      %v4980 = vsel %vm4970, %v4934, %v3965
      %v4981 = vsel %vm4970, %v4930, %v3967
      %v4982 = vsel %vm4970, %v4931, %v3969
      %v4983 = vsel %vm4970, %v4932, %v3971
      %v4984 = vsel %vm4970, %v4933, %v3973
      %v4985 = vsel %vm4970, %v4934, %v3975
      %v4986 = vsel %vm4970, %v4935, %v3967
      %v4987 = vsel %vm4970, %v4936, %v3969
      %v4988 = vsel %vm4970, %v4937, %v3971
      %v4989 = vsel %vm4970, %v4938, %v3973
      %v4990 = vsel %vm4970, %v4939, %v3975
      %v4991 = vsel %vm4970, %v4935, %v3977
      %v4992 = vsel %vm4970, %v4936, %v3979
      %v4993 = vsel %vm4970, %v4937, %v3981
      %v4994 = vsel %vm4970, %v4938, %v3983
      %v4995 = vsel %vm4970, %v4939, %v3985
      %v4996 = vsel %vm4970, %v4940, %v3977
      %v4997 = vsel %vm4970, %v4941, %v3979
      %v4998 = vsel %vm4970, %v4942, %v3981
      %v4999 = vsel %vm4970, %v4943, %v3983
      %v5000 = vsel %vm4970, %v4944, %v3985
      %v5001 = vsel %vm4970, %v4940, %v3987
      %v5002 = vsel %vm4970, %v4941, %v3989
      %v5003 = vsel %vm4970, %v4942, %v3991
      %v5004 = vsel %vm4970, %v4943, %v3993
      %v5005 = vsel %vm4970, %v4944, %v3995
      %v5006 = vsel %vm4970, %v4945, %v3987
      %v5007 = vsel %vm4970, %v4946, %v3989
      %v5008 = vsel %vm4970, %v4947, %v3991
      %v5009 = vsel %vm4970, %v4948, %v3993
      %v5010 = vsel %vm4970, %v4949, %v3995
      %v5011 = vsel %vm4970, %v4945, %v3997
      %v5012 = vsel %vm4970, %v4946, %v3999
      %v5013 = vsel %vm4970, %v4947, %v4001
      %v5014 = vsel %vm4970, %v4948, %v4003
      %v5015 = vsel %vm4970, %v4949, %v4005
      %v5016 = vsel %vm4970, %v4950, %v3997
      %v5017 = vsel %vm4970, %v4951, %v3999
      %v5018 = vsel %vm4970, %v4952, %v4001
      %v5019 = vsel %vm4970, %v4953, %v4003
      %v5020 = vsel %vm4970, %v4954, %v4005
      %v5021 = vsel %vm4970, %v4950, %v4007
      %v5022 = vsel %vm4970, %v4951, %v4009
      %v5023 = vsel %vm4970, %v4952, %v4011
      %v5024 = vsel %vm4970, %v4953, %v4013
      %v5025 = vsel %vm4970, %v4954, %v4015
      %v5026 = vsel %vm4970, %v4955, %v4007
      %v5027 = vsel %vm4970, %v4956, %v4009
      %v5028 = vsel %vm4970, %v4957, %v4011
      %v5029 = vsel %vm4970, %v4958, %v4013
      %v5030 = vsel %vm4970, %v4959, %v4015
      %v5031 = vsel %vm4970, %v4955, %v4017
      %v5032 = vsel %vm4970, %v4956, %v4019
      %v5033 = vsel %vm4970, %v4957, %v4021
      %v5034 = vsel %vm4970, %v4958, %v4023
      %v5035 = vsel %vm4970, %v4959, %v4025
      %v5036 = vsel %vm4970, %v4960, %v4017
      %v5037 = vsel %vm4970, %v4961, %v4019
      %v5038 = vsel %vm4970, %v4962, %v4021
      %v5039 = vsel %vm4970, %v4963, %v4023
      %v5040 = vsel %vm4970, %v4964, %v4025
      %v5041 = vsel %vm4970, %v4960, %v4027
      %v5042 = vsel %vm4970, %v4961, %v4029
      %v5043 = vsel %vm4970, %v4962, %v4031
      %v5044 = vsel %vm4970, %v4963, %v4033
      %v5045 = vsel %vm4970, %v4964, %v4035
      %v5046 = vsel %vm4970, %v4965, %v4027
      %v5047 = vsel %vm4970, %v4966, %v4029
      %v5048 = vsel %vm4970, %v4967, %v4031
      %v5049 = vsel %vm4970, %v4968, %v4033
      %v5050 = vsel %vm4970, %v4969, %v4035
      %vm5051 = vcmask 130048
      %v5052 = vsel %vm5051, %v4971, %v4077
      %v5053 = vsel %vm5051, %v4972, %v4079
      %v5054 = vsel %vm5051, %v4973, %v4081
      %v5055 = vsel %vm5051, %v4974, %v4083
      %v5056 = vsel %vm5051, %v4975, %v4085
      %v5057 = vsel %vm5051, %v4976, %v4077
      %v5058 = vsel %vm5051, %v4977, %v4079
      %v5059 = vsel %vm5051, %v4978, %v4081
      %v5060 = vsel %vm5051, %v4979, %v4083
      %v5061 = vsel %vm5051, %v4980, %v4085
      %v5062 = vsel %vm5051, %v4981, %v4087
      %v5063 = vsel %vm5051, %v4982, %v4089
      %v5064 = vsel %vm5051, %v4983, %v4091
      %v5065 = vsel %vm5051, %v4984, %v4093
      %v5066 = vsel %vm5051, %v4985, %v4095
      %v5067 = vsel %vm5051, %v4986, %v4087
      %v5068 = vsel %vm5051, %v4987, %v4089
      %v5069 = vsel %vm5051, %v4988, %v4091
      %v5070 = vsel %vm5051, %v4989, %v4093
      %v5071 = vsel %vm5051, %v4990, %v4095
      %v5072 = vsel %vm5051, %v4991, %v4097
      %v5073 = vsel %vm5051, %v4992, %v4099
      %v5074 = vsel %vm5051, %v4993, %v4101
      %v5075 = vsel %vm5051, %v4994, %v4103
      %v5076 = vsel %vm5051, %v4995, %v4105
      %v5077 = vsel %vm5051, %v4996, %v4097
      %v5078 = vsel %vm5051, %v4997, %v4099
      %v5079 = vsel %vm5051, %v4998, %v4101
      %v5080 = vsel %vm5051, %v4999, %v4103
      %v5081 = vsel %vm5051, %v5000, %v4105
      %v5082 = vsel %vm5051, %v5001, %v4107
      %v5083 = vsel %vm5051, %v5002, %v4109
      %v5084 = vsel %vm5051, %v5003, %v4111
      %v5085 = vsel %vm5051, %v5004, %v4113
      %v5086 = vsel %vm5051, %v5005, %v4115
      %v5087 = vsel %vm5051, %v5006, %v4107
      %v5088 = vsel %vm5051, %v5007, %v4109
      %v5089 = vsel %vm5051, %v5008, %v4111
      %v5090 = vsel %vm5051, %v5009, %v4113
      %v5091 = vsel %vm5051, %v5010, %v4115
      %v5092 = vsel %vm5051, %v5011, %v4117
      %v5093 = vsel %vm5051, %v5012, %v4119
      %v5094 = vsel %vm5051, %v5013, %v4121
      %v5095 = vsel %vm5051, %v5014, %v4123
      %v5096 = vsel %vm5051, %v5015, %v4125
      %v5097 = vsel %vm5051, %v5016, %v4117
      %v5098 = vsel %vm5051, %v5017, %v4119
      %v5099 = vsel %vm5051, %v5018, %v4121
      %v5100 = vsel %vm5051, %v5019, %v4123
      %v5101 = vsel %vm5051, %v5020, %v4125
      %v5102 = vsel %vm5051, %v5021, %v4127
      %v5103 = vsel %vm5051, %v5022, %v4129
      %v5104 = vsel %vm5051, %v5023, %v4131
      %v5105 = vsel %vm5051, %v5024, %v4133
      %v5106 = vsel %vm5051, %v5025, %v4135
      %v5107 = vsel %vm5051, %v5026, %v4127
      %v5108 = vsel %vm5051, %v5027, %v4129
      %v5109 = vsel %vm5051, %v5028, %v4131
      %v5110 = vsel %vm5051, %v5029, %v4133
      %v5111 = vsel %vm5051, %v5030, %v4135
      %v5112 = vsel %vm5051, %v5031, %v4137
      %v5113 = vsel %vm5051, %v5032, %v4139
      %v5114 = vsel %vm5051, %v5033, %v4141
      %v5115 = vsel %vm5051, %v5034, %v4143
      %v5116 = vsel %vm5051, %v5035, %v4145
      %v5117 = vsel %vm5051, %v5036, %v4137
      %v5118 = vsel %vm5051, %v5037, %v4139
      %v5119 = vsel %vm5051, %v5038, %v4141
      %v5120 = vsel %vm5051, %v5039, %v4143
      %v5121 = vsel %vm5051, %v5040, %v4145
      %v5122 = vsel %vm5051, %v5041, %v4147
      %v5123 = vsel %vm5051, %v5042, %v4149
      %v5124 = vsel %vm5051, %v5043, %v4151
      %v5125 = vsel %vm5051, %v5044, %v4153
      %v5126 = vsel %vm5051, %v5045, %v4155
      %v5127 = vsel %vm5051, %v5046, %v4147
      %v5128 = vsel %vm5051, %v5047, %v4149
      %v5129 = vsel %vm5051, %v5048, %v4151
      %v5130 = vsel %vm5051, %v5049, %v4153
      %v5131 = vsel %vm5051, %v5050, %v4155
      %vm5132 = vcmask 162816
      %v5133 = vsel %vm5132, %v5052, %v4197
      %v5134 = vsel %vm5132, %v5053, %v4199
      %v5135 = vsel %vm5132, %v5054, %v4201
      %v5136 = vsel %vm5132, %v5055, %v4203
      %v5137 = vsel %vm5132, %v5056, %v4205
      %v5138 = vsel %vm5132, %v5057, %v4197
      %v5139 = vsel %vm5132, %v5058, %v4199
      %v5140 = vsel %vm5132, %v5059, %v4201
      %v5141 = vsel %vm5132, %v5060, %v4203
      %v5142 = vsel %vm5132, %v5061, %v4205
      %v5143 = vsel %vm5132, %v5062, %v4207
      %v5144 = vsel %vm5132, %v5063, %v4209
      %v5145 = vsel %vm5132, %v5064, %v4211
      %v5146 = vsel %vm5132, %v5065, %v4213
      %v5147 = vsel %vm5132, %v5066, %v4215
      %v5148 = vsel %vm5132, %v5067, %v4207
      %v5149 = vsel %vm5132, %v5068, %v4209
      %v5150 = vsel %vm5132, %v5069, %v4211
      %v5151 = vsel %vm5132, %v5070, %v4213
      %v5152 = vsel %vm5132, %v5071, %v4215
      %v5153 = vsel %vm5132, %v5072, %v4217
      %v5154 = vsel %vm5132, %v5073, %v4219
      %v5155 = vsel %vm5132, %v5074, %v4221
      %v5156 = vsel %vm5132, %v5075, %v4223
      %v5157 = vsel %vm5132, %v5076, %v4225
      %v5158 = vsel %vm5132, %v5077, %v4217
      %v5159 = vsel %vm5132, %v5078, %v4219
      %v5160 = vsel %vm5132, %v5079, %v4221
      %v5161 = vsel %vm5132, %v5080, %v4223
      %v5162 = vsel %vm5132, %v5081, %v4225
      %v5163 = vsel %vm5132, %v5082, %v4227
      %v5164 = vsel %vm5132, %v5083, %v4229
      %v5165 = vsel %vm5132, %v5084, %v4231
      %v5166 = vsel %vm5132, %v5085, %v4233
      %v5167 = vsel %vm5132, %v5086, %v4235
      %v5168 = vsel %vm5132, %v5087, %v4227
      %v5169 = vsel %vm5132, %v5088, %v4229
      %v5170 = vsel %vm5132, %v5089, %v4231
      %v5171 = vsel %vm5132, %v5090, %v4233
      %v5172 = vsel %vm5132, %v5091, %v4235
      %v5173 = vsel %vm5132, %v5092, %v4237
      %v5174 = vsel %vm5132, %v5093, %v4239
      %v5175 = vsel %vm5132, %v5094, %v4241
      %v5176 = vsel %vm5132, %v5095, %v4243
      %v5177 = vsel %vm5132, %v5096, %v4245
      %v5178 = vsel %vm5132, %v5097, %v4237
      %v5179 = vsel %vm5132, %v5098, %v4239
      %v5180 = vsel %vm5132, %v5099, %v4241
      %v5181 = vsel %vm5132, %v5100, %v4243
      %v5182 = vsel %vm5132, %v5101, %v4245
      %v5183 = vsel %vm5132, %v5102, %v4247
      %v5184 = vsel %vm5132, %v5103, %v4249
      %v5185 = vsel %vm5132, %v5104, %v4251
      %v5186 = vsel %vm5132, %v5105, %v4253
      %v5187 = vsel %vm5132, %v5106, %v4255
      %v5188 = vsel %vm5132, %v5107, %v4247
      %v5189 = vsel %vm5132, %v5108, %v4249
      %v5190 = vsel %vm5132, %v5109, %v4251
      %v5191 = vsel %vm5132, %v5110, %v4253
      %v5192 = vsel %vm5132, %v5111, %v4255
      %v5193 = vsel %vm5132, %v5112, %v4257
      %v5194 = vsel %vm5132, %v5113, %v4259
      %v5195 = vsel %vm5132, %v5114, %v4261
      %v5196 = vsel %vm5132, %v5115, %v4263
      %v5197 = vsel %vm5132, %v5116, %v4265
      %v5198 = vsel %vm5132, %v5117, %v4257
      %v5199 = vsel %vm5132, %v5118, %v4259
      %v5200 = vsel %vm5132, %v5119, %v4261
      %v5201 = vsel %vm5132, %v5120, %v4263
      %v5202 = vsel %vm5132, %v5121, %v4265
      %v5203 = vsel %vm5132, %v5122, %v4267
      %v5204 = vsel %vm5132, %v5123, %v4269
      %v5205 = vsel %vm5132, %v5124, %v4271
      %v5206 = vsel %vm5132, %v5125, %v4273
      %v5207 = vsel %vm5132, %v5126, %v4275
      %v5208 = vsel %vm5132, %v5127, %v4267
      %v5209 = vsel %vm5132, %v5128, %v4269
      %v5210 = vsel %vm5132, %v5129, %v4271
      %v5211 = vsel %vm5132, %v5130, %v4273
      %v5212 = vsel %vm5132, %v5131, %v4275
      %vm5213 = vcmask 195584
      %v5214 = vsel %vm5213, %v5133, %v4392
      %v5215 = vsel %vm5213, %v5134, %v4394
      %v5216 = vsel %vm5213, %v5135, %v4396
      %v5217 = vsel %vm5213, %v5136, %v4398
      %v5218 = vsel %vm5213, %v5137, %v4400
      %v5219 = vsel %vm5213, %v5138, %v4402
      %v5220 = vsel %vm5213, %v5139, %v4404
      %v5221 = vsel %vm5213, %v5140, %v4406
      %v5222 = vsel %vm5213, %v5141, %v4408
      %v5223 = vsel %vm5213, %v5142, %v4410
      %v5224 = vsel %vm5213, %v5143, %v4402
      %v5225 = vsel %vm5213, %v5144, %v4404
      %v5226 = vsel %vm5213, %v5145, %v4406
      %v5227 = vsel %vm5213, %v5146, %v4408
      %v5228 = vsel %vm5213, %v5147, %v4410
      %v5229 = vsel %vm5213, %v5148, %v4412
      %v5230 = vsel %vm5213, %v5149, %v4414
      %v5231 = vsel %vm5213, %v5150, %v4416
      %v5232 = vsel %vm5213, %v5151, %v4418
      %v5233 = vsel %vm5213, %v5152, %v4420
      %v5234 = vsel %vm5213, %v5153, %v4412
      %v5235 = vsel %vm5213, %v5154, %v4414
      %v5236 = vsel %vm5213, %v5155, %v4416
      %v5237 = vsel %vm5213, %v5156, %v4418
      %v5238 = vsel %vm5213, %v5157, %v4420
      %v5239 = vsel %vm5213, %v5158, %v4422
      %v5240 = vsel %vm5213, %v5159, %v4424
      %v5241 = vsel %vm5213, %v5160, %v4426
      %v5242 = vsel %vm5213, %v5161, %v4428
      %v5243 = vsel %vm5213, %v5162, %v4430
      %v5244 = vsel %vm5213, %v5163, %v4422
      %v5245 = vsel %vm5213, %v5164, %v4424
      %v5246 = vsel %vm5213, %v5165, %v4426
      %v5247 = vsel %vm5213, %v5166, %v4428
      %v5248 = vsel %vm5213, %v5167, %v4430
      %v5249 = vsel %vm5213, %v5168, %v4432
      %v5250 = vsel %vm5213, %v5169, %v4434
      %v5251 = vsel %vm5213, %v5170, %v4436
      %v5252 = vsel %vm5213, %v5171, %v4438
      %v5253 = vsel %vm5213, %v5172, %v4440
      %v5254 = vsel %vm5213, %v5173, %v4432
      %v5255 = vsel %vm5213, %v5174, %v4434
      %v5256 = vsel %vm5213, %v5175, %v4436
      %v5257 = vsel %vm5213, %v5176, %v4438
      %v5258 = vsel %vm5213, %v5177, %v4440
      %v5259 = vsel %vm5213, %v5178, %v4442
      %v5260 = vsel %vm5213, %v5179, %v4444
      %v5261 = vsel %vm5213, %v5180, %v4446
      %v5262 = vsel %vm5213, %v5181, %v4448
      %v5263 = vsel %vm5213, %v5182, %v4450
      %v5264 = vsel %vm5213, %v5183, %v4442
      %v5265 = vsel %vm5213, %v5184, %v4444
      %v5266 = vsel %vm5213, %v5185, %v4446
      %v5267 = vsel %vm5213, %v5186, %v4448
      %v5268 = vsel %vm5213, %v5187, %v4450
      %v5269 = vsel %vm5213, %v5188, %v4452
      %v5270 = vsel %vm5213, %v5189, %v4454
      %v5271 = vsel %vm5213, %v5190, %v4456
      %v5272 = vsel %vm5213, %v5191, %v4458
      %v5273 = vsel %vm5213, %v5192, %v4460
      %v5274 = vsel %vm5213, %v5193, %v4452
      %v5275 = vsel %vm5213, %v5194, %v4454
      %v5276 = vsel %vm5213, %v5195, %v4456
      %v5277 = vsel %vm5213, %v5196, %v4458
      %v5278 = vsel %vm5213, %v5197, %v4460
      %v5279 = vsel %vm5213, %v5198, %v4462
      %v5280 = vsel %vm5213, %v5199, %v4464
      %v5281 = vsel %vm5213, %v5200, %v4466
      %v5282 = vsel %vm5213, %v5201, %v4468
      %v5283 = vsel %vm5213, %v5202, %v4470
      %v5284 = vsel %vm5213, %v5203, %v4462
      %v5285 = vsel %vm5213, %v5204, %v4464
      %v5286 = vsel %vm5213, %v5205, %v4466
      %v5287 = vsel %vm5213, %v5206, %v4468
      %v5288 = vsel %vm5213, %v5207, %v4470
      %v5289 = vsel %vm5213, %v5208, %v4472
      %v5290 = vsel %vm5213, %v5209, %v4474
      %v5291 = vsel %vm5213, %v5210, %v4476
      %v5292 = vsel %vm5213, %v5211, %v4478
      %v5293 = vsel %vm5213, %v5212, %v4480
      %vm5294 = vcmask 228352
      %v5295 = vsel %vm5294, %v5214, %v4602
      %v5296 = vsel %vm5294, %v5215, %v4604
      %v5297 = vsel %vm5294, %v5216, %v4606
      %v5298 = vsel %vm5294, %v5217, %v4608
      %v5299 = vsel %vm5294, %v5218, %v4610
      %v5300 = vsel %vm5294, %v5219, %v4612
      %v5301 = vsel %vm5294, %v5220, %v4614
      %v5302 = vsel %vm5294, %v5221, %v4616
      %v5303 = vsel %vm5294, %v5222, %v4618
      %v5304 = vsel %vm5294, %v5223, %v4620
      %v5305 = vsel %vm5294, %v5224, %v4612
      %v5306 = vsel %vm5294, %v5225, %v4614
      %v5307 = vsel %vm5294, %v5226, %v4616
      %v5308 = vsel %vm5294, %v5227, %v4618
      %v5309 = vsel %vm5294, %v5228, %v4620
      %v5310 = vsel %vm5294, %v5229, %v4622
      %v5311 = vsel %vm5294, %v5230, %v4624
      %v5312 = vsel %vm5294, %v5231, %v4626
      %v5313 = vsel %vm5294, %v5232, %v4628
      %v5314 = vsel %vm5294, %v5233, %v4630
      %v5315 = vsel %vm5294, %v5234, %v4622
      %v5316 = vsel %vm5294, %v5235, %v4624
      %v5317 = vsel %vm5294, %v5236, %v4626
      %v5318 = vsel %vm5294, %v5237, %v4628
      %v5319 = vsel %vm5294, %v5238, %v4630
      %v5320 = vsel %vm5294, %v5239, %v4632
      %v5321 = vsel %vm5294, %v5240, %v4634
      %v5322 = vsel %vm5294, %v5241, %v4636
      %v5323 = vsel %vm5294, %v5242, %v4638
      %v5324 = vsel %vm5294, %v5243, %v4640
      %v5325 = vsel %vm5294, %v5244, %v4632
      %v5326 = vsel %vm5294, %v5245, %v4634
      %v5327 = vsel %vm5294, %v5246, %v4636
      %v5328 = vsel %vm5294, %v5247, %v4638
      %v5329 = vsel %vm5294, %v5248, %v4640
      %v5330 = vsel %vm5294, %v5249, %v4642
      %v5331 = vsel %vm5294, %v5250, %v4644
      %v5332 = vsel %vm5294, %v5251, %v4646
      %v5333 = vsel %vm5294, %v5252, %v4648
      %v5334 = vsel %vm5294, %v5253, %v4650
      %v5335 = vsel %vm5294, %v5254, %v4642
      %v5336 = vsel %vm5294, %v5255, %v4644
      %v5337 = vsel %vm5294, %v5256, %v4646
      %v5338 = vsel %vm5294, %v5257, %v4648
      %v5339 = vsel %vm5294, %v5258, %v4650
      %v5340 = vsel %vm5294, %v5259, %v4652
      %v5341 = vsel %vm5294, %v5260, %v4654
      %v5342 = vsel %vm5294, %v5261, %v4656
      %v5343 = vsel %vm5294, %v5262, %v4658
      %v5344 = vsel %vm5294, %v5263, %v4660
      %v5345 = vsel %vm5294, %v5264, %v4652
      %v5346 = vsel %vm5294, %v5265, %v4654
      %v5347 = vsel %vm5294, %v5266, %v4656
      %v5348 = vsel %vm5294, %v5267, %v4658
      %v5349 = vsel %vm5294, %v5268, %v4660
      %v5350 = vsel %vm5294, %v5269, %v4662
      %v5351 = vsel %vm5294, %v5270, %v4664
      %v5352 = vsel %vm5294, %v5271, %v4666
      %v5353 = vsel %vm5294, %v5272, %v4668
      %v5354 = vsel %vm5294, %v5273, %v4670
      %v5355 = vsel %vm5294, %v5274, %v4662
      %v5356 = vsel %vm5294, %v5275, %v4664
      %v5357 = vsel %vm5294, %v5276, %v4666
      %v5358 = vsel %vm5294, %v5277, %v4668
      %v5359 = vsel %vm5294, %v5278, %v4670
      %v5360 = vsel %vm5294, %v5279, %v4672
      %v5361 = vsel %vm5294, %v5280, %v4674
      %v5362 = vsel %vm5294, %v5281, %v4676
      %v5363 = vsel %vm5294, %v5282, %v4678
      %v5364 = vsel %vm5294, %v5283, %v4680
      %v5365 = vsel %vm5294, %v5284, %v4672
      %v5366 = vsel %vm5294, %v5285, %v4674
      %v5367 = vsel %vm5294, %v5286, %v4676
      %v5368 = vsel %vm5294, %v5287, %v4678
      %v5369 = vsel %vm5294, %v5288, %v4680
      %v5370 = vsel %vm5294, %v5289, %v4682
      %v5371 = vsel %vm5294, %v5290, %v4684
      %v5372 = vsel %vm5294, %v5291, %v4686
      %v5373 = vsel %vm5294, %v5292, %v4688
      %v5374 = vsel %vm5294, %v5293, %v4690
      %vm5375 = vcmask 261120
      %v5376 = vsel %vm5375, %v5295, %v4744
      %v5377 = vsel %vm5375, %v5296, %v4746
      %v5378 = vsel %vm5375, %v5297, %v4748
      %v5379 = vsel %vm5375, %v5298, %v4750
      %v5380 = vsel %vm5375, %v5299, %v4752
      %v5381 = vsel %vm5375, %v5300, %v4754
      %v5382 = vsel %vm5375, %v5301, %v4756
      %v5383 = vsel %vm5375, %v5302, %v4758
      %v5384 = vsel %vm5375, %v5303, %v4760
      %v5385 = vsel %vm5375, %v5304, %v4762
      %v5386 = vsel %vm5375, %v5305, %v4754
      %v5387 = vsel %vm5375, %v5306, %v4756
      %v5388 = vsel %vm5375, %v5307, %v4758
      %v5389 = vsel %vm5375, %v5308, %v4760
      %v5390 = vsel %vm5375, %v5309, %v4762
      %v5391 = vsel %vm5375, %v5310, %v4764
      %v5392 = vsel %vm5375, %v5311, %v4766
      %v5393 = vsel %vm5375, %v5312, %v4768
      %v5394 = vsel %vm5375, %v5313, %v4770
      %v5395 = vsel %vm5375, %v5314, %v4772
      %v5396 = vsel %vm5375, %v5315, %v4764
      %v5397 = vsel %vm5375, %v5316, %v4766
      %v5398 = vsel %vm5375, %v5317, %v4768
      %v5399 = vsel %vm5375, %v5318, %v4770
      %v5400 = vsel %vm5375, %v5319, %v4772
      %v5401 = vsel %vm5375, %v5320, %v4774
      %v5402 = vsel %vm5375, %v5321, %v4776
      %v5403 = vsel %vm5375, %v5322, %v4778
      %v5404 = vsel %vm5375, %v5323, %v4780
      %v5405 = vsel %vm5375, %v5324, %v4782
      %v5406 = vsel %vm5375, %v5325, %v4774
      %v5407 = vsel %vm5375, %v5326, %v4776
      %v5408 = vsel %vm5375, %v5327, %v4778
      %v5409 = vsel %vm5375, %v5328, %v4780
      %v5410 = vsel %vm5375, %v5329, %v4782
      %v5411 = vsel %vm5375, %v5330, %v4784
      %v5412 = vsel %vm5375, %v5331, %v4786
      %v5413 = vsel %vm5375, %v5332, %v4788
      %v5414 = vsel %vm5375, %v5333, %v4790
      %v5415 = vsel %vm5375, %v5334, %v4792
      %v5416 = vsel %vm5375, %v5335, %v4784
      %v5417 = vsel %vm5375, %v5336, %v4786
      %v5418 = vsel %vm5375, %v5337, %v4788
      %v5419 = vsel %vm5375, %v5338, %v4790
      %v5420 = vsel %vm5375, %v5339, %v4792
      %v5421 = vsel %vm5375, %v5340, %v4794
      %v5422 = vsel %vm5375, %v5341, %v4796
      %v5423 = vsel %vm5375, %v5342, %v4798
      %v5424 = vsel %vm5375, %v5343, %v4800
      %v5425 = vsel %vm5375, %v5344, %v4802
      %v5426 = vsel %vm5375, %v5345, %v4794
      %v5427 = vsel %vm5375, %v5346, %v4796
      %v5428 = vsel %vm5375, %v5347, %v4798
      %v5429 = vsel %vm5375, %v5348, %v4800
      %v5430 = vsel %vm5375, %v5349, %v4802
      %v5431 = vsel %vm5375, %v5350, %v4804
      %v5432 = vsel %vm5375, %v5351, %v4806
      %v5433 = vsel %vm5375, %v5352, %v4808
      %v5434 = vsel %vm5375, %v5353, %v4810
      %v5435 = vsel %vm5375, %v5354, %v4812
      %v5436 = vsel %vm5375, %v5355, %v4804
      %v5437 = vsel %vm5375, %v5356, %v4806
      %v5438 = vsel %vm5375, %v5357, %v4808
      %v5439 = vsel %vm5375, %v5358, %v4810
      %v5440 = vsel %vm5375, %v5359, %v4812
      %v5441 = vsel %vm5375, %v5360, %v4814
      %v5442 = vsel %vm5375, %v5361, %v4816
      %v5443 = vsel %vm5375, %v5362, %v4818
      %v5444 = vsel %vm5375, %v5363, %v4820
      %v5445 = vsel %vm5375, %v5364, %v4822
      %v5446 = vsel %vm5375, %v5365, %v4814
      %v5447 = vsel %vm5375, %v5366, %v4816
      %v5448 = vsel %vm5375, %v5367, %v4818
      %v5449 = vsel %vm5375, %v5368, %v4820
      %v5450 = vsel %vm5375, %v5369, %v4822
      %v5451 = vsel %vm5375, %v5370, %v4824
      %v5452 = vsel %vm5375, %v5371, %v4826
      %v5453 = vsel %vm5375, %v5372, %v4828
      %v5454 = vsel %vm5375, %v5373, %v4830
      %v5455 = vsel %vm5375, %v5374, %v4832
      %vm5536 = vcmask 1046528
      %v5537 = vrot.slane %v5376, 1
      %v5538 = vrot.slane %v5377, 1
      %v5539 = vsel %vm5536, %v5537, %v5538
      %v5540 = vrot.slane %v5378, 1
      %v5541 = vsel %vm5536, %v5538, %v5540
      %v5542 = vrot.slane %v5379, 1
      %v5543 = vsel %vm5536, %v5540, %v5542
      %v5544 = vrot.slane %v5380, 1
      %v5545 = vsel %vm5536, %v5542, %v5544
      %v5546 = vrot.slane %v5381, 1
      %v5547 = vrot.slane %v5382, 1
      %v5548 = vsel %vm5536, %v5546, %v5547
      %v5549 = vrot.slane %v5383, 1
      %v5550 = vsel %vm5536, %v5547, %v5549
      %v5551 = vrot.slane %v5384, 1
      %v5552 = vsel %vm5536, %v5549, %v5551
      %v5553 = vrot.slane %v5385, 1
      %v5554 = vsel %vm5536, %v5551, %v5553
      %v5555 = vrot.slane %v5386, 1
      %v5556 = vrot.slane %v5387, 1
      %v5557 = vsel %vm5536, %v5555, %v5556
      %v5558 = vrot.slane %v5388, 1
      %v5559 = vsel %vm5536, %v5556, %v5558
      %v5560 = vrot.slane %v5389, 1
      %v5561 = vsel %vm5536, %v5558, %v5560
      %v5562 = vrot.slane %v5390, 1
      %v5563 = vsel %vm5536, %v5560, %v5562
      %v5564 = vrot.slane %v5391, 1
      %v5565 = vrot.slane %v5392, 1
      %v5566 = vsel %vm5536, %v5564, %v5565
      %v5567 = vrot.slane %v5393, 1
      %v5568 = vsel %vm5536, %v5565, %v5567
      %v5569 = vrot.slane %v5394, 1
      %v5570 = vsel %vm5536, %v5567, %v5569
      %v5571 = vrot.slane %v5395, 1
      %v5572 = vsel %vm5536, %v5569, %v5571
      %v5573 = vrot.slane %v5396, 1
      %v5574 = vrot.slane %v5397, 1
      %v5575 = vsel %vm5536, %v5573, %v5574
      %v5576 = vrot.slane %v5398, 1
      %v5577 = vsel %vm5536, %v5574, %v5576
      %v5578 = vrot.slane %v5399, 1
      %v5579 = vsel %vm5536, %v5576, %v5578
      %v5580 = vrot.slane %v5400, 1
      %v5581 = vsel %vm5536, %v5578, %v5580
      %v5582 = vrot.slane %v5401, 1
      %v5583 = vrot.slane %v5402, 1
      %v5584 = vsel %vm5536, %v5582, %v5583
      %v5585 = vrot.slane %v5403, 1
      %v5586 = vsel %vm5536, %v5583, %v5585
      %v5587 = vrot.slane %v5404, 1
      %v5588 = vsel %vm5536, %v5585, %v5587
      %v5589 = vrot.slane %v5405, 1
      %v5590 = vsel %vm5536, %v5587, %v5589
      %v5591 = vrot.slane %v5406, 1
      %v5592 = vrot.slane %v5407, 1
      %v5593 = vsel %vm5536, %v5591, %v5592
      %v5594 = vrot.slane %v5408, 1
      %v5595 = vsel %vm5536, %v5592, %v5594
      %v5596 = vrot.slane %v5409, 1
      %v5597 = vsel %vm5536, %v5594, %v5596
      %v5598 = vrot.slane %v5410, 1
      %v5599 = vsel %vm5536, %v5596, %v5598
      %v5600 = vrot.slane %v5411, 1
      %v5601 = vrot.slane %v5412, 1
      %v5602 = vsel %vm5536, %v5600, %v5601
      %v5603 = vrot.slane %v5413, 1
      %v5604 = vsel %vm5536, %v5601, %v5603
      %v5605 = vrot.slane %v5414, 1
      %v5606 = vsel %vm5536, %v5603, %v5605
      %v5607 = vrot.slane %v5415, 1
      %v5608 = vsel %vm5536, %v5605, %v5607
      %v5609 = vrot.slane %v5416, 1
      %v5610 = vrot.slane %v5417, 1
      %v5611 = vsel %vm5536, %v5609, %v5610
      %v5612 = vrot.slane %v5418, 1
      %v5613 = vsel %vm5536, %v5610, %v5612
      %v5614 = vrot.slane %v5419, 1
      %v5615 = vsel %vm5536, %v5612, %v5614
      %v5616 = vrot.slane %v5420, 1
      %v5617 = vsel %vm5536, %v5614, %v5616
      %v5618 = vrot.slane %v5421, 1
      %v5619 = vrot.slane %v5422, 1
      %v5620 = vsel %vm5536, %v5618, %v5619
      %v5621 = vrot.slane %v5423, 1
      %v5622 = vsel %vm5536, %v5619, %v5621
      %v5623 = vrot.slane %v5424, 1
      %v5624 = vsel %vm5536, %v5621, %v5623
      %v5625 = vrot.slane %v5425, 1
      %v5626 = vsel %vm5536, %v5623, %v5625
      %v5627 = vrot.slane %v5426, 1
      %v5628 = vrot.slane %v5427, 1
      %v5629 = vsel %vm5536, %v5627, %v5628
      %v5630 = vrot.slane %v5428, 1
      %v5631 = vsel %vm5536, %v5628, %v5630
      %v5632 = vrot.slane %v5429, 1
      %v5633 = vsel %vm5536, %v5630, %v5632
      %v5634 = vrot.slane %v5430, 1
      %v5635 = vsel %vm5536, %v5632, %v5634
      %v5636 = vrot.slane %v5431, 1
      %v5637 = vrot.slane %v5432, 1
      %v5638 = vsel %vm5536, %v5636, %v5637
      %v5639 = vrot.slane %v5433, 1
      %v5640 = vsel %vm5536, %v5637, %v5639
      %v5641 = vrot.slane %v5434, 1
      %v5642 = vsel %vm5536, %v5639, %v5641
      %v5643 = vrot.slane %v5435, 1
      %v5644 = vsel %vm5536, %v5641, %v5643
      %v5645 = vrot.slane %v5436, 1
      %v5646 = vrot.slane %v5437, 1
      %v5647 = vsel %vm5536, %v5645, %v5646
      %v5648 = vrot.slane %v5438, 1
      %v5649 = vsel %vm5536, %v5646, %v5648
      %v5650 = vrot.slane %v5439, 1
      %v5651 = vsel %vm5536, %v5648, %v5650
      %v5652 = vrot.slane %v5440, 1
      %v5653 = vsel %vm5536, %v5650, %v5652
      %v5654 = vrot.slane %v5441, 1
      %v5655 = vrot.slane %v5442, 1
      %v5656 = vsel %vm5536, %v5654, %v5655
      %v5657 = vrot.slane %v5443, 1
      %v5658 = vsel %vm5536, %v5655, %v5657
      %v5659 = vrot.slane %v5444, 1
      %v5660 = vsel %vm5536, %v5657, %v5659
      %v5661 = vrot.slane %v5445, 1
      %v5662 = vsel %vm5536, %v5659, %v5661
      %v5663 = vrot.slane %v5446, 1
      %v5664 = vrot.slane %v5447, 1
      %v5665 = vsel %vm5536, %v5663, %v5664
      %v5666 = vrot.slane %v5448, 1
      %v5667 = vsel %vm5536, %v5664, %v5666
      %v5668 = vrot.slane %v5449, 1
      %v5669 = vsel %vm5536, %v5666, %v5668
      %v5670 = vrot.slane %v5450, 1
      %v5671 = vsel %vm5536, %v5668, %v5670
      %v5672 = vrot.slane %v5451, 1
      %v5673 = vrot.slane %v5452, 1
      %v5674 = vsel %vm5536, %v5672, %v5673
      %v5675 = vrot.slane %v5453, 1
      %v5676 = vsel %vm5536, %v5673, %v5675
      %v5677 = vrot.slane %v5454, 1
      %v5678 = vsel %vm5536, %v5675, %v5677
      %v5679 = vrot.slane %v5455, 1
      %v5680 = vsel %vm5536, %v5677, %v5679
      %v5681 = vld [vmem:[%s1] sm:$0xff]
      %v5682 = vld [vmem:[%s1 + $0x8] sm:$0xff]
      %v5683 = vld [vmem:[%s1 + $0x10] sm:$0xff]
      %v5684 = vld [vmem:[%s1 + $0x18] sm:$0xff]
      %v5685 = vld [vmem:[%s1 + $0x20] sm:$0xf]
      %v5686 = vld [vmem:[%s2] sm:$0x1]
      %v5688 = vlaneseq
      %v5689 = vshrl.u32 %v5688, 7
      %v5690 = vsub.s32 0, %v5689
      %v5691 = vrot.slane %v5686, %v5690
      %vm5693 = vcmask 293888
      %v5694 = vsel %vm5693, %v5539, 0
      %v5696 = vsel %vm5693, %v5541, 0
      %v5698 = vsel %vm5693, %v5543, 0
      %v5700 = vsel %vm5693, %v5545, 0
      %v5702 = vsel %vm5693, %v5548, 0
      %v5704 = vsel %vm5693, %v5550, 0
      %v5706 = vsel %vm5693, %v5552, 0
      %v5708 = vsel %vm5693, %v5554, 0
      %v5710 = vsel %vm5693, %v5557, 0
      %v5712 = vsel %vm5693, %v5559, 0
      %v5714 = vsel %vm5693, %v5561, 0
      %v5716 = vsel %vm5693, %v5563, 0
      %v5718 = vsel %vm5693, %v5566, 0
      %v5720 = vsel %vm5693, %v5568, 0
      %v5722 = vsel %vm5693, %v5570, 0
      %v5724 = vsel %vm5693, %v5572, 0
      %v5726 = vsel %vm5693, %v5575, 0
      %v5728 = vsel %vm5693, %v5577, 0
      %v5730 = vsel %vm5693, %v5579, 0
      %v5732 = vsel %vm5693, %v5581, 0
      %v5734 = vsel %vm5693, %v5584, 0
      %v5736 = vsel %vm5693, %v5586, 0
      %v5738 = vsel %vm5693, %v5588, 0
      %v5740 = vsel %vm5693, %v5590, 0
      %v5742 = vsel %vm5693, %v5593, 0
      %v5744 = vsel %vm5693, %v5595, 0
      %v5746 = vsel %vm5693, %v5597, 0
      %v5748 = vsel %vm5693, %v5599, 0
      %v5750 = vsel %vm5693, %v5602, 0
      %v5752 = vsel %vm5693, %v5604, 0
      %v5754 = vsel %vm5693, %v5606, 0
      %v5756 = vsel %vm5693, %v5608, 0
      %v5758 = vsel %vm5693, %v5611, 0
      %v5760 = vsel %vm5693, %v5613, 0
      %v5762 = vsel %vm5693, %v5615, 0
      %v5764 = vsel %vm5693, %v5617, 0
      %v5766 = vsel %vm5693, %v5620, 0
      %v5768 = vsel %vm5693, %v5622, 0
      %v5770 = vsel %vm5693, %v5624, 0
      %v5772 = vsel %vm5693, %v5626, 0
      %v5774 = vsel %vm5693, %v5629, 0
      %v5776 = vsel %vm5693, %v5631, 0
      %v5778 = vsel %vm5693, %v5633, 0
      %v5780 = vsel %vm5693, %v5635, 0
      %v5782 = vsel %vm5693, %v5638, 0
      %v5784 = vsel %vm5693, %v5640, 0
      %v5786 = vsel %vm5693, %v5642, 0
      %v5788 = vsel %vm5693, %v5644, 0
      %v5790 = vsel %vm5693, %v5647, 0
      %v5792 = vsel %vm5693, %v5649, 0
      %v5794 = vsel %vm5693, %v5651, 0
      %v5796 = vsel %vm5693, %v5653, 0
      %v5798 = vsel %vm5693, %v5656, 0
      %v5800 = vsel %vm5693, %v5658, 0
      %v5802 = vsel %vm5693, %v5660, 0
      %v5804 = vsel %vm5693, %v5662, 0
      %v5806 = vsel %vm5693, %v5665, 0
      %v5808 = vsel %vm5693, %v5667, 0
      %v5810 = vsel %vm5693, %v5669, 0
      %v5812 = vsel %vm5693, %v5671, 0
      %v5814 = vsel %vm5693, %v5674, 0
      %v5816 = vsel %vm5693, %v5676, 0
      %v5818 = vsel %vm5693, %v5678, 0
      %v5820 = vsel %vm5693, %v5680, 0
      %vm5822 = vcmask 1043456
      %v5824 = vsel %vm5822, %v5685, 0
      %5826 = vmatprep.subr.mxu0 0.0
      %5827 = vmatpush1.msra.mxu0 %v5681
      %5828 = vmatprep.subr.mxu0 0.0
      %5829 = vmatpush1.msra.mxu0 %v5682
      %5830 = vmatprep.subr.mxu0 0.0
      %5831 = vmatpush1.msra.mxu0 %v5683
      %5832 = vmatprep.subr.mxu0 0.0
      %5833 = vmatpush1.msra.mxu0 %v5684
      %5834 = vmatprep.subr.mxu0 0.0
      %5835 = vmatpush1.msra.mxu0 %v5824
      %5836 = vmatprep.subr.mxu0 0.0
      %5837 = vmatpush1.msra.mxu0 0.0
      %5838 = vmatprep.subr.mxu0 0.0
      %5839 = vmatpush1.msra.mxu0 0.0
      %5840 = vmatprep.subr.mxu0 0.0
      %5841 = vmatpush1.msra.mxu0 0.0
      %5842 = vmatprep.subr.mxu0 0.0
      %5843 = vmatpush1.msra.mxu0 0.0
      %5844 = vmatprep.subr.mxu0 0.0
      %5845 = vmatpush1.msra.mxu0 0.0
      %5846 = vmatprep.subr.mxu0 0.0
      %5847 = vmatpush1.msra.mxu0 0.0
      %5848 = vmatprep.subr.mxu0 0.0
      %5849 = vmatpush1.msra.mxu0 0.0
      %5850 = vmatprep.subr.mxu0 0.0
      %5851 = vmatpush1.msra.mxu0 0.0
      %5852 = vmatprep.subr.mxu0 0.0
      %5853 = vmatpush1.msra.mxu0 0.0
      %5854 = vmatprep.subr.mxu0 0.0
      %5855 = vmatpush1.msra.mxu0 0.0
      %5856 = vmatprep.subr.mxu0 0.0
      %5857 = vmatpush1.msra.mxu0 0.0
      %5858 = vmatprep.subr.mxu0 0.0
      %5859 = vmatpush1.msra.mxu0 0.0
      %5860 = vmatprep.subr.mxu0 0.0
      %5861 = vmatpush1.msra.mxu0 0.0
      %5862 = vmatprep.subr.mxu0 0.0
      %5863 = vmatpush1.msra.mxu0 0.0
      %5864 = vmatprep.subr.mxu0 0.0
      %5865 = vmatpush1.msra.mxu0 0.0
      %5866 = vmatprep.subr.mxu0 0.0
      %5867 = vmatpush1.msra.mxu0 0.0
      %5868 = vmatprep.subr.mxu0 0.0
      %5869 = vmatpush1.msra.mxu0 0.0
      %5870 = vmatprep.subr.mxu0 0.0
      %5871 = vmatpush1.msra.mxu0 0.0
      %5872 = vmatprep.subr.mxu0 0.0
      %5873 = vmatpush1.msra.mxu0 0.0
      %5874 = vmatprep.subr.mxu0 0.0
      %5875 = vmatpush1.msra.mxu0 0.0
      %5876 = vmatprep.subr.mxu0 0.0
      %5877 = vmatpush1.msra.mxu0 0.0
      %5878 = vmatprep.subr.mxu0 0.0
      %5879 = vmatpush1.msra.mxu0 0.0
      %5880 = vmatprep.subr.mxu0 0.0
      %5881 = vmatpush1.msra.mxu0 0.0
      %5882 = vmatprep.subr.mxu0 0.0
      %5883 = vmatpush1.msra.mxu0 0.0
      %5884 = vmatprep.subr.mxu0 0.0
      %5885 = vmatpush1.msra.mxu0 0.0
      %5886 = vmatprep.subr.mxu0 0.0
      %5887 = vmatpush1.msra.mxu0 0.0
      %5888 = vmatprep.subr.mxu0 0.0
      %5889 = vmatpush1.msra.mxu0 0.0
      %5890 = vmatprep.mubr.f32.mxu0 0.0
      %5891 = vmatmul.mubr.f32.gmra.mrb[0].mxu0 %v5694
      %v5892 = vpop.f32.mrb[0].mxu0
      %v5893 = vadd.f32 %v5691, %v5892
      %v5894 = vpop.f32.mrb[0].mxu0
      %5895 = vmatprep.mubr.f32.mxu0 0.0
      %5896 = vmatmul.mubr.f32.gmra.mrb[0].mxu0 %v5696
      %v5897 = vpop.f32.mrb[0].mxu0
      %v5898 = vadd.f32 %v5691, %v5897
      %v5899 = vpop.f32.mrb[0].mxu0
      %5900 = vmatprep.mubr.f32.mxu0 0.0
      %5901 = vmatmul.mubr.f32.gmra.mrb[0].mxu0 %v5698
      %v5902 = vpop.f32.mrb[0].mxu0
      %v5903 = vadd.f32 %v5691, %v5902
      %v5904 = vpop.f32.mrb[0].mxu0
      %5905 = vmatprep.mubr.f32.mxu0 0.0
      %5906 = vmatmul.mubr.f32.gmra.mrb[0].mxu0 %v5700
      %v5907 = vpop.f32.mrb[0].mxu0
      %v5908 = vadd.f32 %v5691, %v5907
      %v5909 = vpop.f32.mrb[0].mxu0
      %5910 = vmatprep.mubr.f32.mxu0 0.0
      %5911 = vmatmul.mubr.f32.gmra.mrb[0].mxu0 %v5702
      %v5912 = vpop.f32.mrb[0].mxu0
      %v5913 = vadd.f32 %v5691, %v5912
      %v5914 = vpop.f32.mrb[0].mxu0
      %5915 = vmatprep.mubr.f32.mxu0 0.0
      %5916 = vmatmul.mubr.f32.gmra.mrb[0].mxu0 %v5704
      %v5917 = vpop.f32.mrb[0].mxu0
      %v5918 = vadd.f32 %v5691, %v5917
      %v5919 = vpop.f32.mrb[0].mxu0
      %5920 = vmatprep.mubr.f32.mxu0 0.0
      %5921 = vmatmul.mubr.f32.gmra.mrb[0].mxu0 %v5706
      %v5922 = vpop.f32.mrb[0].mxu0
      %v5923 = vadd.f32 %v5691, %v5922
      %v5924 = vpop.f32.mrb[0].mxu0
      %5925 = vmatprep.mubr.f32.mxu0 0.0
      %5926 = vmatmul.mubr.f32.gmra.mrb[0].mxu0 %v5708
      %v5927 = vpop.f32.mrb[0].mxu0
      %v5928 = vadd.f32 %v5691, %v5927
      %v5929 = vpop.f32.mrb[0].mxu0
      %5930 = vmatprep.mubr.f32.mxu0 0.0
      %5931 = vmatmul.mubr.f32.gmra.mrb[0].mxu0 %v5710
      %v5932 = vpop.f32.mrb[0].mxu0
      %v5933 = vadd.f32 %v5691, %v5932
      %v5934 = vpop.f32.mrb[0].mxu0
      %5935 = vmatprep.mubr.f32.mxu0 0.0
      %5936 = vmatmul.mubr.f32.gmra.mrb[0].mxu0 %v5712
      %v5937 = vpop.f32.mrb[0].mxu0
      %v5938 = vadd.f32 %v5691, %v5937
      %v5939 = vpop.f32.mrb[0].mxu0
      %5940 = vmatprep.mubr.f32.mxu0 0.0
      %5941 = vmatmul.mubr.f32.gmra.mrb[0].mxu0 %v5714
      %v5942 = vpop.f32.mrb[0].mxu0
      %v5943 = vadd.f32 %v5691, %v5942
      %v5944 = vpop.f32.mrb[0].mxu0
      %5945 = vmatprep.mubr.f32.mxu0 0.0
      %5946 = vmatmul.mubr.f32.gmra.mrb[0].mxu0 %v5716
      %v5947 = vpop.f32.mrb[0].mxu0
      %v5948 = vadd.f32 %v5691, %v5947
      %v5949 = vpop.f32.mrb[0].mxu0
      %5950 = vmatprep.mubr.f32.mxu0 0.0
      %5951 = vmatmul.mubr.f32.gmra.mrb[0].mxu0 %v5718
      %v5952 = vpop.f32.mrb[0].mxu0
      %v5953 = vadd.f32 %v5691, %v5952
      %v5954 = vpop.f32.mrb[0].mxu0
      %5955 = vmatprep.mubr.f32.mxu0 0.0
      %5956 = vmatmul.mubr.f32.gmra.mrb[0].mxu0 %v5720
      %v5957 = vpop.f32.mrb[0].mxu0
      %v5958 = vadd.f32 %v5691, %v5957
      %v5959 = vpop.f32.mrb[0].mxu0
      %5960 = vmatprep.mubr.f32.mxu0 0.0
      %5961 = vmatmul.mubr.f32.gmra.mrb[0].mxu0 %v5722
      %v5962 = vpop.f32.mrb[0].mxu0
      %v5963 = vadd.f32 %v5691, %v5962
      %v5964 = vpop.f32.mrb[0].mxu0
      %5965 = vmatprep.mubr.f32.mxu0 0.0
      %5966 = vmatmul.mubr.f32.gmra.mrb[0].mxu0 %v5724
      %v5967 = vpop.f32.mrb[0].mxu0
      %v5968 = vadd.f32 %v5691, %v5967
      %v5969 = vpop.f32.mrb[0].mxu0
      %5970 = vmatprep.mubr.f32.mxu0 0.0
      %5971 = vmatmul.mubr.f32.gmra.mrb[0].mxu0 %v5726
      %v5972 = vpop.f32.mrb[0].mxu0
      %v5973 = vadd.f32 %v5691, %v5972
      %v5974 = vpop.f32.mrb[0].mxu0
      %5975 = vmatprep.mubr.f32.mxu0 0.0
      %5976 = vmatmul.mubr.f32.gmra.mrb[0].mxu0 %v5728
      %v5977 = vpop.f32.mrb[0].mxu0
      %v5978 = vadd.f32 %v5691, %v5977
      %v5979 = vpop.f32.mrb[0].mxu0
      %5980 = vmatprep.mubr.f32.mxu0 0.0
      %5981 = vmatmul.mubr.f32.gmra.mrb[0].mxu0 %v5730
      %v5982 = vpop.f32.mrb[0].mxu0
      %v5983 = vadd.f32 %v5691, %v5982
      %v5984 = vpop.f32.mrb[0].mxu0
      %5985 = vmatprep.mubr.f32.mxu0 0.0
      %5986 = vmatmul.mubr.f32.gmra.mrb[0].mxu0 %v5732
      %v5987 = vpop.f32.mrb[0].mxu0
      %v5988 = vadd.f32 %v5691, %v5987
      %v5989 = vpop.f32.mrb[0].mxu0
      %5990 = vmatprep.mubr.f32.mxu0 0.0
      %5991 = vmatmul.mubr.f32.gmra.mrb[0].mxu0 %v5734
      %v5992 = vpop.f32.mrb[0].mxu0
      %v5993 = vadd.f32 %v5691, %v5992
      %v5994 = vpop.f32.mrb[0].mxu0
      %5995 = vmatprep.mubr.f32.mxu0 0.0
      %5996 = vmatmul.mubr.f32.gmra.mrb[0].mxu0 %v5736
      %v5997 = vpop.f32.mrb[0].mxu0
      %v5998 = vadd.f32 %v5691, %v5997
      %v5999 = vpop.f32.mrb[0].mxu0
      %6000 = vmatprep.mubr.f32.mxu0 0.0
      %6001 = vmatmul.mubr.f32.gmra.mrb[0].mxu0 %v5738
      %v6002 = vpop.f32.mrb[0].mxu0
      %v6003 = vadd.f32 %v5691, %v6002
      %v6004 = vpop.f32.mrb[0].mxu0
      %6005 = vmatprep.mubr.f32.mxu0 0.0
      %6006 = vmatmul.mubr.f32.gmra.mrb[0].mxu0 %v5740
      %v6007 = vpop.f32.mrb[0].mxu0
      %v6008 = vadd.f32 %v5691, %v6007
      %v6009 = vpop.f32.mrb[0].mxu0
      %6010 = vmatprep.mubr.f32.mxu0 0.0
      %6011 = vmatmul.mubr.f32.gmra.mrb[0].mxu0 %v5742
      %v6012 = vpop.f32.mrb[0].mxu0
      %v6013 = vadd.f32 %v5691, %v6012
      %v6014 = vpop.f32.mrb[0].mxu0
      %6015 = vmatprep.mubr.f32.mxu0 0.0
      %6016 = vmatmul.mubr.f32.gmra.mrb[0].mxu0 %v5744
      %v6017 = vpop.f32.mrb[0].mxu0
      %v6018 = vadd.f32 %v5691, %v6017
      %v6019 = vpop.f32.mrb[0].mxu0
      %6020 = vmatprep.mubr.f32.mxu0 0.0
      %6021 = vmatmul.mubr.f32.gmra.mrb[0].mxu0 %v5746
      %v6022 = vpop.f32.mrb[0].mxu0
      %v6023 = vadd.f32 %v5691, %v6022
      %v6024 = vpop.f32.mrb[0].mxu0
      %6025 = vmatprep.mubr.f32.mxu0 0.0
      %6026 = vmatmul.mubr.f32.gmra.mrb[0].mxu0 %v5748
      %v6027 = vpop.f32.mrb[0].mxu0
      %v6028 = vadd.f32 %v5691, %v6027
      %v6029 = vpop.f32.mrb[0].mxu0
      %6030 = vmatprep.mubr.f32.mxu0 0.0
      %6031 = vmatmul.mubr.f32.gmra.mrb[0].mxu0 %v5750
      %v6032 = vpop.f32.mrb[0].mxu0
      %v6033 = vadd.f32 %v5691, %v6032
      %v6034 = vpop.f32.mrb[0].mxu0
      %6035 = vmatprep.mubr.f32.mxu0 0.0
      %6036 = vmatmul.mubr.f32.gmra.mrb[0].mxu0 %v5752
      %v6037 = vpop.f32.mrb[0].mxu0
      %v6038 = vadd.f32 %v5691, %v6037
      %v6039 = vpop.f32.mrb[0].mxu0
      %6040 = vmatprep.mubr.f32.mxu0 0.0
      %6041 = vmatmul.mubr.f32.gmra.mrb[0].mxu0 %v5754
      %v6042 = vpop.f32.mrb[0].mxu0
      %v6043 = vadd.f32 %v5691, %v6042
      %v6044 = vpop.f32.mrb[0].mxu0
      %6045 = vmatprep.mubr.f32.mxu0 0.0
      %6046 = vmatmul.mubr.f32.gmra.mrb[0].mxu0 %v5756
      %v6047 = vpop.f32.mrb[0].mxu0
      %v6048 = vadd.f32 %v5691, %v6047
      %v6049 = vpop.f32.mrb[0].mxu0
      %6050 = vmatprep.mubr.f32.mxu0 0.0
      %6051 = vmatmul.mubr.f32.gmra.mrb[0].mxu0 %v5758
      %v6052 = vpop.f32.mrb[0].mxu0
      %v6053 = vadd.f32 %v5691, %v6052
      %v6054 = vpop.f32.mrb[0].mxu0
      %6055 = vmatprep.mubr.f32.mxu0 0.0
      %6056 = vmatmul.mubr.f32.gmra.mrb[0].mxu0 %v5760
      %v6057 = vpop.f32.mrb[0].mxu0
      %v6058 = vadd.f32 %v5691, %v6057
      %v6059 = vpop.f32.mrb[0].mxu0
      %6060 = vmatprep.mubr.f32.mxu0 0.0
      %6061 = vmatmul.mubr.f32.gmra.mrb[0].mxu0 %v5762
      %v6062 = vpop.f32.mrb[0].mxu0
      %v6063 = vadd.f32 %v5691, %v6062
      %v6064 = vpop.f32.mrb[0].mxu0
      %6065 = vmatprep.mubr.f32.mxu0 0.0
      %6066 = vmatmul.mubr.f32.gmra.mrb[0].mxu0 %v5764
      %v6067 = vpop.f32.mrb[0].mxu0
      %v6068 = vadd.f32 %v5691, %v6067
      %v6069 = vpop.f32.mrb[0].mxu0
      %6070 = vmatprep.mubr.f32.mxu0 0.0
      %6071 = vmatmul.mubr.f32.gmra.mrb[0].mxu0 %v5766
      %v6072 = vpop.f32.mrb[0].mxu0
      %v6073 = vadd.f32 %v5691, %v6072
      %v6074 = vpop.f32.mrb[0].mxu0
      %6075 = vmatprep.mubr.f32.mxu0 0.0
      %6076 = vmatmul.mubr.f32.gmra.mrb[0].mxu0 %v5768
      %v6077 = vpop.f32.mrb[0].mxu0
      %v6078 = vadd.f32 %v5691, %v6077
      %v6079 = vpop.f32.mrb[0].mxu0
      %6080 = vmatprep.mubr.f32.mxu0 0.0
      %6081 = vmatmul.mubr.f32.gmra.mrb[0].mxu0 %v5770
      %v6082 = vpop.f32.mrb[0].mxu0
      %v6083 = vadd.f32 %v5691, %v6082
      %v6084 = vpop.f32.mrb[0].mxu0
      %6085 = vmatprep.mubr.f32.mxu0 0.0
      %6086 = vmatmul.mubr.f32.gmra.mrb[0].mxu0 %v5772
      %v6087 = vpop.f32.mrb[0].mxu0
      %v6088 = vadd.f32 %v5691, %v6087
      %v6089 = vpop.f32.mrb[0].mxu0
      %6090 = vmatprep.mubr.f32.mxu0 0.0
      %6091 = vmatmul.mubr.f32.gmra.mrb[0].mxu0 %v5774
      %v6092 = vpop.f32.mrb[0].mxu0
      %v6093 = vadd.f32 %v5691, %v6092
      %v6094 = vpop.f32.mrb[0].mxu0
      %6095 = vmatprep.mubr.f32.mxu0 0.0
      %6096 = vmatmul.mubr.f32.gmra.mrb[0].mxu0 %v5776
      %v6097 = vpop.f32.mrb[0].mxu0
      %v6098 = vadd.f32 %v5691, %v6097
      %v6099 = vpop.f32.mrb[0].mxu0
      %6100 = vmatprep.mubr.f32.mxu0 0.0
      %6101 = vmatmul.mubr.f32.gmra.mrb[0].mxu0 %v5778
      %v6102 = vpop.f32.mrb[0].mxu0
      %v6103 = vadd.f32 %v5691, %v6102
      %v6104 = vpop.f32.mrb[0].mxu0
      %6105 = vmatprep.mubr.f32.mxu0 0.0
      %6106 = vmatmul.mubr.f32.gmra.mrb[0].mxu0 %v5780
      %v6107 = vpop.f32.mrb[0].mxu0
      %v6108 = vadd.f32 %v5691, %v6107
      %v6109 = vpop.f32.mrb[0].mxu0
      %6110 = vmatprep.mubr.f32.mxu0 0.0
      %6111 = vmatmul.mubr.f32.gmra.mrb[0].mxu0 %v5782
      %v6112 = vpop.f32.mrb[0].mxu0
      %v6113 = vadd.f32 %v5691, %v6112
      %v6114 = vpop.f32.mrb[0].mxu0
      %6115 = vmatprep.mubr.f32.mxu0 0.0
      %6116 = vmatmul.mubr.f32.gmra.mrb[0].mxu0 %v5784
      %v6117 = vpop.f32.mrb[0].mxu0
      %v6118 = vadd.f32 %v5691, %v6117
      %v6119 = vpop.f32.mrb[0].mxu0
      %6120 = vmatprep.mubr.f32.mxu0 0.0
      %6121 = vmatmul.mubr.f32.gmra.mrb[0].mxu0 %v5786
      %v6122 = vpop.f32.mrb[0].mxu0
      %v6123 = vadd.f32 %v5691, %v6122
      %v6124 = vpop.f32.mrb[0].mxu0
      %6125 = vmatprep.mubr.f32.mxu0 0.0
      %6126 = vmatmul.mubr.f32.gmra.mrb[0].mxu0 %v5788
      %v6127 = vpop.f32.mrb[0].mxu0
      %v6128 = vadd.f32 %v5691, %v6127
      %v6129 = vpop.f32.mrb[0].mxu0
      %6130 = vmatprep.mubr.f32.mxu0 0.0
      %6131 = vmatmul.mubr.f32.gmra.mrb[0].mxu0 %v5790
      %v6132 = vpop.f32.mrb[0].mxu0
      %v6133 = vadd.f32 %v5691, %v6132
      %v6134 = vpop.f32.mrb[0].mxu0
      %6135 = vmatprep.mubr.f32.mxu0 0.0
      %6136 = vmatmul.mubr.f32.gmra.mrb[0].mxu0 %v5792
      %v6137 = vpop.f32.mrb[0].mxu0
      %v6138 = vadd.f32 %v5691, %v6137
      %v6139 = vpop.f32.mrb[0].mxu0
      %6140 = vmatprep.mubr.f32.mxu0 0.0
      %6141 = vmatmul.mubr.f32.gmra.mrb[0].mxu0 %v5794
      %v6142 = vpop.f32.mrb[0].mxu0
      %v6143 = vadd.f32 %v5691, %v6142
      %v6144 = vpop.f32.mrb[0].mxu0
      %6145 = vmatprep.mubr.f32.mxu0 0.0
      %6146 = vmatmul.mubr.f32.gmra.mrb[0].mxu0 %v5796
      %v6147 = vpop.f32.mrb[0].mxu0
      %v6148 = vadd.f32 %v5691, %v6147
      %v6149 = vpop.f32.mrb[0].mxu0
      %6150 = vmatprep.mubr.f32.mxu0 0.0
      %6151 = vmatmul.mubr.f32.gmra.mrb[0].mxu0 %v5798
      %v6152 = vpop.f32.mrb[0].mxu0
      %v6153 = vadd.f32 %v5691, %v6152
      %v6154 = vpop.f32.mrb[0].mxu0
      %6155 = vmatprep.mubr.f32.mxu0 0.0
      %6156 = vmatmul.mubr.f32.gmra.mrb[0].mxu0 %v5800
      %v6157 = vpop.f32.mrb[0].mxu0
      %v6158 = vadd.f32 %v5691, %v6157
      %v6159 = vpop.f32.mrb[0].mxu0
      %6160 = vmatprep.mubr.f32.mxu0 0.0
      %6161 = vmatmul.mubr.f32.gmra.mrb[0].mxu0 %v5802
      %v6162 = vpop.f32.mrb[0].mxu0
      %v6163 = vadd.f32 %v5691, %v6162
      %v6164 = vpop.f32.mrb[0].mxu0
      %6165 = vmatprep.mubr.f32.mxu0 0.0
      %6166 = vmatmul.mubr.f32.gmra.mrb[0].mxu0 %v5804
      %v6167 = vpop.f32.mrb[0].mxu0
      %v6168 = vadd.f32 %v5691, %v6167
      %v6169 = vpop.f32.mrb[0].mxu0
      %6170 = vmatprep.mubr.f32.mxu0 0.0
      %6171 = vmatmul.mubr.f32.gmra.mrb[0].mxu0 %v5806
      %v6172 = vpop.f32.mrb[0].mxu0
      %v6173 = vadd.f32 %v5691, %v6172
      %v6174 = vpop.f32.mrb[0].mxu0
      %6175 = vmatprep.mubr.f32.mxu0 0.0
      %6176 = vmatmul.mubr.f32.gmra.mrb[0].mxu0 %v5808
      %v6177 = vpop.f32.mrb[0].mxu0
      %v6178 = vadd.f32 %v5691, %v6177
      %v6179 = vpop.f32.mrb[0].mxu0
      %6180 = vmatprep.mubr.f32.mxu0 0.0
      %6181 = vmatmul.mubr.f32.gmra.mrb[0].mxu0 %v5810
      %v6182 = vpop.f32.mrb[0].mxu0
      %v6183 = vadd.f32 %v5691, %v6182
      %v6184 = vpop.f32.mrb[0].mxu0
      %6185 = vmatprep.mubr.f32.mxu0 0.0
      %6186 = vmatmul.mubr.f32.gmra.mrb[0].mxu0 %v5812
      %v6187 = vpop.f32.mrb[0].mxu0
      %v6188 = vadd.f32 %v5691, %v6187
      %v6189 = vpop.f32.mrb[0].mxu0
      %6190 = vmatprep.mubr.f32.mxu0 0.0
      %6191 = vmatmul.mubr.f32.gmra.mrb[0].mxu0 %v5814
      %v6192 = vpop.f32.mrb[0].mxu0
      %v6193 = vadd.f32 %v5691, %v6192
      %v6194 = vpop.f32.mrb[0].mxu0
      %6195 = vmatprep.mubr.f32.mxu0 0.0
      %6196 = vmatmul.mubr.f32.gmra.mrb[0].mxu0 %v5816
      %v6197 = vpop.f32.mrb[0].mxu0
      %v6198 = vadd.f32 %v5691, %v6197
      %v6199 = vpop.f32.mrb[0].mxu0
      %6200 = vmatprep.mubr.f32.mxu0 0.0
      %6201 = vmatmul.mubr.f32.gmra.mrb[0].mxu0 %v5818
      %v6202 = vpop.f32.mrb[0].mxu0
      %v6203 = vadd.f32 %v5691, %v6202
      %v6204 = vpop.f32.mrb[0].mxu0
      %6205 = vmatprep.mubr.f32.mxu0 0.0
      %6206 = vmatmul.mubr.f32.gmra.mrb[0].mxu0 %v5820
      %v6207 = vpop.f32.mrb[0].mxu0
      %v6208 = vadd.f32 %v5691, %v6207
      %v6209 = vpop.f32.mrb[0].mxu0
      %6210 = vdwg.mxu0
      %6211 = vst.msk [vmem:[%s234] sm:$0xff] %vm4924, %v5893
      %6212 = vst.msk [vmem:[%s234 + $0x8] sm:$0xff] %vm4924, %v5898
      %6213 = vst.msk [vmem:[%s234 + $0x10] sm:$0xff] %vm4924, %v5903
      %6214 = vst.msk [vmem:[%s234 + $0x18] sm:$0xff] %vm4924, %v5908
      %6215 = vst.msk [vmem:[%s234 + $0x20] sm:$0xff] %vm4924, %v5913
      %6216 = vst.msk [vmem:[%s234 + $0x28] sm:$0xff] %vm4924, %v5918
      %6217 = vst.msk [vmem:[%s234 + $0x30] sm:$0xff] %vm4924, %v5923
      %6218 = vst.msk [vmem:[%s234 + $0x38] sm:$0xff] %vm4924, %v5928
      %6219 = vst.msk [vmem:[%s234 + $0x40] sm:$0xff] %vm4924, %v5933
      %6220 = vst.msk [vmem:[%s234 + $0x48] sm:$0xff] %vm4924, %v5938
      %6221 = vst.msk [vmem:[%s234 + $0x50] sm:$0xff] %vm4924, %v5943
      %6222 = vst.msk [vmem:[%s234 + $0x58] sm:$0xff] %vm4924, %v5948
      %6223 = vst.msk [vmem:[%s234 + $0x60] sm:$0xff] %vm4924, %v5953
      %6224 = vst.msk [vmem:[%s234 + $0x68] sm:$0xff] %vm4924, %v5958
      %6225 = vst.msk [vmem:[%s234 + $0x70] sm:$0xff] %vm4924, %v5963
      %6226 = vst.msk [vmem:[%s234 + $0x78] sm:$0xff] %vm4924, %v5968
      %6227 = vst.msk [vmem:[%s234 + $0x80] sm:$0xff] %vm4924, %v5973
      %6228 = vst.msk [vmem:[%s234 + $0x88] sm:$0xff] %vm4924, %v5978
      %6229 = vst.msk [vmem:[%s234 + $0x90] sm:$0xff] %vm4924, %v5983
      %6230 = vst.msk [vmem:[%s234 + $0x98] sm:$0xff] %vm4924, %v5988
      %6231 = vst.msk [vmem:[%s234 + $0xa0] sm:$0xff] %vm4924, %v5993
      %6232 = vst.msk [vmem:[%s234 + $0xa8] sm:$0xff] %vm4924, %v5998
      %6233 = vst.msk [vmem:[%s234 + $0xb0] sm:$0xff] %vm4924, %v6003
      %6234 = vst.msk [vmem:[%s234 + $0xb8] sm:$0xff] %vm4924, %v6008
      %6235 = vst.msk [vmem:[%s234 + $0xc0] sm:$0xff] %vm4924, %v6013
      %6236 = vst.msk [vmem:[%s234 + $0xc8] sm:$0xff] %vm4924, %v6018
      %6237 = vst.msk [vmem:[%s234 + $0xd0] sm:$0xff] %vm4924, %v6023
      %6238 = vst.msk [vmem:[%s234 + $0xd8] sm:$0xff] %vm4924, %v6028
      %6239 = vst.msk [vmem:[%s234 + $0xe0] sm:$0xff] %vm4924, %v6033
      %6240 = vst.msk [vmem:[%s234 + $0xe8] sm:$0xff] %vm4924, %v6038
      %6241 = vst.msk [vmem:[%s234 + $0xf0] sm:$0xff] %vm4924, %v6043
      %6242 = vst.msk [vmem:[%s234 + $0xf8] sm:$0xff] %vm4924, %v6048
      %6243 = vst.msk [vmem:[%s234 + $0x100] sm:$0xff] %vm4924, %v6053
      %6244 = vst.msk [vmem:[%s234 + $0x108] sm:$0xff] %vm4924, %v6058
      %6245 = vst.msk [vmem:[%s234 + $0x110] sm:$0xff] %vm4924, %v6063
      %6246 = vst.msk [vmem:[%s234 + $0x118] sm:$0xff] %vm4924, %v6068
      %6247 = vst.msk [vmem:[%s234 + $0x120] sm:$0xff] %vm4924, %v6073
      %6248 = vst.msk [vmem:[%s234 + $0x128] sm:$0xff] %vm4924, %v6078
      %6249 = vst.msk [vmem:[%s234 + $0x130] sm:$0xff] %vm4924, %v6083
      %6250 = vst.msk [vmem:[%s234 + $0x138] sm:$0xff] %vm4924, %v6088
      %6251 = vst.msk [vmem:[%s234 + $0x140] sm:$0xff] %vm4924, %v6093
      %6252 = vst.msk [vmem:[%s234 + $0x148] sm:$0xff] %vm4924, %v6098
      %6253 = vst.msk [vmem:[%s234 + $0x150] sm:$0xff] %vm4924, %v6103
      %6254 = vst.msk [vmem:[%s234 + $0x158] sm:$0xff] %vm4924, %v6108
      %6255 = vst.msk [vmem:[%s234 + $0x160] sm:$0xff] %vm4924, %v6113
      %6256 = vst.msk [vmem:[%s234 + $0x168] sm:$0xff] %vm4924, %v6118
      %6257 = vst.msk [vmem:[%s234 + $0x170] sm:$0xff] %vm4924, %v6123
      %6258 = vst.msk [vmem:[%s234 + $0x178] sm:$0xff] %vm4924, %v6128
      %6259 = vst.msk [vmem:[%s234 + $0x180] sm:$0xff] %vm4924, %v6133
      %6260 = vst.msk [vmem:[%s234 + $0x188] sm:$0xff] %vm4924, %v6138
      %6261 = vst.msk [vmem:[%s234 + $0x190] sm:$0xff] %vm4924, %v6143
      %6262 = vst.msk [vmem:[%s234 + $0x198] sm:$0xff] %vm4924, %v6148
      %6263 = vst.msk [vmem:[%s234 + $0x1a0] sm:$0xff] %vm4924, %v6153
      %6264 = vst.msk [vmem:[%s234 + $0x1a8] sm:$0xff] %vm4924, %v6158
      %6265 = vst.msk [vmem:[%s234 + $0x1b0] sm:$0xff] %vm4924, %v6163
      %6266 = vst.msk [vmem:[%s234 + $0x1b8] sm:$0xff] %vm4924, %v6168
      %6267 = vst.msk [vmem:[%s234 + $0x1c0] sm:$0xff] %vm4924, %v6173
      %6268 = vst.msk [vmem:[%s234 + $0x1c8] sm:$0xff] %vm4924, %v6178
      %6269 = vst.msk [vmem:[%s234 + $0x1d0] sm:$0xff] %vm4924, %v6183
      %6270 = vst.msk [vmem:[%s234 + $0x1d8] sm:$0xff] %vm4924, %v6188
      %6271 = vst.msk [vmem:[%s234 + $0x1e0] sm:$0xff] %vm4924, %v6193
      %6272 = vst.msk [vmem:[%s234 + $0x1e8] sm:$0xff] %vm4924, %v6198
      %6273 = vst.msk [vmem:[%s234 + $0x1f0] sm:$0xff] %vm4924, %v6203
      %6274 = vst.msk [vmem:[%s234 + $0x1f8] sm:$0xff] %vm4924, %v6208
      %v6275 = vsel %vm4924, %v5893, 0.0
      %v6276 = vsel %vm4924, %v5898, 0.0
      %v6277 = vadd.f32 %v6275, %v6276
      %v6278 = vsel %vm4924, %v5903, 0.0
      %v6279 = vadd.f32 %v6277, %v6278
      %v6280 = vsel %vm4924, %v5908, 0.0
      %v6281 = vadd.f32 %v6279, %v6280
      %v6282 = vsel %vm4924, %v5913, 0.0
      %v6283 = vadd.f32 %v6281, %v6282
      %v6284 = vsel %vm4924, %v5918, 0.0
      %v6285 = vadd.f32 %v6283, %v6284
      %v6286 = vsel %vm4924, %v5923, 0.0
      %v6287 = vadd.f32 %v6285, %v6286
      %v6288 = vsel %vm4924, %v5928, 0.0
      %v6289 = vadd.f32 %v6287, %v6288
      %v6290 = vsel %vm4924, %v5933, 0.0
      %v6291 = vadd.f32 %v6289, %v6290
      %v6292 = vsel %vm4924, %v5938, 0.0
      %v6293 = vadd.f32 %v6291, %v6292
      %v6294 = vsel %vm4924, %v5943, 0.0
      %v6295 = vadd.f32 %v6293, %v6294
      %v6296 = vsel %vm4924, %v5948, 0.0
      %v6297 = vadd.f32 %v6295, %v6296
      %v6298 = vsel %vm4924, %v5953, 0.0
      %v6299 = vadd.f32 %v6297, %v6298
      %v6300 = vsel %vm4924, %v5958, 0.0
      %v6301 = vadd.f32 %v6299, %v6300
      %v6302 = vsel %vm4924, %v5963, 0.0
      %v6303 = vadd.f32 %v6301, %v6302
      %v6304 = vsel %vm4924, %v5968, 0.0
      %v6305 = vadd.f32 %v6303, %v6304
      %v6306 = vsel %vm4924, %v5973, 0.0
      %v6307 = vadd.f32 %v6305, %v6306
      %v6308 = vsel %vm4924, %v5978, 0.0
      %v6309 = vadd.f32 %v6307, %v6308
      %v6310 = vsel %vm4924, %v5983, 0.0
      %v6311 = vadd.f32 %v6309, %v6310
      %v6312 = vsel %vm4924, %v5988, 0.0
      %v6313 = vadd.f32 %v6311, %v6312
      %v6314 = vsel %vm4924, %v5993, 0.0
      %v6315 = vadd.f32 %v6313, %v6314
      %v6316 = vsel %vm4924, %v5998, 0.0
      %v6317 = vadd.f32 %v6315, %v6316
      %v6318 = vsel %vm4924, %v6003, 0.0
      %v6319 = vadd.f32 %v6317, %v6318
      %v6320 = vsel %vm4924, %v6008, 0.0
      %v6321 = vadd.f32 %v6319, %v6320
      %v6322 = vsel %vm4924, %v6013, 0.0
      %v6323 = vadd.f32 %v6321, %v6322
      %v6324 = vsel %vm4924, %v6018, 0.0
      %v6325 = vadd.f32 %v6323, %v6324
      %v6326 = vsel %vm4924, %v6023, 0.0
      %v6327 = vadd.f32 %v6325, %v6326
      %v6328 = vsel %vm4924, %v6028, 0.0
      %v6329 = vadd.f32 %v6327, %v6328
      %v6330 = vsel %vm4924, %v6033, 0.0
      %v6331 = vadd.f32 %v6329, %v6330
      %v6332 = vsel %vm4924, %v6038, 0.0
      %v6333 = vadd.f32 %v6331, %v6332
      %v6334 = vsel %vm4924, %v6043, 0.0
      %v6335 = vadd.f32 %v6333, %v6334
      %v6336 = vsel %vm4924, %v6048, 0.0
      %v6337 = vadd.f32 %v6335, %v6336
      %v6338 = vsel %vm4924, %v6053, 0.0
      %v6339 = vadd.f32 %v6337, %v6338
      %v6340 = vsel %vm4924, %v6058, 0.0
      %v6341 = vadd.f32 %v6339, %v6340
      %v6342 = vsel %vm4924, %v6063, 0.0
      %v6343 = vadd.f32 %v6341, %v6342
      %v6344 = vsel %vm4924, %v6068, 0.0
      %v6345 = vadd.f32 %v6343, %v6344
      %v6346 = vsel %vm4924, %v6073, 0.0
      %v6347 = vadd.f32 %v6345, %v6346
      %v6348 = vsel %vm4924, %v6078, 0.0
      %v6349 = vadd.f32 %v6347, %v6348
      %v6350 = vsel %vm4924, %v6083, 0.0
      %v6351 = vadd.f32 %v6349, %v6350
      %v6352 = vsel %vm4924, %v6088, 0.0
      %v6353 = vadd.f32 %v6351, %v6352
      %v6354 = vsel %vm4924, %v6093, 0.0
      %v6355 = vadd.f32 %v6353, %v6354
      %v6356 = vsel %vm4924, %v6098, 0.0
      %v6357 = vadd.f32 %v6355, %v6356
      %v6358 = vsel %vm4924, %v6103, 0.0
      %v6359 = vadd.f32 %v6357, %v6358
      %v6360 = vsel %vm4924, %v6108, 0.0
      %v6361 = vadd.f32 %v6359, %v6360
      %v6362 = vsel %vm4924, %v6113, 0.0
      %v6363 = vadd.f32 %v6361, %v6362
      %v6364 = vsel %vm4924, %v6118, 0.0
      %v6365 = vadd.f32 %v6363, %v6364
      %v6366 = vsel %vm4924, %v6123, 0.0
      %v6367 = vadd.f32 %v6365, %v6366
      %v6368 = vsel %vm4924, %v6128, 0.0
      %v6369 = vadd.f32 %v6367, %v6368
      %v6370 = vsel %vm4924, %v6133, 0.0
      %v6371 = vadd.f32 %v6369, %v6370
      %v6372 = vsel %vm4924, %v6138, 0.0
      %v6373 = vadd.f32 %v6371, %v6372
      %v6374 = vsel %vm4924, %v6143, 0.0
      %v6375 = vadd.f32 %v6373, %v6374
      %v6376 = vsel %vm4924, %v6148, 0.0
      %v6377 = vadd.f32 %v6375, %v6376
      %v6378 = vsel %vm4924, %v6153, 0.0
      %v6379 = vadd.f32 %v6377, %v6378
      %v6380 = vsel %vm4924, %v6158, 0.0
      %v6381 = vadd.f32 %v6379, %v6380
      %v6382 = vsel %vm4924, %v6163, 0.0
      %v6383 = vadd.f32 %v6381, %v6382
      %v6384 = vsel %vm4924, %v6168, 0.0
      %v6385 = vadd.f32 %v6383, %v6384
      %v6386 = vsel %vm4924, %v6173, 0.0
      %v6387 = vadd.f32 %v6385, %v6386
      %v6388 = vsel %vm4924, %v6178, 0.0
      %v6389 = vadd.f32 %v6387, %v6388
      %v6390 = vsel %vm4924, %v6183, 0.0
      %v6391 = vadd.f32 %v6389, %v6390
      %v6392 = vsel %vm4924, %v6188, 0.0
      %v6393 = vadd.f32 %v6391, %v6392
      %v6394 = vsel %vm4924, %v6193, 0.0
      %v6395 = vadd.f32 %v6393, %v6394
      %v6396 = vsel %vm4924, %v6198, 0.0
      %v6397 = vadd.f32 %v6395, %v6396
      %v6398 = vsel %vm4924, %v6203, 0.0
      %v6399 = vadd.f32 %v6397, %v6398
      %v6400 = vsel %vm4924, %v6208, 0.0
      %v6401 = vadd.f32 %v6399, %v6400
      %v6402 = vrot.slane %v6401, 4
      %v6403 = vadd.f32 %v6401, %v6402
      %v6404 = vrot.slane %v6403, 2
      %v6405 = vadd.f32 %v6403, %v6404
      %v6406 = vrot.slane %v6405, 1
      %v6407 = vadd.f32 %v6405, %v6406
      %v6408 = vmul.f32 %v5893, %v5893
      %v6409 = vmul.f32 %v5898, %v5898
      %v6410 = vmul.f32 %v5903, %v5903
      %v6411 = vmul.f32 %v5908, %v5908
      %v6412 = vmul.f32 %v5913, %v5913
      %v6413 = vmul.f32 %v5918, %v5918
      %v6414 = vmul.f32 %v5923, %v5923
      %v6415 = vmul.f32 %v5928, %v5928
      %v6416 = vmul.f32 %v5933, %v5933
      %v6417 = vmul.f32 %v5938, %v5938
      %v6418 = vmul.f32 %v5943, %v5943
      %v6419 = vmul.f32 %v5948, %v5948
      %v6420 = vmul.f32 %v5953, %v5953
      %v6421 = vmul.f32 %v5958, %v5958
      %v6422 = vmul.f32 %v5963, %v5963
      %v6423 = vmul.f32 %v5968, %v5968
      %v6424 = vmul.f32 %v5973, %v5973
      %v6425 = vmul.f32 %v5978, %v5978
      %v6426 = vmul.f32 %v5983, %v5983
      %v6427 = vmul.f32 %v5988, %v5988
      %v6428 = vmul.f32 %v5993, %v5993
      %v6429 = vmul.f32 %v5998, %v5998
      %v6430 = vmul.f32 %v6003, %v6003
      %v6431 = vmul.f32 %v6008, %v6008
      %v6432 = vmul.f32 %v6013, %v6013
      %v6433 = vmul.f32 %v6018, %v6018
      %v6434 = vmul.f32 %v6023, %v6023
      %v6435 = vmul.f32 %v6028, %v6028
      %v6436 = vmul.f32 %v6033, %v6033
      %v6437 = vmul.f32 %v6038, %v6038
      %v6438 = vmul.f32 %v6043, %v6043
      %v6439 = vmul.f32 %v6048, %v6048
      %v6440 = vmul.f32 %v6053, %v6053
      %v6441 = vmul.f32 %v6058, %v6058
      %v6442 = vmul.f32 %v6063, %v6063
      %v6443 = vmul.f32 %v6068, %v6068
      %v6444 = vmul.f32 %v6073, %v6073
      %v6445 = vmul.f32 %v6078, %v6078
      %v6446 = vmul.f32 %v6083, %v6083
      %v6447 = vmul.f32 %v6088, %v6088
      %v6448 = vmul.f32 %v6093, %v6093
      %v6449 = vmul.f32 %v6098, %v6098
      %v6450 = vmul.f32 %v6103, %v6103
      %v6451 = vmul.f32 %v6108, %v6108
      %v6452 = vmul.f32 %v6113, %v6113
      %v6453 = vmul.f32 %v6118, %v6118
      %v6454 = vmul.f32 %v6123, %v6123
      %v6455 = vmul.f32 %v6128, %v6128
      %v6456 = vmul.f32 %v6133, %v6133
      %v6457 = vmul.f32 %v6138, %v6138
      %v6458 = vmul.f32 %v6143, %v6143
      %v6459 = vmul.f32 %v6148, %v6148
      %v6460 = vmul.f32 %v6153, %v6153
      %v6461 = vmul.f32 %v6158, %v6158
      %v6462 = vmul.f32 %v6163, %v6163
      %v6463 = vmul.f32 %v6168, %v6168
      %v6464 = vmul.f32 %v6173, %v6173
      %v6465 = vmul.f32 %v6178, %v6178
      %v6466 = vmul.f32 %v6183, %v6183
      %v6467 = vmul.f32 %v6188, %v6188
      %v6468 = vmul.f32 %v6193, %v6193
      %v6469 = vmul.f32 %v6198, %v6198
      %v6470 = vmul.f32 %v6203, %v6203
      %v6471 = vmul.f32 %v6208, %v6208
      %v6472 = vsel %vm4924, %v6408, 0.0
      %v6473 = vsel %vm4924, %v6409, 0.0
      %v6474 = vadd.f32 %v6472, %v6473
      %v6475 = vsel %vm4924, %v6410, 0.0
      %v6476 = vadd.f32 %v6474, %v6475
      %v6477 = vsel %vm4924, %v6411, 0.0
      %v6478 = vadd.f32 %v6476, %v6477
      %v6479 = vsel %vm4924, %v6412, 0.0
      %v6480 = vadd.f32 %v6478, %v6479
      %v6481 = vsel %vm4924, %v6413, 0.0
      %v6482 = vadd.f32 %v6480, %v6481
      %v6483 = vsel %vm4924, %v6414, 0.0
      %v6484 = vadd.f32 %v6482, %v6483
      %v6485 = vsel %vm4924, %v6415, 0.0
      %v6486 = vadd.f32 %v6484, %v6485
      %v6487 = vsel %vm4924, %v6416, 0.0
      %v6488 = vadd.f32 %v6486, %v6487
      %v6489 = vsel %vm4924, %v6417, 0.0
      %v6490 = vadd.f32 %v6488, %v6489
      %v6491 = vsel %vm4924, %v6418, 0.0
      %v6492 = vadd.f32 %v6490, %v6491
      %v6493 = vsel %vm4924, %v6419, 0.0
      %v6494 = vadd.f32 %v6492, %v6493
      %v6495 = vsel %vm4924, %v6420, 0.0
      %v6496 = vadd.f32 %v6494, %v6495
      %v6497 = vsel %vm4924, %v6421, 0.0
      %v6498 = vadd.f32 %v6496, %v6497
      %v6499 = vsel %vm4924, %v6422, 0.0
      %v6500 = vadd.f32 %v6498, %v6499
      %v6501 = vsel %vm4924, %v6423, 0.0
      %v6502 = vadd.f32 %v6500, %v6501
      %v6503 = vsel %vm4924, %v6424, 0.0
      %v6504 = vadd.f32 %v6502, %v6503
      %v6505 = vsel %vm4924, %v6425, 0.0
      %v6506 = vadd.f32 %v6504, %v6505
      %v6507 = vsel %vm4924, %v6426, 0.0
      %v6508 = vadd.f32 %v6506, %v6507
      %v6509 = vsel %vm4924, %v6427, 0.0
      %v6510 = vadd.f32 %v6508, %v6509
      %v6511 = vsel %vm4924, %v6428, 0.0
      %v6512 = vadd.f32 %v6510, %v6511
      %v6513 = vsel %vm4924, %v6429, 0.0
      %v6514 = vadd.f32 %v6512, %v6513
      %v6515 = vsel %vm4924, %v6430, 0.0
      %v6516 = vadd.f32 %v6514, %v6515
      %v6517 = vsel %vm4924, %v6431, 0.0
      %v6518 = vadd.f32 %v6516, %v6517
      %v6519 = vsel %vm4924, %v6432, 0.0
      %v6520 = vadd.f32 %v6518, %v6519
      %v6521 = vsel %vm4924, %v6433, 0.0
      %v6522 = vadd.f32 %v6520, %v6521
      %v6523 = vsel %vm4924, %v6434, 0.0
      %v6524 = vadd.f32 %v6522, %v6523
      %v6525 = vsel %vm4924, %v6435, 0.0
      %v6526 = vadd.f32 %v6524, %v6525
      %v6527 = vsel %vm4924, %v6436, 0.0
      %v6528 = vadd.f32 %v6526, %v6527
      %v6529 = vsel %vm4924, %v6437, 0.0
      %v6530 = vadd.f32 %v6528, %v6529
      %v6531 = vsel %vm4924, %v6438, 0.0
      %v6532 = vadd.f32 %v6530, %v6531
      %v6533 = vsel %vm4924, %v6439, 0.0
      %v6534 = vadd.f32 %v6532, %v6533
      %v6535 = vsel %vm4924, %v6440, 0.0
      %v6536 = vadd.f32 %v6534, %v6535
      %v6537 = vsel %vm4924, %v6441, 0.0
      %v6538 = vadd.f32 %v6536, %v6537
      %v6539 = vsel %vm4924, %v6442, 0.0
      %v6540 = vadd.f32 %v6538, %v6539
      %v6541 = vsel %vm4924, %v6443, 0.0
      %v6542 = vadd.f32 %v6540, %v6541
      %v6543 = vsel %vm4924, %v6444, 0.0
      %v6544 = vadd.f32 %v6542, %v6543
      %v6545 = vsel %vm4924, %v6445, 0.0
      %v6546 = vadd.f32 %v6544, %v6545
      %v6547 = vsel %vm4924, %v6446, 0.0
      %v6548 = vadd.f32 %v6546, %v6547
      %v6549 = vsel %vm4924, %v6447, 0.0
      %v6550 = vadd.f32 %v6548, %v6549
      %v6551 = vsel %vm4924, %v6448, 0.0
      %v6552 = vadd.f32 %v6550, %v6551
      %v6553 = vsel %vm4924, %v6449, 0.0
      %v6554 = vadd.f32 %v6552, %v6553
      %v6555 = vsel %vm4924, %v6450, 0.0
      %v6556 = vadd.f32 %v6554, %v6555
      %v6557 = vsel %vm4924, %v6451, 0.0
      %v6558 = vadd.f32 %v6556, %v6557
      %v6559 = vsel %vm4924, %v6452, 0.0
      %v6560 = vadd.f32 %v6558, %v6559
      %v6561 = vsel %vm4924, %v6453, 0.0
      %v6562 = vadd.f32 %v6560, %v6561
      %v6563 = vsel %vm4924, %v6454, 0.0
      %v6564 = vadd.f32 %v6562, %v6563
      %v6565 = vsel %vm4924, %v6455, 0.0
      %v6566 = vadd.f32 %v6564, %v6565
      %v6567 = vsel %vm4924, %v6456, 0.0
      %v6568 = vadd.f32 %v6566, %v6567
      %v6569 = vsel %vm4924, %v6457, 0.0
      %v6570 = vadd.f32 %v6568, %v6569
      %v6571 = vsel %vm4924, %v6458, 0.0
      %v6572 = vadd.f32 %v6570, %v6571
      %v6573 = vsel %vm4924, %v6459, 0.0
      %v6574 = vadd.f32 %v6572, %v6573
      %v6575 = vsel %vm4924, %v6460, 0.0
      %v6576 = vadd.f32 %v6574, %v6575
      %v6577 = vsel %vm4924, %v6461, 0.0
      %v6578 = vadd.f32 %v6576, %v6577
      %v6579 = vsel %vm4924, %v6462, 0.0
      %v6580 = vadd.f32 %v6578, %v6579
      %v6581 = vsel %vm4924, %v6463, 0.0
      %v6582 = vadd.f32 %v6580, %v6581
      %v6583 = vsel %vm4924, %v6464, 0.0
      %v6584 = vadd.f32 %v6582, %v6583
      %v6585 = vsel %vm4924, %v6465, 0.0
      %v6586 = vadd.f32 %v6584, %v6585
      %v6587 = vsel %vm4924, %v6466, 0.0
      %v6588 = vadd.f32 %v6586, %v6587
      %v6589 = vsel %vm4924, %v6467, 0.0
      %v6590 = vadd.f32 %v6588, %v6589
      %v6591 = vsel %vm4924, %v6468, 0.0
      %v6592 = vadd.f32 %v6590, %v6591
      %v6593 = vsel %vm4924, %v6469, 0.0
      %v6594 = vadd.f32 %v6592, %v6593
      %v6595 = vsel %vm4924, %v6470, 0.0
      %v6596 = vadd.f32 %v6594, %v6595
      %v6597 = vsel %vm4924, %v6471, 0.0
      %v6598 = vadd.f32 %v6596, %v6597
      %v6599 = vrot.slane %v6598, 4
      %v6600 = vadd.f32 %v6598, %v6599
      %v6601 = vrot.slane %v6600, 2
      %v6602 = vadd.f32 %v6600, %v6601
      %v6603 = vrot.slane %v6602, 1
      %v6604 = vadd.f32 %v6602, %v6603
      %v6605 = vsel %vm3559, %v6407, %v6604
      %vm6606 = vcmask 58368
      %6607 = vst.msk [vmem:[%s243] sm:$0x3] %vm6606, %v6605
      %s6608 = smul.u32 16, %s21
      %p6609 = scmp.lt.s32.totalorder %s20, 1
      %s6610 = scalar_select %p6609, %s20, 1
      %p6611 = scmp.lt.s32.totalorder %s6608, 31
      %s6612 = scalar_select %p6611, %s6608, 31
      %s6613 = smul.addr %s6612, 4
      %s6614 = smul.addr %s6610, 128
      %s6615 = sadd.s32 %s6613, %s6614
      %s6616 = smul.addr %s6615, 8
      %s6617 = scalar_lea.vmem %s3, %s6616
      %p6618 = scmp.lt.s32.totalorder %s20, 1
      %s6619 = scalar_select %p6618, %s20, 1
      %p6620 = scmp.lt.s32.totalorder %s21, 1
      %s6621 = scalar_select %p6620, %s21, 1
      %s6622 = smul.addr %s6619, 2
      %s6623 = sadd.s32 %s6621, %s6622
      %s6624 = smul.addr %s6623, 2
      %s6625 = scalar_lea.vmem %s4, %s6624
      // Predicated region
      $region33: #{upblock2d_forward.2} parent=31 // pred_check
        %p6626 = pneg %p116
      $region34: #{upblock2d_forward.2} parent=31 // pred_check_branch
        %6628 = sbr.rel (%p6626) target = $region36
      $region35: #{upblock2d_forward.2} parent=31 // pred_region
        %s6629 = smul.u32 16, %s21
      $region36: #{upblock2d_forward.2} parent=31 // pred_fallthru
        _
      // Predicated region
      $region37: #{upblock2d_forward.2} parent=31 // pred_check
        %p6630 = pneg %p144
      $region38: #{upblock2d_forward.2} parent=31 // pred_check_branch
        %6632 = sbr.rel (%p6630) target = $region40
      $region39: #{upblock2d_forward.2} parent=31 // pred_region
        _
      $region40: #{upblock2d_forward.2} parent=31 // pred_fallthru
        _
    $region32: #{upblock2d_forward.2} parent=5 // pred_fallthru
      _
    %p6633 = scmp.le.s32.totalorder 2, %s11
    // Predicated region
    $region41: #{upblock2d_forward.2} parent=5 // pred_check
      %p6634 = pneg %p6633
    $region42: #{upblock2d_forward.2} parent=5 // pred_check_branch
      %6636 = sbr.rel (%p6634) target = $region44
    $region43: #{upblock2d_forward.2} parent=5 // pred_region
      %s6637 = ssub.s32 %s11, 2
      // Predicated region
      $region45: #{upblock2d_forward.2} parent=43 // pred_check
        %p6638 = pneg %p122
      $region46: #{upblock2d_forward.2} parent=43 // pred_check_branch
        %6640 = sbr.rel (%p6638) target = $region48
      $region47: #{upblock2d_forward.2} parent=43 // pred_region
        %s6641 = smul.u32 16, %s23
        %p6642 = scmp.lt.s32.totalorder %s22, 1
        %s6643 = scalar_select %p6642, %s22, 1
        %p6644 = scmp.lt.s32.totalorder %s6641, 31
        %s6645 = scalar_select %p6644, %s6641, 31
        %s6646 = smul.addr %s6645, 4
        %s6647 = smul.addr %s6643, 128
        %s6648 = sadd.s32 %s6646, %s6647
        %s6649 = smul.addr %s6648, 8
        %s6650 = scalar_lea.vmem %s3, %s6649
      $region48: #{upblock2d_forward.2} parent=43 // pred_fallthru
        _
      // Predicated region
      $region49: #{upblock2d_forward.2} parent=43 // pred_check
        %p6651 = pneg %p150
      $region50: #{upblock2d_forward.2} parent=43 // pred_check_branch
        %6653 = sbr.rel (%p6651) target = $region52
      $region51: #{upblock2d_forward.2} parent=43 // pred_region
        %p6654 = scmp.lt.s32.totalorder %s22, 1
        %s6655 = scalar_select %p6654, %s22, 1
        %p6656 = scmp.lt.s32.totalorder %s23, 1
        %s6657 = scalar_select %p6656, %s23, 1
        %s6658 = smul.addr %s6655, 2
        %s6659 = sadd.s32 %s6657, %s6658
        %s6660 = smul.addr %s6659, 2
        %s6661 = scalar_lea.vmem %s4, %s6660
      $region52: #{upblock2d_forward.2} parent=43 // pred_fallthru
        _
    $region44: #{upblock2d_forward.2} parent=5 // pred_fallthru
      _
  $region6: #{upblock2d_forward.2} parent=0 // loop_footer
    %s15 = sadd.s32 1, %s11
  $region7: #{upblock2d_forward.2} parent=0 // loop_footer_branch
    %10 = sbr.rel target = $region3
  $region8: #{upblock2d_forward.2} parent=0 // loop_exit
    _

</llo_original>
